<compile_context>
chip_gen: v7x
topology: tpu7x:2x2x1
jax: 0.10.0
libtpu: 0.0.40
codegen_flags: <defaults>
</compile_context>

<pallas_src>
import functools
import math

import jax
import jax.numpy as jnp
from jax import lax
from jax.experimental import pallas as pl
from jax.experimental.pallas import tpu as pltpu


# ----------------------------------------------------------------------------
# Kernel: one encoder layer for one batch block; grid = (batch_blocks, layers)
# ----------------------------------------------------------------------------
def _layernorm(x, gamma, beta, eps=1e-5):
    mu = jnp.mean(x, axis=-1, keepdims=True)
    var = jnp.mean((x - mu) ** 2, axis=-1, keepdims=True)
    return (x - mu) * lax.rsqrt(var + eps) * gamma + beta


def encoder_layer_kernel(n_heads,
                         x_ref,
                         wqkv_ref, bqkv_ref, wo_ref, bo_ref,
                         g1_ref, be1_ref,
                         w1_ref, b1_ref, w2_ref, b2_ref,
                         g2_ref, be2_ref,
                         o_ref,
                         x_carry):
    bt, S, D = x_ref.shape
    M = bt * S
    H = n_heads
    hd = D // H
    scale = 1.0 / math.sqrt(hd)

    # ---- initialize the activation carry from the input at layer 0 ---------
    @pl.when(pl.program_id(1) == 0)
    def _():
        x_carry[...] = x_ref[...].reshape(M, D)

    x = x_carry[...]                                   # (M, D) f32
    xb = x.astype(jnp.bfloat16)

    # ---- fused QKV projection on the batch-folded row slab (one MXU pass) --
    qkv = jnp.dot(xb, wqkv_ref[0],
                  preferred_element_type=jnp.float32) + bqkv_ref[0]   # (M, 3D)

    # q scaled in f32 after the bias add (PyTorch MHA order: q = linear(q)*s)
    q_slab = (qkv[:, :D] * scale).reshape(bt, S, D)
    k_slab = qkv[:, D:2 * D].reshape(bt, S, D)
    v_slab = qkv[:, 2 * D:].reshape(bt, S, D)

    def gather_heads(slab):
        # (bt, S, D) -> (bt*H, S, hd): static lane slices stacked on a new
        # leading (untiled) axis so heads become the dot_general batch dim.
        return jnp.stack([slab[b, :, h * hd:(h + 1) * hd]
                          for b in range(bt) for h in range(H)], axis=0)

    qh = gather_heads(q_slab).astype(jnp.bfloat16)     # (bt*H, S, hd)
    kh = gather_heads(k_slab).astype(jnp.bfloat16)
    vh = gather_heads(v_slab).astype(jnp.bfloat16)

    # ---- attention scores, batched over (batch, head); contract hd ---------
    s = lax.dot_general(qh, kh, (((2,), (2,)), ((0,), (0,))),
                        preferred_element_type=jnp.float32)   # (bt*H, S, S)

    # ---- exact softmax in f32 (parity with PyTorch) -------------------------
    m = jnp.max(s, axis=-1, keepdims=True)
    p = jnp.exp(s - m)
    denom = jnp.sum(p, axis=-1, keepdims=True)
    p = p / denom

    ctx = lax.dot_general(p.astype(jnp.bfloat16), vh,
                          (((2,), (1,)), ((0,), (0,))),
                          preferred_element_type=jnp.float32)  # (bt*H, S, hd)

    # ---- re-assemble heads into a lane-dense (M, D) slab (XLU concat), then
    #      one full-K output projection on the MXU ----------------------------
    o_slab = jnp.concatenate(
        [jnp.concatenate([ctx[b * H + h] for h in range(H)], axis=-1)
         for b in range(bt)], axis=0)                          # (M, D) f32
    attn = jnp.dot(o_slab.astype(jnp.bfloat16), wo_ref[0],
                   preferred_element_type=jnp.float32) + bo_ref[0]

    # ---- residual + post-norm (dropout1 = identity in eval) -----------------
    src = _layernorm(x + attn, g1_ref[0], be1_ref[0])

    # ---- feed-forward: linear2(relu(linear1(src))) ---------------------------
    h1 = jnp.dot(src.astype(jnp.bfloat16), w1_ref[0],
                 preferred_element_type=jnp.float32) + b1_ref[0]
    h1 = jnp.maximum(h1, 0.0)
    ff = jnp.dot(h1.astype(jnp.bfloat16), w2_ref[0],
                 preferred_element_type=jnp.float32) + b2_ref[0]

    # ---- residual + post-norm ------------------------------------------------
    x_new = _layernorm(src + ff, g2_ref[0], be2_ref[0])

    x_carry[...] = x_new                                # carry to next layer
    o_ref[0] = x_new.reshape(bt, S, D).astype(o_ref.dtype)


# ----------------------------------------------------------------------------
# Host-side packing: stack layers on a leading L axis, fuse QKV, cast MXU
# weights to bf16 (biases / LN params stay f32).
# ----------------------------------------------------------------------------
def pack_params(layer_params):
    L = len(layer_params)
    D = layer_params[0]["wq"].shape[0]

    def stack(fn):
        return jnp.stack([fn(p) for p in layer_params], axis=0)

    wqkv = stack(lambda p: jnp.concatenate(
        [p["wq"], p["wk"], p["wv"]], axis=1)).astype(jnp.bfloat16)   # (L,D,3D)
    bqkv = stack(lambda p: jnp.concatenate(
        [p["bq"], p["bk"], p["bv"]], axis=0)).reshape(L, 1, 3 * D)
    wo = stack(lambda p: p["wo"]).astype(jnp.bfloat16)               # (L,D,D)
    bo = stack(lambda p: p["bo"]).reshape(L, 1, D)
    g1 = stack(lambda p: p["g1"]).reshape(L, 1, D)
    be1 = stack(lambda p: p["be1"]).reshape(L, 1, D)
    w1 = stack(lambda p: p["w1"]).astype(jnp.bfloat16)               # (L,D,Dh)
    b1 = stack(lambda p: p["b1"]).reshape(L, 1, -1)
    w2 = stack(lambda p: p["w2"]).astype(jnp.bfloat16)               # (L,Dh,D)
    b2 = stack(lambda p: p["b2"]).reshape(L, 1, D)
    g2 = stack(lambda p: p["g2"]).reshape(L, 1, D)
    be2 = stack(lambda p: p["be2"]).reshape(L, 1, D)
    return (wqkv, bqkv, wo, bo, g1, be1, w1, b1, w2, b2, g2, be2)


def transformer_encoder(x, packed, n_heads, *, batch_block=None,
                        out_dtype=jnp.float32):
    """Mirrors TransformerEncoder.forward: returns list of per-layer outputs."""
    B, S, D = x.shape
    assert D % n_heads == 0
    weights = list(packed)
    wqkv = weights[0]
    L = wqkv.shape[0]
    Dh = weights[6].shape[-1]                          # w1: (L, D, Dh)

    bt = batch_block if batch_block is not None else B
    assert B % bt == 0, "batch_block must divide batch"
    Bi = B // bt

    def wspec(a):
        nd = a.ndim
        return pl.BlockSpec((1,) + a.shape[1:],
                            lambda b, l, _nd=nd: (l,) + (0,) * (_nd - 1))

    in_specs = [pl.BlockSpec((bt, S, D), lambda b, l: (b, 0, 0))]
    in_specs += [wspec(w) for w in weights]
    out_specs = pl.BlockSpec((1, bt, S, D), lambda b, l: (l, b, 0, 0))

    # cost estimate (advisory)
    flops = B * L * (2 * S * D * 3 * D + 4 * S * S * D
                     + 2 * S * D * D + 4 * S * D * Dh)
    transcendentals = B * L * n_heads * S * S
    out_itemsize = jnp.dtype(out_dtype).itemsize
    bytes_accessed = (B * S * D * 4 + L * B * S * D * out_itemsize
                      + sum(int(w.size) * w.dtype.itemsize for w in weights))

    # per-step VMEM demand estimate (double-buffered weights + blocks + carry)
    per_layer_w = sum(int(w.size) * w.dtype.itemsize for w in weights) // L
    x_blk = bt * S * D * 4
    out_blk = bt * S * D * out_itemsize
    vmem_est = 2 * per_layer_w + 2 * x_blk + 2 * out_blk + x_blk + 4 * x_blk
    vmem_limit = max(32 * 1024 * 1024,
                     min(int(1.5 * vmem_est), 64 * 1024 * 1024))

    out = pl.pallas_call(
        functools.partial(encoder_layer_kernel, n_heads),
        out_shape=jax.ShapeDtypeStruct((L, B, S, D), out_dtype),
        grid=(Bi, L),
        in_specs=in_specs,
        out_specs=out_specs,
        scratch_shapes=[pltpu.VMEM((bt * S, D), jnp.float32)],
        compiler_params=pltpu.CompilerParams(
            dimension_semantics=("parallel", "arbitrary"),
            vmem_limit_bytes=vmem_limit),
        cost_estimate=pl.CostEstimate(flops=flops,
                                      transcendentals=transcendentals,
                                      bytes_accessed=bytes_accessed),
    )(x, *weights)
    return [out[l] for l in range(L)]


# ----------------------------------------------------------------------------
# Parameter init (xavier-uniform for >1-D params, as in the module).
# Linear weights stored pre-transposed as (in, out) so the kernel does x @ W.
# ----------------------------------------------------------------------------
def _xavier(key, shape):
    limit = math.sqrt(6.0 / (shape[0] + shape[1]))
    return jax.random.uniform(key, shape, jnp.float32, -limit, limit)


def init_layer_params(key, d_tar, d_hidden):
    ks = jax.random.split(key, 6)
    return {
        "wq": _xavier(ks[0], (d_tar, d_tar)),
        "wk": _xavier(ks[1], (d_tar, d_tar)),
        "wv": _xavier(ks[2], (d_tar, d_tar)),
        "wo": _xavier(ks[3], (d_tar, d_tar)),
        "w1": _xavier(ks[4], (d_tar, d_hidden)),
        "w2": _xavier(ks[5], (d_hidden, d_tar)),
        "bq": jnp.zeros((d_tar,), jnp.float32),
        "bk": jnp.zeros((d_tar,), jnp.float32),
        "bv": jnp.zeros((d_tar,), jnp.float32),
        "bo": jnp.zeros((d_tar,), jnp.float32),
        "b1": jnp.zeros((d_hidden,), jnp.float32),
        "b2": jnp.zeros((d_tar,), jnp.float32),
        "g1": jnp.ones((d_tar,), jnp.float32),
        "be1": jnp.zeros((d_tar,), jnp.float32),
        "g2": jnp.ones((d_tar,), jnp.float32),
        "be2": jnp.zeros((d_tar,), jnp.float32),
    }


# ----------------------------------------------------------------------------
# Pure-JAX reference mirroring the kernel's precision (bf16 MXU inputs,
# f32 accumulation, f32 softmax / layernorm / residuals).
# ----------------------------------------------------------------------------
def _ref_layer(x, p, n_heads):
    B, S, D = x.shape
    hd = D // n_heads
    scale = 1.0 / math.sqrt(hd)

    def bdot(a, b):
        return jnp.matmul(a.astype(jnp.bfloat16), b.astype(jnp.bfloat16),
                          preferred_element_type=jnp.float32)

    def ln(t, g, b, eps=1e-5):
        mu = jnp.mean(t, -1, keepdims=True)
        var = jnp.mean((t - mu) ** 2, -1, keepdims=True)
        return (t - mu) / jnp.sqrt(var + eps) * g + b

    q = (bdot(x, p["wq"]) + p["bq"]) * scale
    k = bdot(x, p["wk"]) + p["bk"]
    v = bdot(x, p["wv"]) + p["bv"]
    q = q.reshape(B, S, n_heads, hd).transpose(0, 2, 1, 3)
    k = k.reshape(B, S, n_heads, hd).transpose(0, 2, 1, 3)
    v = v.reshape(B, S, n_heads, hd).transpose(0, 2, 1, 3)
    s = jnp.einsum("bhqd,bhkd->bhqk", q.astype(jnp.bfloat16),
                   k.astype(jnp.bfloat16), preferred_element_type=jnp.float32)
    pattn = jax.nn.softmax(s, axis=-1)
    o = jnp.einsum("bhqk,bhkd->bhqd", pattn.astype(jnp.bfloat16),
                   v.astype(jnp.bfloat16), preferred_element_type=jnp.float32)
    o = o.transpose(0, 2, 1, 3).reshape(B, S, D)
    attn = bdot(o, p["wo"]) + p["bo"]
    src = ln(x + attn, p["g1"], p["be1"])
    h1 = jnp.maximum(bdot(src, p["w1"]) + p["b1"], 0.0)
    ff = bdot(h1, p["w2"]) + p["b2"]
    return ln(src + ff, p["g2"], p["be2"])


if __name__ == "__main__":
    B, S, D_TAR, D_HIDDEN, N_HEADS, N_LAYERS = 4, 16, 128, 256, 4, 3
    BATCH_BLOCK = 2          # grid = (B // BATCH_BLOCK, N_LAYERS)

    key = jax.random.PRNGKey(0)
    xkey, pkey = jax.random.split(key)
    x = jax.random.normal(xkey, (B, S, D_TAR), jnp.float32)

    layer_keys = jax.random.split(pkey, N_LAYERS)
    layer_params = [init_layer_params(k, D_TAR, D_HIDDEN) for k in layer_keys]
    packed = pack_params(layer_params)

    xs = transformer_encoder(x, packed, N_HEADS, batch_block=BATCH_BLOCK)
    for o in xs:
        jax.block_until_ready(o)

    # correctness check vs. precision-matched pure-JAX reference
    xr = x
    for params, out in zip(layer_params, xs):
        xr = _ref_layer(xr, params, N_HEADS)
        assert jnp.allclose(xr, out, atol=3e-2, rtol=3e-2), "mismatch vs reference"

    print("KERNEL_OK")
</pallas_src>

<mosaic_0001>
module attributes {stable_mosaic.version = 11 : i64} {
  func.func @encoder_layer_kernel(%arg0: i32, %arg1: i32, %arg2: memref<2x16x128xf32, #tpu.memory_space<vmem>>, %arg3: memref<1x128x384xbf16, #tpu.memory_space<vmem>>, %arg4: memref<1x1x384xf32, #tpu.memory_space<vmem>>, %arg5: memref<1x128x128xbf16, #tpu.memory_space<vmem>>, %arg6: memref<1x1x128xf32, #tpu.memory_space<vmem>>, %arg7: memref<1x1x128xf32, #tpu.memory_space<vmem>>, %arg8: memref<1x1x128xf32, #tpu.memory_space<vmem>>, %arg9: memref<1x128x256xbf16, #tpu.memory_space<vmem>>, %arg10: memref<1x1x256xf32, #tpu.memory_space<vmem>>, %arg11: memref<1x256x128xbf16, #tpu.memory_space<vmem>>, %arg12: memref<1x1x128xf32, #tpu.memory_space<vmem>>, %arg13: memref<1x1x128xf32, #tpu.memory_space<vmem>>, %arg14: memref<1x1x128xf32, #tpu.memory_space<vmem>>, %arg15: memref<1x2x16x128xf32, #tpu.memory_space<vmem>>, %arg16: memref<32x128xf32, #tpu.memory_space<vmem>>) attributes {dimension_semantics = [#tpu.dimension_semantics<parallel>, #tpu.dimension_semantics<arbitrary>], iteration_bounds = array<i64: 2, 3>, scalar_prefetch = 0 : i64, scratch_operands = 1 : i64, tpu.core_type = #tpu.core_type<tc>, window_params = [{transform_indices = @transform_0, window_bounds = array<i64: 2, 16, 128>}, {transform_indices = @transform_1, window_bounds = array<i64: 1, 128, 384>}, {transform_indices = @transform_2, window_bounds = array<i64: 1, 1, 384>}, {transform_indices = @transform_3, window_bounds = array<i64: 1, 128, 128>}, {transform_indices = @transform_4, window_bounds = array<i64: 1, 1, 128>}, {transform_indices = @transform_5, window_bounds = array<i64: 1, 1, 128>}, {transform_indices = @transform_6, window_bounds = array<i64: 1, 1, 128>}, {transform_indices = @transform_7, window_bounds = array<i64: 1, 128, 256>}, {transform_indices = @transform_8, window_bounds = array<i64: 1, 1, 256>}, {transform_indices = @transform_9, window_bounds = array<i64: 1, 256, 128>}, {transform_indices = @transform_10, window_bounds = array<i64: 1, 1, 128>}, {transform_indices = @transform_11, window_bounds = array<i64: 1, 1, 128>}, {transform_indices = @transform_12, window_bounds = array<i64: 1, 1, 128>}, {transform_indices = @transform_13, window_bounds = array<i64: 1, 2, 16, 128>}]} {
    %c0_i32 = arith.constant 0 : i32
    %0 = arith.cmpi eq, %arg1, %c0_i32 : i32
    %1 = arith.extui %0 : i1 to i32
    %c0_i32_0 = arith.constant 0 : i32
    %2 = arith.cmpi ne, %1, %c0_i32_0 : i32
    scf.if %2 {
      %c0_63 = arith.constant 0 : index
      %c0_64 = arith.constant 0 : index
      %c0_65 = arith.constant 0 : index
      %214 = vector.load %arg2[%c0_63, %c0_64, %c0_65] : memref<2x16x128xf32, #tpu.memory_space<vmem>>, vector<2x16x128xf32>
      %215 = vector.shape_cast %214 : vector<2x16x128xf32> to vector<32x128xf32>
      %c0_66 = arith.constant 0 : index
      %c0_67 = arith.constant 0 : index
      %216 = vector.load %arg16[%c0_66, %c0_67] : memref<32x128xf32, #tpu.memory_space<vmem>>, vector<32x128xf32>
      tpu.vector_store %arg16[%c0_66, %c0_67], %215 {strides = array<i32>} : memref<32x128xf32, #tpu.memory_space<vmem>>, vector<32x128xf32>,
    } else {
    }
    %c0 = arith.constant 0 : index
    %c0_1 = arith.constant 0 : index
    %3 = vector.load %arg16[%c0, %c0_1] : memref<32x128xf32, #tpu.memory_space<vmem>>, vector<32x128xf32>
    %4 = arith.truncf %3 : vector<32x128xf32> to vector<32x128xbf16>
    %c0_2 = arith.constant 0 : index
    %c0_3 = arith.constant 0 : index
    %c0_4 = arith.constant 0 : index
    %5 = vector.load %arg3[%c0_2, %c0_3, %c0_4] : memref<1x128x384xbf16, #tpu.memory_space<vmem>>, vector<1x128x384xbf16>
    %6 = vector.shape_cast %5 : vector<1x128x384xbf16> to vector<128x384xbf16>
    %cst = arith.constant dense<0.000000e+00> : vector<32x384xf32>
    %7 = tpu.matmul %4, %6, %cst {dimension_numbers = #tpu.dot_dimension_numbers<[1], [0], [0], [1], [0, 0, 1, 1], [], []>} : vector<32x128xbf16>, vector<128x384xbf16>, vector<32x384xf32> -> vector<32x384xf32>
    %c0_5 = arith.constant 0 : index
    %c0_6 = arith.constant 0 : index
    %c0_7 = arith.constant 0 : index
    %8 = vector.load %arg4[%c0_5, %c0_6, %c0_7] : memref<1x1x384xf32, #tpu.memory_space<vmem>>, vector<1x1x384xf32>
    %9 = vector.shape_cast %8 : vector<1x1x384xf32> to vector<1x384xf32>
    %10 = vector.broadcast %9 : vector<1x384xf32> to vector<32x384xf32>
    %11 = arith.addf %7, %10 : vector<32x384xf32>
    %12 = vector.extract_strided_slice %11 {offsets = [0, 0], sizes = [32, 128], strides = [1, 1]} : vector<32x384xf32> to vector<32x128xf32>
    %cst_8 = arith.constant 0.176776692 : f32
    %13 = vector.broadcast %cst_8 : f32 to vector<32x128xf32>
    %14 = arith.mulf %12, %13 : vector<32x128xf32>
    %15 = vector.shape_cast %14 : vector<32x128xf32> to vector<2x16x128xf32>
    %16 = vector.extract_strided_slice %11 {offsets = [0, 128], sizes = [32, 128], strides = [1, 1]} : vector<32x384xf32> to vector<32x128xf32>
    %17 = vector.shape_cast %16 : vector<32x128xf32> to vector<2x16x128xf32>
    %18 = vector.extract_strided_slice %11 {offsets = [0, 256], sizes = [32, 128], strides = [1, 1]} : vector<32x384xf32> to vector<32x128xf32>
    %19 = vector.shape_cast %18 : vector<32x128xf32> to vector<2x16x128xf32>
    %20 = vector.extract_strided_slice %15 {offsets = [0, 0, 0], sizes = [1, 16, 32], strides = [1, 1, 1]} : vector<2x16x128xf32> to vector<1x16x32xf32>
    %21 = vector.shape_cast %20 : vector<1x16x32xf32> to vector<16x32xf32>
    %22 = vector.extract_strided_slice %15 {offsets = [0, 0, 32], sizes = [1, 16, 32], strides = [1, 1, 1]} : vector<2x16x128xf32> to vector<1x16x32xf32>
    %23 = vector.shape_cast %22 : vector<1x16x32xf32> to vector<16x32xf32>
    %24 = vector.extract_strided_slice %15 {offsets = [0, 0, 64], sizes = [1, 16, 32], strides = [1, 1, 1]} : vector<2x16x128xf32> to vector<1x16x32xf32>
    %25 = vector.shape_cast %24 : vector<1x16x32xf32> to vector<16x32xf32>
    %26 = vector.extract_strided_slice %15 {offsets = [0, 0, 96], sizes = [1, 16, 32], strides = [1, 1, 1]} : vector<2x16x128xf32> to vector<1x16x32xf32>
    %27 = vector.shape_cast %26 : vector<1x16x32xf32> to vector<16x32xf32>
    %28 = vector.extract_strided_slice %15 {offsets = [1, 0, 0], sizes = [1, 16, 32], strides = [1, 1, 1]} : vector<2x16x128xf32> to vector<1x16x32xf32>
    %29 = vector.shape_cast %28 : vector<1x16x32xf32> to vector<16x32xf32>
    %30 = vector.extract_strided_slice %15 {offsets = [1, 0, 32], sizes = [1, 16, 32], strides = [1, 1, 1]} : vector<2x16x128xf32> to vector<1x16x32xf32>
    %31 = vector.shape_cast %30 : vector<1x16x32xf32> to vector<16x32xf32>
    %32 = vector.extract_strided_slice %15 {offsets = [1, 0, 64], sizes = [1, 16, 32], strides = [1, 1, 1]} : vector<2x16x128xf32> to vector<1x16x32xf32>
    %33 = vector.shape_cast %32 : vector<1x16x32xf32> to vector<16x32xf32>
    %34 = vector.extract_strided_slice %15 {offsets = [1, 0, 96], sizes = [1, 16, 32], strides = [1, 1, 1]} : vector<2x16x128xf32> to vector<1x16x32xf32>
    %35 = vector.shape_cast %34 : vector<1x16x32xf32> to vector<16x32xf32>
    %36 = vector.shape_cast %21 : vector<16x32xf32> to vector<1x16x32xf32>
    %37 = vector.shape_cast %23 : vector<16x32xf32> to vector<1x16x32xf32>
    %38 = vector.shape_cast %25 : vector<16x32xf32> to vector<1x16x32xf32>
    %39 = vector.shape_cast %27 : vector<16x32xf32> to vector<1x16x32xf32>
    %40 = vector.shape_cast %29 : vector<16x32xf32> to vector<1x16x32xf32>
    %41 = vector.shape_cast %31 : vector<16x32xf32> to vector<1x16x32xf32>
    %42 = vector.shape_cast %33 : vector<16x32xf32> to vector<1x16x32xf32>
    %43 = vector.shape_cast %35 : vector<16x32xf32> to vector<1x16x32xf32>
    %44 = tpu.concatenate %36, %37, %38, %39, %40, %41, %42, %43 in 0 : vector<1x16x32xf32>, vector<1x16x32xf32>, vector<1x16x32xf32>, vector<1x16x32xf32>, vector<1x16x32xf32>, vector<1x16x32xf32>, vector<1x16x32xf32>, vector<1x16x32xf32> -> vector<8x16x32xf32>
    %45 = arith.truncf %44 : vector<8x16x32xf32> to vector<8x16x32xbf16>
    %46 = vector.extract_strided_slice %17 {offsets = [0, 0, 0], sizes = [1, 16, 32], strides = [1, 1, 1]} : vector<2x16x128xf32> to vector<1x16x32xf32>
    %47 = vector.shape_cast %46 : vector<1x16x32xf32> to vector<16x32xf32>
    %48 = vector.extract_strided_slice %17 {offsets = [0, 0, 32], sizes = [1, 16, 32], strides = [1, 1, 1]} : vector<2x16x128xf32> to vector<1x16x32xf32>
    %49 = vector.shape_cast %48 : vector<1x16x32xf32> to vector<16x32xf32>
    %50 = vector.extract_strided_slice %17 {offsets = [0, 0, 64], sizes = [1, 16, 32], strides = [1, 1, 1]} : vector<2x16x128xf32> to vector<1x16x32xf32>
    %51 = vector.shape_cast %50 : vector<1x16x32xf32> to vector<16x32xf32>
    %52 = vector.extract_strided_slice %17 {offsets = [0, 0, 96], sizes = [1, 16, 32], strides = [1, 1, 1]} : vector<2x16x128xf32> to vector<1x16x32xf32>
    %53 = vector.shape_cast %52 : vector<1x16x32xf32> to vector<16x32xf32>
    %54 = vector.extract_strided_slice %17 {offsets = [1, 0, 0], sizes = [1, 16, 32], strides = [1, 1, 1]} : vector<2x16x128xf32> to vector<1x16x32xf32>
    %55 = vector.shape_cast %54 : vector<1x16x32xf32> to vector<16x32xf32>
    %56 = vector.extract_strided_slice %17 {offsets = [1, 0, 32], sizes = [1, 16, 32], strides = [1, 1, 1]} : vector<2x16x128xf32> to vector<1x16x32xf32>
    %57 = vector.shape_cast %56 : vector<1x16x32xf32> to vector<16x32xf32>
    %58 = vector.extract_strided_slice %17 {offsets = [1, 0, 64], sizes = [1, 16, 32], strides = [1, 1, 1]} : vector<2x16x128xf32> to vector<1x16x32xf32>
    %59 = vector.shape_cast %58 : vector<1x16x32xf32> to vector<16x32xf32>
    %60 = vector.extract_strided_slice %17 {offsets = [1, 0, 96], sizes = [1, 16, 32], strides = [1, 1, 1]} : vector<2x16x128xf32> to vector<1x16x32xf32>
    %61 = vector.shape_cast %60 : vector<1x16x32xf32> to vector<16x32xf32>
    %62 = vector.shape_cast %47 : vector<16x32xf32> to vector<1x16x32xf32>
    %63 = vector.shape_cast %49 : vector<16x32xf32> to vector<1x16x32xf32>
    %64 = vector.shape_cast %51 : vector<16x32xf32> to vector<1x16x32xf32>
    %65 = vector.shape_cast %53 : vector<16x32xf32> to vector<1x16x32xf32>
    %66 = vector.shape_cast %55 : vector<16x32xf32> to vector<1x16x32xf32>
    %67 = vector.shape_cast %57 : vector<16x32xf32> to vector<1x16x32xf32>
    %68 = vector.shape_cast %59 : vector<16x32xf32> to vector<1x16x32xf32>
    %69 = vector.shape_cast %61 : vector<16x32xf32> to vector<1x16x32xf32>
    %70 = tpu.concatenate %62, %63, %64, %65, %66, %67, %68, %69 in 0 : vector<1x16x32xf32>, vector<1x16x32xf32>, vector<1x16x32xf32>, vector<1x16x32xf32>, vector<1x16x32xf32>, vector<1x16x32xf32>, vector<1x16x32xf32>, vector<1x16x32xf32> -> vector<8x16x32xf32>
    %71 = arith.truncf %70 : vector<8x16x32xf32> to vector<8x16x32xbf16>
    %72 = vector.extract_strided_slice %19 {offsets = [0, 0, 0], sizes = [1, 16, 32], strides = [1, 1, 1]} : vector<2x16x128xf32> to vector<1x16x32xf32>
    %73 = vector.shape_cast %72 : vector<1x16x32xf32> to vector<16x32xf32>
    %74 = vector.extract_strided_slice %19 {offsets = [0, 0, 32], sizes = [1, 16, 32], strides = [1, 1, 1]} : vector<2x16x128xf32> to vector<1x16x32xf32>
    %75 = vector.shape_cast %74 : vector<1x16x32xf32> to vector<16x32xf32>
    %76 = vector.extract_strided_slice %19 {offsets = [0, 0, 64], sizes = [1, 16, 32], strides = [1, 1, 1]} : vector<2x16x128xf32> to vector<1x16x32xf32>
    %77 = vector.shape_cast %76 : vector<1x16x32xf32> to vector<16x32xf32>
    %78 = vector.extract_strided_slice %19 {offsets = [0, 0, 96], sizes = [1, 16, 32], strides = [1, 1, 1]} : vector<2x16x128xf32> to vector<1x16x32xf32>
    %79 = vector.shape_cast %78 : vector<1x16x32xf32> to vector<16x32xf32>
    %80 = vector.extract_strided_slice %19 {offsets = [1, 0, 0], sizes = [1, 16, 32], strides = [1, 1, 1]} : vector<2x16x128xf32> to vector<1x16x32xf32>
    %81 = vector.shape_cast %80 : vector<1x16x32xf32> to vector<16x32xf32>
    %82 = vector.extract_strided_slice %19 {offsets = [1, 0, 32], sizes = [1, 16, 32], strides = [1, 1, 1]} : vector<2x16x128xf32> to vector<1x16x32xf32>
    %83 = vector.shape_cast %82 : vector<1x16x32xf32> to vector<16x32xf32>
    %84 = vector.extract_strided_slice %19 {offsets = [1, 0, 64], sizes = [1, 16, 32], strides = [1, 1, 1]} : vector<2x16x128xf32> to vector<1x16x32xf32>
    %85 = vector.shape_cast %84 : vector<1x16x32xf32> to vector<16x32xf32>
    %86 = vector.extract_strided_slice %19 {offsets = [1, 0, 96], sizes = [1, 16, 32], strides = [1, 1, 1]} : vector<2x16x128xf32> to vector<1x16x32xf32>
    %87 = vector.shape_cast %86 : vector<1x16x32xf32> to vector<16x32xf32>
    %88 = vector.shape_cast %73 : vector<16x32xf32> to vector<1x16x32xf32>
    %89 = vector.shape_cast %75 : vector<16x32xf32> to vector<1x16x32xf32>
    %90 = vector.shape_cast %77 : vector<16x32xf32> to vector<1x16x32xf32>
    %91 = vector.shape_cast %79 : vector<16x32xf32> to vector<1x16x32xf32>
    %92 = vector.shape_cast %81 : vector<16x32xf32> to vector<1x16x32xf32>
    %93 = vector.shape_cast %83 : vector<16x32xf32> to vector<1x16x32xf32>
    %94 = vector.shape_cast %85 : vector<16x32xf32> to vector<1x16x32xf32>
    %95 = vector.shape_cast %87 : vector<16x32xf32> to vector<1x16x32xf32>
    %96 = tpu.concatenate %88, %89, %90, %91, %92, %93, %94, %95 in 0 : vector<1x16x32xf32>, vector<1x16x32xf32>, vector<1x16x32xf32>, vector<1x16x32xf32>, vector<1x16x32xf32>, vector<1x16x32xf32>, vector<1x16x32xf32>, vector<1x16x32xf32> -> vector<8x16x32xf32>
    %97 = arith.truncf %96 : vector<8x16x32xf32> to vector<8x16x32xbf16>
    %cst_9 = arith.constant dense<0.000000e+00> : vector<8x16x16xf32>
    %98 = tpu.matmul %45, %71, %cst_9 {dimension_numbers = #tpu.dot_dimension_numbers<[2], [2], [1], [1], [0, 0, 0, 1, 1, 1], [0], [0]>} : vector<8x16x32xbf16>, vector<8x16x32xbf16>, vector<8x16x16xf32> -> vector<8x16x16xf32>
    %cst_10 = arith.constant dense<0xFF800000> : vector<8x16xf32>
    %99 = vector.multi_reduction <maximumf>, %98, %cst_10 [2] : vector<8x16x16xf32> to vector<8x16xf32>
    %100 = vector.shape_cast %99 : vector<8x16xf32> to vector<8x16x1xf32>
    %101 = vector.broadcast %100 : vector<8x16x1xf32> to vector<8x16x16xf32>
    %102 = arith.subf %98, %101 : vector<8x16x16xf32>
    %103 = math.exp %102 : vector<8x16x16xf32>
    %cst_11 = arith.constant dense<0.000000e+00> : vector<8x16xf32>
    %104 = vector.multi_reduction <add>, %103, %cst_11 [2] : vector<8x16x16xf32> to vector<8x16xf32>
    %105 = vector.shape_cast %104 : vector<8x16xf32> to vector<8x16x1xf32>
    %106 = vector.broadcast %105 : vector<8x16x1xf32> to vector<8x16x16xf32>
    %107 = arith.divf %103, %106 : vector<8x16x16xf32>
    %108 = arith.truncf %107 : vector<8x16x16xf32> to vector<8x16x16xbf16>
    %cst_12 = arith.constant dense<0.000000e+00> : vector<8x16x32xf32>
    %109 = tpu.matmul %108, %97, %cst_12 {dimension_numbers = #tpu.dot_dimension_numbers<[2], [1], [1], [2], [0, 0, 0, 1, 1, 2], [0], [0]>} : vector<8x16x16xbf16>, vector<8x16x32xbf16>, vector<8x16x32xf32> -> vector<8x16x32xf32>
    %110 = vector.extract_strided_slice %109 {offsets = [0, 0, 0], sizes = [1, 16, 32], strides = [1, 1, 1]} : vector<8x16x32xf32> to vector<1x16x32xf32>
    %111 = vector.shape_cast %110 : vector<1x16x32xf32> to vector<16x32xf32>
    %112 = vector.extract_strided_slice %109 {offsets = [1, 0, 0], sizes = [1, 16, 32], strides = [1, 1, 1]} : vector<8x16x32xf32> to vector<1x16x32xf32>
    %113 = vector.shape_cast %112 : vector<1x16x32xf32> to vector<16x32xf32>
    %114 = vector.extract_strided_slice %109 {offsets = [2, 0, 0], sizes = [1, 16, 32], strides = [1, 1, 1]} : vector<8x16x32xf32> to vector<1x16x32xf32>
    %115 = vector.shape_cast %114 : vector<1x16x32xf32> to vector<16x32xf32>
    %116 = vector.extract_strided_slice %109 {offsets = [3, 0, 0], sizes = [1, 16, 32], strides = [1, 1, 1]} : vector<8x16x32xf32> to vector<1x16x32xf32>
    %117 = vector.shape_cast %116 : vector<1x16x32xf32> to vector<16x32xf32>
    %118 = tpu.concatenate %111, %113, %115, %117 in 1 : vector<16x32xf32>, vector<16x32xf32>, vector<16x32xf32>, vector<16x32xf32> -> vector<16x128xf32>
    %119 = vector.extract_strided_slice %109 {offsets = [4, 0, 0], sizes = [1, 16, 32], strides = [1, 1, 1]} : vector<8x16x32xf32> to vector<1x16x32xf32>
    %120 = vector.shape_cast %119 : vector<1x16x32xf32> to vector<16x32xf32>
    %121 = vector.extract_strided_slice %109 {offsets = [5, 0, 0], sizes = [1, 16, 32], strides = [1, 1, 1]} : vector<8x16x32xf32> to vector<1x16x32xf32>
    %122 = vector.shape_cast %121 : vector<1x16x32xf32> to vector<16x32xf32>
    %123 = vector.extract_strided_slice %109 {offsets = [6, 0, 0], sizes = [1, 16, 32], strides = [1, 1, 1]} : vector<8x16x32xf32> to vector<1x16x32xf32>
    %124 = vector.shape_cast %123 : vector<1x16x32xf32> to vector<16x32xf32>
    %125 = vector.extract_strided_slice %109 {offsets = [7, 0, 0], sizes = [1, 16, 32], strides = [1, 1, 1]} : vector<8x16x32xf32> to vector<1x16x32xf32>
    %126 = vector.shape_cast %125 : vector<1x16x32xf32> to vector<16x32xf32>
    %127 = tpu.concatenate %120, %122, %124, %126 in 1 : vector<16x32xf32>, vector<16x32xf32>, vector<16x32xf32>, vector<16x32xf32> -> vector<16x128xf32>
    %128 = tpu.concatenate %118, %127 in 0 : vector<16x128xf32>, vector<16x128xf32> -> vector<32x128xf32>
    %129 = arith.truncf %128 : vector<32x128xf32> to vector<32x128xbf16>
    %c0_13 = arith.constant 0 : index
    %c0_14 = arith.constant 0 : index
    %c0_15 = arith.constant 0 : index
    %130 = vector.load %arg5[%c0_13, %c0_14, %c0_15] : memref<1x128x128xbf16, #tpu.memory_space<vmem>>, vector<1x128x128xbf16>
    %131 = vector.shape_cast %130 : vector<1x128x128xbf16> to vector<128x128xbf16>
    %cst_16 = arith.constant dense<0.000000e+00> : vector<32x128xf32>
    %132 = tpu.matmul %129, %131, %cst_16 {dimension_numbers = #tpu.dot_dimension_numbers<[1], [0], [0], [1], [0, 0, 1, 1], [], []>} : vector<32x128xbf16>, vector<128x128xbf16>, vector<32x128xf32> -> vector<32x128xf32>
    %c0_17 = arith.constant 0 : index
    %c0_18 = arith.constant 0 : index
    %c0_19 = arith.constant 0 : index
    %133 = vector.load %arg6[%c0_17, %c0_18, %c0_19] : memref<1x1x128xf32, #tpu.memory_space<vmem>>, vector<1x1x128xf32>
    %134 = vector.shape_cast %133 : vector<1x1x128xf32> to vector<1x128xf32>
    %135 = vector.broadcast %134 : vector<1x128xf32> to vector<32x128xf32>
    %136 = arith.addf %132, %135 : vector<32x128xf32>
    %137 = arith.addf %3, %136 : vector<32x128xf32>
    %c0_20 = arith.constant 0 : index
    %c0_21 = arith.constant 0 : index
    %c0_22 = arith.constant 0 : index
    %138 = vector.load %arg7[%c0_20, %c0_21, %c0_22] : memref<1x1x128xf32, #tpu.memory_space<vmem>>, vector<1x1x128xf32>
    %139 = vector.shape_cast %138 : vector<1x1x128xf32> to vector<1x128xf32>
    %c0_23 = arith.constant 0 : index
    %c0_24 = arith.constant 0 : index
    %c0_25 = arith.constant 0 : index
    %140 = vector.load %arg8[%c0_23, %c0_24, %c0_25] : memref<1x1x128xf32, #tpu.memory_space<vmem>>, vector<1x1x128xf32>
    %141 = vector.shape_cast %140 : vector<1x1x128xf32> to vector<1x128xf32>
    %cst_26 = arith.constant dense<0.000000e+00> : vector<32xf32>
    %142 = vector.multi_reduction <add>, %137, %cst_26 [1] : vector<32x128xf32> to vector<32xf32>
    %143 = vector.shape_cast %142 : vector<32xf32> to vector<32x1xf32>
    %cst_27 = arith.constant 1.280000e+02 : f32
    %144 = vector.broadcast %cst_27 : f32 to vector<32x1xf32>
    %145 = arith.divf %143, %144 : vector<32x1xf32>
    %146 = vector.broadcast %145 : vector<32x1xf32> to vector<32x128xf32>
    %147 = arith.subf %137, %146 : vector<32x128xf32>
    %148 = arith.mulf %147, %147 : vector<32x128xf32>
    %cst_28 = arith.constant dense<0.000000e+00> : vector<32xf32>
    %149 = vector.multi_reduction <add>, %148, %cst_28 [1] : vector<32x128xf32> to vector<32xf32>
    %150 = vector.shape_cast %149 : vector<32xf32> to vector<32x1xf32>
    %cst_29 = arith.constant 1.280000e+02 : f32
    %151 = vector.broadcast %cst_29 : f32 to vector<32x1xf32>
    %152 = arith.divf %150, %151 : vector<32x1xf32>
    %153 = vector.broadcast %145 : vector<32x1xf32> to vector<32x128xf32>
    %154 = arith.subf %137, %153 : vector<32x128xf32>
    %cst_30 = arith.constant 9.99999974E-6 : f32
    %155 = vector.broadcast %cst_30 : f32 to vector<32x1xf32>
    %156 = arith.addf %152, %155 : vector<32x1xf32>
    %157 = math.rsqrt %156 : vector<32x1xf32>
    %158 = vector.broadcast %157 : vector<32x1xf32> to vector<32x128xf32>
    %159 = arith.mulf %154, %158 : vector<32x128xf32>
    %160 = vector.broadcast %139 : vector<1x128xf32> to vector<32x128xf32>
    %161 = arith.mulf %159, %160 : vector<32x128xf32>
    %162 = vector.broadcast %141 : vector<1x128xf32> to vector<32x128xf32>
    %163 = arith.addf %161, %162 : vector<32x128xf32>
    %164 = arith.truncf %163 : vector<32x128xf32> to vector<32x128xbf16>
    %c0_31 = arith.constant 0 : index
    %c0_32 = arith.constant 0 : index
    %c0_33 = arith.constant 0 : index
    %165 = vector.load %arg9[%c0_31, %c0_32, %c0_33] : memref<1x128x256xbf16, #tpu.memory_space<vmem>>, vector<1x128x256xbf16>
    %166 = vector.shape_cast %165 : vector<1x128x256xbf16> to vector<128x256xbf16>
    %cst_34 = arith.constant dense<0.000000e+00> : vector<32x256xf32>
    %167 = tpu.matmul %164, %166, %cst_34 {dimension_numbers = #tpu.dot_dimension_numbers<[1], [0], [0], [1], [0, 0, 1, 1], [], []>} : vector<32x128xbf16>, vector<128x256xbf16>, vector<32x256xf32> -> vector<32x256xf32>
    %c0_35 = arith.constant 0 : index
    %c0_36 = arith.constant 0 : index
    %c0_37 = arith.constant 0 : index
    %168 = vector.load %arg10[%c0_35, %c0_36, %c0_37] : memref<1x1x256xf32, #tpu.memory_space<vmem>>, vector<1x1x256xf32>
    %169 = vector.shape_cast %168 : vector<1x1x256xf32> to vector<1x256xf32>
    %170 = vector.broadcast %169 : vector<1x256xf32> to vector<32x256xf32>
    %171 = arith.addf %167, %170 : vector<32x256xf32>
    %cst_38 = arith.constant 0.000000e+00 : f32
    %172 = vector.broadcast %cst_38 : f32 to vector<32x256xf32>
    %173 = arith.maximumf %171, %172 : vector<32x256xf32>
    %174 = arith.truncf %173 : vector<32x256xf32> to vector<32x256xbf16>
    %c0_39 = arith.constant 0 : index
    %c0_40 = arith.constant 0 : index
    %c0_41 = arith.constant 0 : index
    %175 = vector.load %arg11[%c0_39, %c0_40, %c0_41] : memref<1x256x128xbf16, #tpu.memory_space<vmem>>, vector<1x256x128xbf16>
    %176 = vector.shape_cast %175 : vector<1x256x128xbf16> to vector<256x128xbf16>
    %cst_42 = arith.constant dense<0.000000e+00> : vector<32x128xf32>
    %177 = tpu.matmul %174, %176, %cst_42 {dimension_numbers = #tpu.dot_dimension_numbers<[1], [0], [0], [1], [0, 0, 1, 1], [], []>} : vector<32x256xbf16>, vector<256x128xbf16>, vector<32x128xf32> -> vector<32x128xf32>
    %c0_43 = arith.constant 0 : index
    %c0_44 = arith.constant 0 : index
    %c0_45 = arith.constant 0 : index
    %178 = vector.load %arg12[%c0_43, %c0_44, %c0_45] : memref<1x1x128xf32, #tpu.memory_space<vmem>>, vector<1x1x128xf32>
    %179 = vector.shape_cast %178 : vector<1x1x128xf32> to vector<1x128xf32>
    %180 = vector.broadcast %179 : vector<1x128xf32> to vector<32x128xf32>
    %181 = arith.addf %177, %180 : vector<32x128xf32>
    %182 = arith.addf %163, %181 : vector<32x128xf32>
    %c0_46 = arith.constant 0 : index
    %c0_47 = arith.constant 0 : index
    %c0_48 = arith.constant 0 : index
    %183 = vector.load %arg13[%c0_46, %c0_47, %c0_48] : memref<1x1x128xf32, #tpu.memory_space<vmem>>, vector<1x1x128xf32>
    %184 = vector.shape_cast %183 : vector<1x1x128xf32> to vector<1x128xf32>
    %c0_49 = arith.constant 0 : index
    %c0_50 = arith.constant 0 : index
    %c0_51 = arith.constant 0 : index
    %185 = vector.load %arg14[%c0_49, %c0_50, %c0_51] : memref<1x1x128xf32, #tpu.memory_space<vmem>>, vector<1x1x128xf32>
    %186 = vector.shape_cast %185 : vector<1x1x128xf32> to vector<1x128xf32>
    %cst_52 = arith.constant dense<0.000000e+00> : vector<32xf32>
    %187 = vector.multi_reduction <add>, %182, %cst_52 [1] : vector<32x128xf32> to vector<32xf32>
    %188 = vector.shape_cast %187 : vector<32xf32> to vector<32x1xf32>
    %cst_53 = arith.constant 1.280000e+02 : f32
    %189 = vector.broadcast %cst_53 : f32 to vector<32x1xf32>
    %190 = arith.divf %188, %189 : vector<32x1xf32>
    %191 = vector.broadcast %190 : vector<32x1xf32> to vector<32x128xf32>
    %192 = arith.subf %182, %191 : vector<32x128xf32>
    %193 = arith.mulf %192, %192 : vector<32x128xf32>
    %cst_54 = arith.constant dense<0.000000e+00> : vector<32xf32>
    %194 = vector.multi_reduction <add>, %193, %cst_54 [1] : vector<32x128xf32> to vector<32xf32>
    %195 = vector.shape_cast %194 : vector<32xf32> to vector<32x1xf32>
    %cst_55 = arith.constant 1.280000e+02 : f32
    %196 = vector.broadcast %cst_55 : f32 to vector<32x1xf32>
    %197 = arith.divf %195, %196 : vector<32x1xf32>
    %198 = vector.broadcast %190 : vector<32x1xf32> to vector<32x128xf32>
    %199 = arith.subf %182, %198 : vector<32x128xf32>
    %cst_56 = arith.constant 9.99999974E-6 : f32
    %200 = vector.broadcast %cst_56 : f32 to vector<32x1xf32>
    %201 = arith.addf %197, %200 : vector<32x1xf32>
    %202 = math.rsqrt %201 : vector<32x1xf32>
    %203 = vector.broadcast %202 : vector<32x1xf32> to vector<32x128xf32>
    %204 = arith.mulf %199, %203 : vector<32x128xf32>
    %205 = vector.broadcast %184 : vector<1x128xf32> to vector<32x128xf32>
    %206 = arith.mulf %204, %205 : vector<32x128xf32>
    %207 = vector.broadcast %186 : vector<1x128xf32> to vector<32x128xf32>
    %208 = arith.addf %206, %207 : vector<32x128xf32>
    %c0_57 = arith.constant 0 : index
    %c0_58 = arith.constant 0 : index
    %209 = vector.load %arg16[%c0_57, %c0_58] : memref<32x128xf32, #tpu.memory_space<vmem>>, vector<32x128xf32>
    tpu.vector_store %arg16[%c0_57, %c0_58], %208 {strides = array<i32>} : memref<32x128xf32, #tpu.memory_space<vmem>>, vector<32x128xf32>,
    %210 = vector.shape_cast %208 : vector<32x128xf32> to vector<2x16x128xf32>
    %c0_59 = arith.constant 0 : index
    %c0_60 = arith.constant 0 : index
    %c0_61 = arith.constant 0 : index
    %c0_62 = arith.constant 0 : index
    %211 = vector.load %arg15[%c0_59, %c0_60, %c0_61, %c0_62] : memref<1x2x16x128xf32, #tpu.memory_space<vmem>>, vector<1x2x16x128xf32>
    %212 = vector.shape_cast %211 : vector<1x2x16x128xf32> to vector<2x16x128xf32>
    %213 = vector.shape_cast %210 : vector<2x16x128xf32> to vector<1x2x16x128xf32>
    tpu.vector_store %arg15[%c0_59, %c0_60, %c0_61, %c0_62], %213 {strides = array<i32>} : memref<1x2x16x128xf32, #tpu.memory_space<vmem>>, vector<1x2x16x128xf32>,
    return
  }
  func.func @transform_0(%arg0: i32, %arg1: i32) -> (i32, i32, i32) {
    %c0_i32 = arith.constant 0 : i32
    %c0_i32_0 = arith.constant 0 : i32
    %c0_i32_1 = arith.constant 0 : i32
    return %arg0, %c0_i32, %c0_i32_0 : i32, i32, i32
  }
  func.func @transform_1(%arg0: i32, %arg1: i32) -> (i32, i32, i32) {
    %c0_i32 = arith.constant 0 : i32
    %c0_i32_0 = arith.constant 0 : i32
    %c0_i32_1 = arith.constant 0 : i32
    return %arg1, %c0_i32, %c0_i32_0 : i32, i32, i32
  }
  func.func @transform_2(%arg0: i32, %arg1: i32) -> (i32, i32, i32) {
    %c0_i32 = arith.constant 0 : i32
    %c0_i32_0 = arith.constant 0 : i32
    %c0_i32_1 = arith.constant 0 : i32
    return %arg1, %c0_i32, %c0_i32_0 : i32, i32, i32
  }
  func.func @transform_3(%arg0: i32, %arg1: i32) -> (i32, i32, i32) {
    %c0_i32 = arith.constant 0 : i32
    %c0_i32_0 = arith.constant 0 : i32
    %c0_i32_1 = arith.constant 0 : i32
    return %arg1, %c0_i32, %c0_i32_0 : i32, i32, i32
  }
  func.func @transform_4(%arg0: i32, %arg1: i32) -> (i32, i32, i32) {
    %c0_i32 = arith.constant 0 : i32
    %c0_i32_0 = arith.constant 0 : i32
    %c0_i32_1 = arith.constant 0 : i32
    return %arg1, %c0_i32, %c0_i32_0 : i32, i32, i32
  }
  func.func @transform_5(%arg0: i32, %arg1: i32) -> (i32, i32, i32) {
    %c0_i32 = arith.constant 0 : i32
    %c0_i32_0 = arith.constant 0 : i32
    %c0_i32_1 = arith.constant 0 : i32
    return %arg1, %c0_i32, %c0_i32_0 : i32, i32, i32
  }
  func.func @transform_6(%arg0: i32, %arg1: i32) -> (i32, i32, i32) {
    %c0_i32 = arith.constant 0 : i32
    %c0_i32_0 = arith.constant 0 : i32
    %c0_i32_1 = arith.constant 0 : i32
    return %arg1, %c0_i32, %c0_i32_0 : i32, i32, i32
  }
  func.func @transform_7(%arg0: i32, %arg1: i32) -> (i32, i32, i32) {
    %c0_i32 = arith.constant 0 : i32
    %c0_i32_0 = arith.constant 0 : i32
    %c0_i32_1 = arith.constant 0 : i32
    return %arg1, %c0_i32, %c0_i32_0 : i32, i32, i32
  }
  func.func @transform_8(%arg0: i32, %arg1: i32) -> (i32, i32, i32) {
    %c0_i32 = arith.constant 0 : i32
    %c0_i32_0 = arith.constant 0 : i32
    %c0_i32_1 = arith.constant 0 : i32
    return %arg1, %c0_i32, %c0_i32_0 : i32, i32, i32
  }
  func.func @transform_9(%arg0: i32, %arg1: i32) -> (i32, i32, i32) {
    %c0_i32 = arith.constant 0 : i32
    %c0_i32_0 = arith.constant 0 : i32
    %c0_i32_1 = arith.constant 0 : i32
    return %arg1, %c0_i32, %c0_i32_0 : i32, i32, i32
  }
  func.func @transform_10(%arg0: i32, %arg1: i32) -> (i32, i32, i32) {
    %c0_i32 = arith.constant 0 : i32
    %c0_i32_0 = arith.constant 0 : i32
    %c0_i32_1 = arith.constant 0 : i32
    return %arg1, %c0_i32, %c0_i32_0 : i32, i32, i32
  }
  func.func @transform_11(%arg0: i32, %arg1: i32) -> (i32, i32, i32) {
    %c0_i32 = arith.constant 0 : i32
    %c0_i32_0 = arith.constant 0 : i32
    %c0_i32_1 = arith.constant 0 : i32
    return %arg1, %c0_i32, %c0_i32_0 : i32, i32, i32
  }
  func.func @transform_12(%arg0: i32, %arg1: i32) -> (i32, i32, i32) {
    %c0_i32 = arith.constant 0 : i32
    %c0_i32_0 = arith.constant 0 : i32
    %c0_i32_1 = arith.constant 0 : i32
    return %arg1, %c0_i32, %c0_i32_0 : i32, i32, i32
  }
  func.func @transform_13(%arg0: i32, %arg1: i32) -> (i32, i32, i32, i32) {
    %c0_i32 = arith.constant 0 : i32
    %c0_i32_0 = arith.constant 0 : i32
    %c0_i32_1 = arith.constant 0 : i32
    return %arg1, %arg0, %c0_i32, %c0_i32_0 : i32, i32, i32, i32
  }
}

</mosaic_0001>

<llo_original>
// kernel: tpu_custom_call.1
$region0: #{tpu_custom_call.1}
  #allocation0 [shape = 'u32[]', space=smem, size = 0x4, offset = 0x4, fixed_abs, tag = 'smem constant byte address 0x4 - core index']
  #allocation1 [shape = 'u32[144,128]{1,0:T(1,128)}', space=vmem, size = 0x12000, scoped, tag = 'internal scratch']
  #allocation2 [shape = 'f32[32,128]{1,0:T(8,128)}', space=vmem, size = 0x4000, scoped, tag = 'scratch operand']
  %s0 = inlined_call_operand.hbm [shape: f32[4,16,128], index: 0, kind: input, shape index: {}]
  %s1 = inlined_call_operand.hbm [shape: bf16[3,128,384], index: 1, kind: input, shape index: {}]
  %s2 = inlined_call_operand.hbm [shape: f32[3,1,384], index: 2, kind: input, shape index: {}]
  %s3 = inlined_call_operand.hbm [shape: bf16[3,128,128], index: 3, kind: input, shape index: {}]
  %s4 = inlined_call_operand.vmem [shape: f32[3,1,128], index: 4, kind: input, shape index: {}]
  %s5 = inlined_call_operand.vmem [shape: f32[3,1,128], index: 5, kind: input, shape index: {}]
  %s6 = inlined_call_operand.vmem [shape: f32[3,1,128], index: 6, kind: input, shape index: {}]
  %s7 = inlined_call_operand.hbm [shape: bf16[3,128,256], index: 7, kind: input, shape index: {}]
  %s8 = inlined_call_operand.vmem [shape: f32[3,1,256], index: 8, kind: input, shape index: {}]
  %s9 = inlined_call_operand.hbm [shape: bf16[3,256,128], index: 9, kind: input, shape index: {}]
  %s10 = inlined_call_operand.vmem [shape: f32[3,1,128], index: 10, kind: input, shape index: {}]
  %s11 = inlined_call_operand.vmem [shape: f32[3,1,128], index: 11, kind: input, shape index: {}]
  %s12 = inlined_call_operand.vmem [shape: f32[3,1,128], index: 12, kind: input, shape index: {}]
  %s13 = inlined_call_operand.hbm [shape: f32[3,4,16,128], index: 13, kind: output, shape index: {}]
  %s14 = sld [smem:[#allocation0]]
  $region113: #{tpu_custom_call.1} parent=0
    _
  %s16 = ssub.s32 1, %s14
  %s17 = scalar_select 0, %s16, %s14
  $region1: #{tpu_custom_call.1} parent=0
    #allocation3 [shape = 'u8[32768]{0}', space=vmem, size = 0x8000, scoped, tag = 'input window, operand 0']
    #allocation4 [shape = 's32[2]{0}', space=sflag, size = 0x8, scoped, tag = 'scoped memory for tpu_custom_call.1']
    #allocation5 [shape = 's32[2]{0}', space=sflag, size = 0x8, scoped, tag = 'scoped memory for tpu_custom_call.1']
    #allocation6 [shape = 'u8[196608]{0}', space=vmem, size = 0x30000, scoped, tag = 'input window, operand 1']
    #allocation7 [shape = 's32[2]{0}', space=sflag, size = 0x8, scoped, tag = 'scoped memory for tpu_custom_call.1']
    #allocation8 [shape = 'u8[3072]{0}', space=vmem, size = 0xc00, scoped, tag = 'input window, operand 2']
    #allocation9 [shape = 'u8[65536]{0}', space=vmem, size = 0x10000, scoped, tag = 'input window, operand 3']
    #allocation10 [shape = 's32[2]{0}', space=sflag, size = 0x8, scoped, tag = 'scoped memory for tpu_custom_call.1']
    #allocation11 [shape = 'u8[131072]{0}', space=vmem, size = 0x20000, scoped, tag = 'input window, operand 7']
    #allocation12 [shape = 'u8[131072]{0}', space=vmem, size = 0x20000, scoped, tag = 'input window, operand 9']
    #allocation13 [shape = 's32[2]{0}', space=sflag, size = 0x8, scoped, tag = 'scoped memory for tpu_custom_call.1']
    #allocation14 [shape = 'u8[32768]{0}', space=vmem, size = 0x8000, scoped, tag = 'output window, operand 0']
    %18 = vsyncpa [#allocation4], 0
    %s19 = scalar_lea.sflag [#allocation4], 1
    %20 = vsyncpa %s19, 0
    %21 = vsyncpa [#allocation7], 0
    %s22 = scalar_lea.sflag [#allocation7], 1
    %23 = vsyncpa %s22, 0
    %24 = vsyncpa [#allocation10], 0
    %s25 = scalar_lea.sflag [#allocation10], 1
    %26 = vsyncpa %s25, 0
    %27 = vsyncpa [#allocation13], 0
    %s28 = scalar_lea.sflag [#allocation13], 1
    %29 = vsyncpa %s28, 0
    %30 = vsyncpa [#allocation5], 0
    %s31 = scalar_lea.sflag [#allocation5], 1
    %32 = vsyncpa %s31, 0
    loop: start=0, step=1, limit=8
    $region2: #{tpu_custom_call.1} parent=1 // loop_pre_header
      _
    $region3: #{tpu_custom_call.1} parent=1 // loop_header
      %s34 = sphi 0, %s38
      %p35 = scmp.ge.s32.totalorder %s34, 8
      %s41 = sphi 0, %s53
      %s42 = sphi 0, %s49
      %s43 = sphi 0, %s41
      %s44 = sphi 0, %s42
      %s45 = sphi 0, %s43
      %s46 = sphi 0, %s44
      %s56 = sphi 0, %s58
      %s59 = sphi 0, %s56
      %s60 = sphi 0, %s59
      %s76 = sphi 0, %s60
      %s82 = sphi 0, %s84
      %s85 = sphi 0, %s82
      %s86 = sphi 0, %s85
      %s102 = sphi 0, %s86
      %s108 = sphi 0, %s110
      %s111 = sphi 0, %s108
      %s112 = sphi 0, %s111
      %s128 = sphi 0, %s112
      %s134 = sphi 0, %s136
      %s137 = sphi 0, %s134
      %s138 = sphi 0, %s137
      %s154 = sphi 0, %s138
      %s160 = sphi 0, %s162
      %s163 = sphi 0, %s160
      %s164 = sphi 0, %s163
      %s180 = sphi 0, %s164
      %s186 = sphi 0, %s188
      %s189 = sphi 0, %s186
      %s190 = sphi 0, %s189
      %s206 = sphi 0, %s190
      %s212 = sphi 0, %s214
      %s215 = sphi 0, %s212
      %s216 = sphi 0, %s215
      %s232 = sphi 0, %s216
      %s238 = sphi 0, %s240
      %s241 = sphi 0, %s238
      %s242 = sphi 0, %s241
      %s258 = sphi 0, %s242
      %s264 = sphi 0, %s266
      %s267 = sphi 0, %s264
      %s268 = sphi 0, %s267
      %s284 = sphi 0, %s268
      %s290 = sphi 0, %s292
      %s293 = sphi 0, %s290
      %s294 = sphi 0, %s293
      %s310 = sphi 0, %s294
      %s316 = sphi 0, %s318
      %s319 = sphi 0, %s316
      %s320 = sphi 0, %s319
      %s336 = sphi 0, %s320
      %s342 = sphi 0, %s344
      %s345 = sphi 0, %s342
      %s346 = sphi 0, %s345
      %s362 = sphi 0, %s346
      %s368 = sphi 0, %s370
      %s371 = sphi 0, %s368
      %s372 = sphi 0, %s371
      %s388 = sphi 0, %s372
      %s396 = sphi 0, %s398
      %s399 = sphi 0, %s396
      %s400 = sphi 0, %s399
      %s416 = sphi 0, %s400
    $region4: #{tpu_custom_call.1} parent=1 // loop_header_branch
      %37 = sbr.rel (%p35) target = $region8
    $region5: #{tpu_custom_call.1} parent=1 // loop_body
      %s39 = ssub.s32 %s34, 1
      %s40 = ssub.s32 %s34, 2
      %s47 = sadd.s32 1, %s42
      %p48 = scmp.ge.s32.totalorder %s47, 3
      %s49 = scalar_select %p48, 0, %s47
      %s50 = sadd.s32 1, %s41
      %s51 = scalar_select %p48, %s50, %s41
      %p52 = scmp.ge.s32.totalorder %s51, 2
      %s53 = scalar_select %p52, 0, %s51
      %s54 = ssub.s32 %s41, %s53
      %p55 = scmp.eq.s32.totalorder %s54, 0
      %s57 = sadd.s32 %s56, 1
      %s58 = scalar_select %p55, %s56, %s57
      %p61 = pneg %p55
      %p62 = scmp.eq.s32.totalorder %s34, 5
      %p63 = por %p61, %p62
      %p64 = scmp.ne.s32.totalorder %s56, %s59
      %p65 = scmp.eq.s32.totalorder %s34, 0
      %p66 = por %p64, %p65
      %p67 = scmp.ne.s32.totalorder %s56, %s59
      %p68 = scmp.eq.s32.totalorder %s39, 5
      %p69 = por %p67, %p68
      %p70 = scmp.ne.s32.totalorder %s59, %s60
      %p71 = scmp.eq.s32.totalorder %s39, 0
      %p72 = por %p70, %p71
      %p73 = scmp.ne.s32.totalorder %s59, %s60
      %p74 = scmp.eq.s32.totalorder %s40, 5
      %p75 = por %p73, %p74
      %p77 = scmp.ne.s32.totalorder %s60, %s76
      %p78 = scmp.eq.s32.totalorder %s40, 0
      %p79 = por %p77, %p78
      %s80 = ssub.s32 %s42, %s49
      %p81 = scmp.eq.s32.totalorder %s80, 0
      %s83 = sadd.s32 %s82, 1
      %s84 = scalar_select %p81, %s82, %s83
      %p87 = pneg %p81
      %p88 = scmp.eq.s32.totalorder %s34, 5
      %p89 = por %p87, %p88
      %p90 = scmp.ne.s32.totalorder %s82, %s85
      %p91 = scmp.eq.s32.totalorder %s34, 0
      %p92 = por %p90, %p91
      %p93 = scmp.ne.s32.totalorder %s82, %s85
      %p94 = scmp.eq.s32.totalorder %s39, 5
      %p95 = por %p93, %p94
      %p96 = scmp.ne.s32.totalorder %s85, %s86
      %p97 = scmp.eq.s32.totalorder %s39, 0
      %p98 = por %p96, %p97
      %p99 = scmp.ne.s32.totalorder %s85, %s86
      %p100 = scmp.eq.s32.totalorder %s40, 5
      %p101 = por %p99, %p100
      %p103 = scmp.ne.s32.totalorder %s86, %s102
      %p104 = scmp.eq.s32.totalorder %s40, 0
      %p105 = por %p103, %p104
      %s106 = ssub.s32 %s42, %s49
      %p107 = scmp.eq.s32.totalorder %s106, 0
      %s109 = sadd.s32 %s108, 1
      %s110 = scalar_select %p107, %s108, %s109
      %p113 = pneg %p107
      %p114 = scmp.eq.s32.totalorder %s34, 5
      %p115 = por %p113, %p114
      %p116 = scmp.ne.s32.totalorder %s108, %s111
      %p117 = scmp.eq.s32.totalorder %s34, 0
      %p118 = por %p116, %p117
      %p119 = scmp.ne.s32.totalorder %s108, %s111
      %p120 = scmp.eq.s32.totalorder %s39, 5
      %p121 = por %p119, %p120
      %p122 = scmp.ne.s32.totalorder %s111, %s112
      %p123 = scmp.eq.s32.totalorder %s39, 0
      %p124 = por %p122, %p123
      %p125 = scmp.ne.s32.totalorder %s111, %s112
      %p126 = scmp.eq.s32.totalorder %s40, 5
      %p127 = por %p125, %p126
      %p129 = scmp.ne.s32.totalorder %s112, %s128
      %p130 = scmp.eq.s32.totalorder %s40, 0
      %p131 = por %p129, %p130
      %s132 = ssub.s32 %s42, %s49
      %p133 = scmp.eq.s32.totalorder %s132, 0
      %s135 = sadd.s32 %s134, 1
      %s136 = scalar_select %p133, %s134, %s135
      %p139 = pneg %p133
      %p140 = scmp.eq.s32.totalorder %s34, 5
      %p141 = por %p139, %p140
      %p142 = scmp.ne.s32.totalorder %s134, %s137
      %p143 = scmp.eq.s32.totalorder %s34, 0
      %p144 = por %p142, %p143
      %p145 = scmp.ne.s32.totalorder %s134, %s137
      %p146 = scmp.eq.s32.totalorder %s39, 5
      %p147 = por %p145, %p146
      %p148 = scmp.ne.s32.totalorder %s137, %s138
      %p149 = scmp.eq.s32.totalorder %s39, 0
      %p150 = por %p148, %p149
      %p151 = scmp.ne.s32.totalorder %s137, %s138
      %p152 = scmp.eq.s32.totalorder %s40, 5
      %p153 = por %p151, %p152
      %p155 = scmp.ne.s32.totalorder %s138, %s154
      %p156 = scmp.eq.s32.totalorder %s40, 0
      %p157 = por %p155, %p156
      %s158 = ssub.s32 %s42, %s49
      %p159 = scmp.eq.s32.totalorder %s158, 0
      %s161 = sadd.s32 %s160, 1
      %s162 = scalar_select %p159, %s160, %s161
      %p165 = pneg %p159
      %p166 = scmp.eq.s32.totalorder %s34, 5
      %p167 = por %p165, %p166
      %p168 = scmp.ne.s32.totalorder %s160, %s163
      %p169 = scmp.eq.s32.totalorder %s34, 0
      %p170 = por %p168, %p169
      %p171 = scmp.ne.s32.totalorder %s160, %s163
      %p172 = scmp.eq.s32.totalorder %s39, 5
      %p173 = por %p171, %p172
      %p174 = scmp.ne.s32.totalorder %s163, %s164
      %p175 = scmp.eq.s32.totalorder %s39, 0
      %p176 = por %p174, %p175
      %p177 = scmp.ne.s32.totalorder %s163, %s164
      %p178 = scmp.eq.s32.totalorder %s40, 5
      %p179 = por %p177, %p178
      %p181 = scmp.ne.s32.totalorder %s164, %s180
      %p182 = scmp.eq.s32.totalorder %s40, 0
      %p183 = por %p181, %p182
      %s184 = ssub.s32 %s42, %s49
      %p185 = scmp.eq.s32.totalorder %s184, 0
      %s187 = sadd.s32 %s186, 1
      %s188 = scalar_select %p185, %s186, %s187
      %p191 = pneg %p185
      %p192 = scmp.eq.s32.totalorder %s34, 5
      %p193 = por %p191, %p192
      %p194 = scmp.ne.s32.totalorder %s186, %s189
      %p195 = scmp.eq.s32.totalorder %s34, 0
      %p196 = por %p194, %p195
      %p197 = scmp.ne.s32.totalorder %s186, %s189
      %p198 = scmp.eq.s32.totalorder %s39, 5
      %p199 = por %p197, %p198
      %p200 = scmp.ne.s32.totalorder %s189, %s190
      %p201 = scmp.eq.s32.totalorder %s39, 0
      %p202 = por %p200, %p201
      %p203 = scmp.ne.s32.totalorder %s189, %s190
      %p204 = scmp.eq.s32.totalorder %s40, 5
      %p205 = por %p203, %p204
      %p207 = scmp.ne.s32.totalorder %s190, %s206
      %p208 = scmp.eq.s32.totalorder %s40, 0
      %p209 = por %p207, %p208
      %s210 = ssub.s32 %s42, %s49
      %p211 = scmp.eq.s32.totalorder %s210, 0
      %s213 = sadd.s32 %s212, 1
      %s214 = scalar_select %p211, %s212, %s213
      %p217 = pneg %p211
      %p218 = scmp.eq.s32.totalorder %s34, 5
      %p219 = por %p217, %p218
      %p220 = scmp.ne.s32.totalorder %s212, %s215
      %p221 = scmp.eq.s32.totalorder %s34, 0
      %p222 = por %p220, %p221
      %p223 = scmp.ne.s32.totalorder %s212, %s215
      %p224 = scmp.eq.s32.totalorder %s39, 5
      %p225 = por %p223, %p224
      %p226 = scmp.ne.s32.totalorder %s215, %s216
      %p227 = scmp.eq.s32.totalorder %s39, 0
      %p228 = por %p226, %p227
      %p229 = scmp.ne.s32.totalorder %s215, %s216
      %p230 = scmp.eq.s32.totalorder %s40, 5
      %p231 = por %p229, %p230
      %p233 = scmp.ne.s32.totalorder %s216, %s232
      %p234 = scmp.eq.s32.totalorder %s40, 0
      %p235 = por %p233, %p234
      %s236 = ssub.s32 %s42, %s49
      %p237 = scmp.eq.s32.totalorder %s236, 0
      %s239 = sadd.s32 %s238, 1
      %s240 = scalar_select %p237, %s238, %s239
      %p243 = pneg %p237
      %p244 = scmp.eq.s32.totalorder %s34, 5
      %p245 = por %p243, %p244
      %p246 = scmp.ne.s32.totalorder %s238, %s241
      %p247 = scmp.eq.s32.totalorder %s34, 0
      %p248 = por %p246, %p247
      %p249 = scmp.ne.s32.totalorder %s238, %s241
      %p250 = scmp.eq.s32.totalorder %s39, 5
      %p251 = por %p249, %p250
      %p252 = scmp.ne.s32.totalorder %s241, %s242
      %p253 = scmp.eq.s32.totalorder %s39, 0
      %p254 = por %p252, %p253
      %p255 = scmp.ne.s32.totalorder %s241, %s242
      %p256 = scmp.eq.s32.totalorder %s40, 5
      %p257 = por %p255, %p256
      %p259 = scmp.ne.s32.totalorder %s242, %s258
      %p260 = scmp.eq.s32.totalorder %s40, 0
      %p261 = por %p259, %p260
      %s262 = ssub.s32 %s42, %s49
      %p263 = scmp.eq.s32.totalorder %s262, 0
      %s265 = sadd.s32 %s264, 1
      %s266 = scalar_select %p263, %s264, %s265
      %p269 = pneg %p263
      %p270 = scmp.eq.s32.totalorder %s34, 5
      %p271 = por %p269, %p270
      %p272 = scmp.ne.s32.totalorder %s264, %s267
      %p273 = scmp.eq.s32.totalorder %s34, 0
      %p274 = por %p272, %p273
      %p275 = scmp.ne.s32.totalorder %s264, %s267
      %p276 = scmp.eq.s32.totalorder %s39, 5
      %p277 = por %p275, %p276
      %p278 = scmp.ne.s32.totalorder %s267, %s268
      %p279 = scmp.eq.s32.totalorder %s39, 0
      %p280 = por %p278, %p279
      %p281 = scmp.ne.s32.totalorder %s267, %s268
      %p282 = scmp.eq.s32.totalorder %s40, 5
      %p283 = por %p281, %p282
      %p285 = scmp.ne.s32.totalorder %s268, %s284
      %p286 = scmp.eq.s32.totalorder %s40, 0
      %p287 = por %p285, %p286
      %s288 = ssub.s32 %s42, %s49
      %p289 = scmp.eq.s32.totalorder %s288, 0
      %s291 = sadd.s32 %s290, 1
      %s292 = scalar_select %p289, %s290, %s291
      %p295 = pneg %p289
      %p296 = scmp.eq.s32.totalorder %s34, 5
      %p297 = por %p295, %p296
      %p298 = scmp.ne.s32.totalorder %s290, %s293
      %p299 = scmp.eq.s32.totalorder %s34, 0
      %p300 = por %p298, %p299
      %p301 = scmp.ne.s32.totalorder %s290, %s293
      %p302 = scmp.eq.s32.totalorder %s39, 5
      %p303 = por %p301, %p302
      %p304 = scmp.ne.s32.totalorder %s293, %s294
      %p305 = scmp.eq.s32.totalorder %s39, 0
      %p306 = por %p304, %p305
      %p307 = scmp.ne.s32.totalorder %s293, %s294
      %p308 = scmp.eq.s32.totalorder %s40, 5
      %p309 = por %p307, %p308
      %p311 = scmp.ne.s32.totalorder %s294, %s310
      %p312 = scmp.eq.s32.totalorder %s40, 0
      %p313 = por %p311, %p312
      %s314 = ssub.s32 %s42, %s49
      %p315 = scmp.eq.s32.totalorder %s314, 0
      %s317 = sadd.s32 %s316, 1
      %s318 = scalar_select %p315, %s316, %s317
      %p321 = pneg %p315
      %p322 = scmp.eq.s32.totalorder %s34, 5
      %p323 = por %p321, %p322
      %p324 = scmp.ne.s32.totalorder %s316, %s319
      %p325 = scmp.eq.s32.totalorder %s34, 0
      %p326 = por %p324, %p325
      %p327 = scmp.ne.s32.totalorder %s316, %s319
      %p328 = scmp.eq.s32.totalorder %s39, 5
      %p329 = por %p327, %p328
      %p330 = scmp.ne.s32.totalorder %s319, %s320
      %p331 = scmp.eq.s32.totalorder %s39, 0
      %p332 = por %p330, %p331
      %p333 = scmp.ne.s32.totalorder %s319, %s320
      %p334 = scmp.eq.s32.totalorder %s40, 5
      %p335 = por %p333, %p334
      %p337 = scmp.ne.s32.totalorder %s320, %s336
      %p338 = scmp.eq.s32.totalorder %s40, 0
      %p339 = por %p337, %p338
      %s340 = ssub.s32 %s42, %s49
      %p341 = scmp.eq.s32.totalorder %s340, 0
      %s343 = sadd.s32 %s342, 1
      %s344 = scalar_select %p341, %s342, %s343
      %p347 = pneg %p341
      %p348 = scmp.eq.s32.totalorder %s34, 5
      %p349 = por %p347, %p348
      %p350 = scmp.ne.s32.totalorder %s342, %s345
      %p351 = scmp.eq.s32.totalorder %s34, 0
      %p352 = por %p350, %p351
      %p353 = scmp.ne.s32.totalorder %s342, %s345
      %p354 = scmp.eq.s32.totalorder %s39, 5
      %p355 = por %p353, %p354
      %p356 = scmp.ne.s32.totalorder %s345, %s346
      %p357 = scmp.eq.s32.totalorder %s39, 0
      %p358 = por %p356, %p357
      %p359 = scmp.ne.s32.totalorder %s345, %s346
      %p360 = scmp.eq.s32.totalorder %s40, 5
      %p361 = por %p359, %p360
      %p363 = scmp.ne.s32.totalorder %s346, %s362
      %p364 = scmp.eq.s32.totalorder %s40, 0
      %p365 = por %p363, %p364
      %s366 = ssub.s32 %s42, %s49
      %p367 = scmp.eq.s32.totalorder %s366, 0
      %s369 = sadd.s32 %s368, 1
      %s370 = scalar_select %p367, %s368, %s369
      %p373 = pneg %p367
      %p374 = scmp.eq.s32.totalorder %s34, 5
      %p375 = por %p373, %p374
      %p376 = scmp.ne.s32.totalorder %s368, %s371
      %p377 = scmp.eq.s32.totalorder %s34, 0
      %p378 = por %p376, %p377
      %p379 = scmp.ne.s32.totalorder %s368, %s371
      %p380 = scmp.eq.s32.totalorder %s39, 5
      %p381 = por %p379, %p380
      %p382 = scmp.ne.s32.totalorder %s371, %s372
      %p383 = scmp.eq.s32.totalorder %s39, 0
      %p384 = por %p382, %p383
      %p385 = scmp.ne.s32.totalorder %s371, %s372
      %p386 = scmp.eq.s32.totalorder %s40, 5
      %p387 = por %p385, %p386
      %p389 = scmp.ne.s32.totalorder %s372, %s388
      %p390 = scmp.eq.s32.totalorder %s40, 0
      %p391 = por %p389, %p390
      %s392 = ssub.s32 %s42, %s49
      %s393 = ssub.s32 %s41, %s53
      %s394 = sor.u32 %s392, %s393
      %p395 = scmp.eq.s32.totalorder %s394, 0
      %s397 = sadd.s32 %s396, 1
      %s398 = scalar_select %p395, %s396, %s397
      %p401 = pneg %p395
      %p402 = scmp.eq.s32.totalorder %s34, 5
      %p403 = por %p401, %p402
      %p404 = scmp.ne.s32.totalorder %s396, %s399
      %p405 = scmp.eq.s32.totalorder %s34, 0
      %p406 = por %p404, %p405
      %p407 = scmp.ne.s32.totalorder %s396, %s399
      %p408 = scmp.eq.s32.totalorder %s39, 5
      %p409 = por %p407, %p408
      %p410 = scmp.ne.s32.totalorder %s399, %s400
      %p411 = scmp.eq.s32.totalorder %s39, 0
      %p412 = por %p410, %p411
      %p413 = scmp.ne.s32.totalorder %s399, %s400
      %p414 = scmp.eq.s32.totalorder %s40, 5
      %p415 = por %p413, %p414
      %p417 = scmp.ne.s32.totalorder %s400, %s416
      %p418 = scmp.eq.s32.totalorder %s40, 0
      %p419 = por %p417, %p418
      %p420 = scmp.le.s32.totalorder 1, %s34
      %p421 = scmp.lt.s32.totalorder %s34, 7
      %p422 = pnand %p420, %p421
      %p423 = pneg %p422
      // Predicated region
      $region9: #{tpu_custom_call.1} parent=5 // pred_check
        _
      $region10: #{tpu_custom_call.1} parent=5 // pred_check_branch
        %425 = sbr.rel (%p422) target = $region12
      $region11: #{tpu_custom_call.1} parent=5 // pred_region
        %s426 = ssub.s32 %s34, 1
      $region12: #{tpu_custom_call.1} parent=5 // pred_fallthru
        _
      %p427 = scmp.lt.s32.totalorder %s34, 6
      // Predicated region
      $region13: #{tpu_custom_call.1} parent=5 // pred_check
        %p428 = pneg %p427
      $region14: #{tpu_custom_call.1} parent=5 // pred_check_branch
        %430 = sbr.rel (%p428) target = $region16
      $region15: #{tpu_custom_call.1} parent=5 // pred_region
        // Predicated region
        $region17: #{tpu_custom_call.1} parent=15 // pred_check
          %p431 = pneg %p66
        $region18: #{tpu_custom_call.1} parent=15 // pred_check_branch
          %433 = sbr.rel (%p431) target = $region20
        $region19: #{tpu_custom_call.1} parent=15 // pred_region
          %s434 = sand.u32 %s56, 1
          %s435 = scalar_lea.sflag [#allocation4], %s434
          %s436 = sand.u32 %s56, 1
          %s437 = smul.addr %s436, 32
          %s438 = scalar_lea.vmem [#allocation3], %s437
          %s439 = smul.u32 2, %s41
          %s441 = ssub.s32 512, 512
          %442 = vsyncadd %s435, %s441
          %s443 = smul.addr %s439, 2
          %s444 = smul.addr %s443, 128
          %s445 = scalar_lea.hbm %s0, %s444
          %s446 = sshll.u32 %s438, 4
          %s447 = int_to_ptr.vmem [resolvable:$true] %s446
          %452 = dma.hbm_to_vmem [thread:$0]  %s445, 512, %s447, %s435, 128, 128, 8
        $region20: #{tpu_custom_call.1} parent=15 // pred_fallthru
          _
        // Predicated region
        $region21: #{tpu_custom_call.1} parent=15 // pred_check
          %p453 = pneg %p92
        $region22: #{tpu_custom_call.1} parent=15 // pred_check_branch
          %455 = sbr.rel (%p453) target = $region24
        $region23: #{tpu_custom_call.1} parent=15 // pred_region
          %s456 = sand.u32 %s34, 1
          %s457 = scalar_lea.sflag [#allocation7], %s456
          %s458 = sand.u32 %s82, 1
          %s459 = smul.addr %s458, 192
          %s460 = scalar_lea.vmem [#allocation6], %s459
          %s462 = ssub.s32 3072, 3072
          %463 = vsyncadd %s457, %s462
          %s464 = smul.addr %s42, 48
          %s465 = smul.addr %s464, 64
          %s466 = scalar_lea.hbm %s1, %s465
          %s467 = sshll.u32 %s460, 4
          %s468 = int_to_ptr.vmem [resolvable:$true] %s467
          %473 = dma.hbm_to_vmem [thread:$0]  %s466, 3072, %s468, %s457, 192, 192, 12
        $region24: #{tpu_custom_call.1} parent=15 // pred_fallthru
          _
        // Predicated region
        $region25: #{tpu_custom_call.1} parent=15 // pred_check
          %p474 = pneg %p118
        $region26: #{tpu_custom_call.1} parent=15 // pred_check_branch
          %476 = sbr.rel (%p474) target = $region28
        $region27: #{tpu_custom_call.1} parent=15 // pred_region
          %s477 = sand.u32 %s34, 1
          %s478 = scalar_lea.sflag [#allocation7], %s477
          %s479 = sand.u32 %s108, 1
          %s480 = smul.addr %s479, 3
          %s481 = scalar_lea.vmem [#allocation8], %s480
          %s483 = ssub.s32 48, 48
          %484 = vsyncadd %s478, %s483
          %s485 = smul.addr %s42, 3
          %s486 = smul.addr %s485, 16
          %s487 = scalar_lea.hbm %s2, %s486
          %s489 = sshll.u32 %s481, 4
          %s490 = int_to_ptr.vmem [resolvable:$true] %s489
          %492 = dma.hbm_to_vmem [thread:$0]  %s487, 48, %s490, %s478
        $region28: #{tpu_custom_call.1} parent=15 // pred_fallthru
          _
        // Predicated region
        $region29: #{tpu_custom_call.1} parent=15 // pred_check
          %p493 = pneg %p144
        $region30: #{tpu_custom_call.1} parent=15 // pred_check_branch
          %495 = sbr.rel (%p493) target = $region32
        $region31: #{tpu_custom_call.1} parent=15 // pred_region
          %s496 = sand.u32 %s34, 1
          %s497 = scalar_lea.sflag [#allocation10], %s496
          %s498 = sand.u32 %s134, 1
          %s499 = smul.addr %s498, 64
          %s500 = scalar_lea.vmem [#allocation9], %s499
          %s502 = ssub.s32 1024, 1024
          %503 = vsyncadd %s497, %s502
          %s504 = smul.addr %s42, 16
          %s505 = smul.addr %s504, 64
          %s506 = scalar_lea.hbm %s3, %s505
          %s507 = sshll.u32 %s500, 4
          %s508 = int_to_ptr.vmem [resolvable:$true] %s507
          %513 = dma.hbm_to_vmem [thread:$0]  %s506, 1024, %s508, %s497, 64, 64, 4
        $region32: #{tpu_custom_call.1} parent=15 // pred_fallthru
          _
        // Predicated region
        $region33: #{tpu_custom_call.1} parent=15 // pred_check
          %p514 = pneg %p170
        $region34: #{tpu_custom_call.1} parent=15 // pred_check_branch
          %516 = sbr.rel (%p514) target = $region36
        $region35: #{tpu_custom_call.1} parent=15 // pred_region
          %p517 = scmp.lt.s32.totalorder %s42, 2
          %s518 = scalar_select %p517, %s42, 2
          %s519 = scalar_lea.vmem %s4, %s518
        $region36: #{tpu_custom_call.1} parent=15 // pred_fallthru
          _
        // Predicated region
        $region37: #{tpu_custom_call.1} parent=15 // pred_check
          %p520 = pneg %p196
        $region38: #{tpu_custom_call.1} parent=15 // pred_check_branch
          %522 = sbr.rel (%p520) target = $region40
        $region39: #{tpu_custom_call.1} parent=15 // pred_region
          %p523 = scmp.lt.s32.totalorder %s42, 2
          %s524 = scalar_select %p523, %s42, 2
          %s525 = scalar_lea.vmem %s5, %s524
        $region40: #{tpu_custom_call.1} parent=15 // pred_fallthru
          _
        // Predicated region
        $region41: #{tpu_custom_call.1} parent=15 // pred_check
          %p526 = pneg %p222
        $region42: #{tpu_custom_call.1} parent=15 // pred_check_branch
          %528 = sbr.rel (%p526) target = $region44
        $region43: #{tpu_custom_call.1} parent=15 // pred_region
          %p529 = scmp.lt.s32.totalorder %s42, 2
          %s530 = scalar_select %p529, %s42, 2
          %s531 = scalar_lea.vmem %s6, %s530
        $region44: #{tpu_custom_call.1} parent=15 // pred_fallthru
          _
        // Predicated region
        $region45: #{tpu_custom_call.1} parent=15 // pred_check
          %p532 = pneg %p248
        $region46: #{tpu_custom_call.1} parent=15 // pred_check_branch
          %534 = sbr.rel (%p532) target = $region48
        $region47: #{tpu_custom_call.1} parent=15 // pred_region
          %s535 = sand.u32 %s34, 1
          %s536 = scalar_lea.sflag [#allocation10], %s535
          %s537 = sand.u32 %s238, 1
          %s538 = smul.addr %s537, 128
          %s539 = scalar_lea.vmem [#allocation11], %s538
          %s541 = ssub.s32 2048, 2048
          %542 = vsyncadd %s536, %s541
          %s543 = smul.addr %s42, 32
          %s544 = smul.addr %s543, 64
          %s545 = scalar_lea.hbm %s7, %s544
          %s546 = sshll.u32 %s539, 4
          %s547 = int_to_ptr.vmem [resolvable:$true] %s546
          %552 = dma.hbm_to_vmem [thread:$0]  %s545, 2048, %s547, %s536, 128, 128, 8
        $region48: #{tpu_custom_call.1} parent=15 // pred_fallthru
          _
        // Predicated region
        $region49: #{tpu_custom_call.1} parent=15 // pred_check
          %p553 = pneg %p274
        $region50: #{tpu_custom_call.1} parent=15 // pred_check_branch
          %555 = sbr.rel (%p553) target = $region52
        $region51: #{tpu_custom_call.1} parent=15 // pred_region
          %p556 = scmp.lt.s32.totalorder %s42, 2
          %s557 = scalar_select %p556, %s42, 2
          %s558 = smul.addr %s557, 2
          %s559 = scalar_lea.vmem %s8, %s558
        $region52: #{tpu_custom_call.1} parent=15 // pred_fallthru
          _
        // Predicated region
        $region53: #{tpu_custom_call.1} parent=15 // pred_check
          %p560 = pneg %p300
        $region54: #{tpu_custom_call.1} parent=15 // pred_check_branch
          %562 = sbr.rel (%p560) target = $region56
        $region55: #{tpu_custom_call.1} parent=15 // pred_region
          %s563 = sand.u32 %s290, 1
          %s564 = scalar_lea.sflag [#allocation13], %s563
          %s565 = sand.u32 %s290, 1
          %s566 = smul.addr %s565, 128
          %s567 = scalar_lea.vmem [#allocation12], %s566
          %s569 = ssub.s32 2048, 2048
          %570 = vsyncadd %s564, %s569
          %s571 = smul.addr %s42, 32
          %s572 = smul.addr %s571, 64
          %s573 = scalar_lea.hbm %s9, %s572
          %s574 = sshll.u32 %s567, 4
          %s575 = int_to_ptr.vmem [resolvable:$true] %s574
          %580 = dma.hbm_to_vmem [thread:$0]  %s573, 2048, %s575, %s564, 64, 64, 4
        $region56: #{tpu_custom_call.1} parent=15 // pred_fallthru
          _
        // Predicated region
        $region57: #{tpu_custom_call.1} parent=15 // pred_check
          %p581 = pneg %p326
        $region58: #{tpu_custom_call.1} parent=15 // pred_check_branch
          %583 = sbr.rel (%p581) target = $region60
        $region59: #{tpu_custom_call.1} parent=15 // pred_region
          %p584 = scmp.lt.s32.totalorder %s42, 2
          %s585 = scalar_select %p584, %s42, 2
          %s586 = scalar_lea.vmem %s10, %s585
        $region60: #{tpu_custom_call.1} parent=15 // pred_fallthru
          _
        // Predicated region
        $region61: #{tpu_custom_call.1} parent=15 // pred_check
          %p587 = pneg %p352
        $region62: #{tpu_custom_call.1} parent=15 // pred_check_branch
          %589 = sbr.rel (%p587) target = $region64
        $region63: #{tpu_custom_call.1} parent=15 // pred_region
          %p590 = scmp.lt.s32.totalorder %s42, 2
          %s591 = scalar_select %p590, %s42, 2
          %s592 = scalar_lea.vmem %s11, %s591
        $region64: #{tpu_custom_call.1} parent=15 // pred_fallthru
          _
        // Predicated region
        $region65: #{tpu_custom_call.1} parent=15 // pred_check
          %p593 = pneg %p378
        $region66: #{tpu_custom_call.1} parent=15 // pred_check_branch
          %595 = sbr.rel (%p593) target = $region68
        $region67: #{tpu_custom_call.1} parent=15 // pred_region
          %p596 = scmp.lt.s32.totalorder %s42, 2
          %s597 = scalar_select %p596, %s42, 2
          %s598 = scalar_lea.vmem %s12, %s597
        $region68: #{tpu_custom_call.1} parent=15 // pred_fallthru
          _
      $region16: #{tpu_custom_call.1} parent=5 // pred_fallthru
        _
      %p599 = scmp.le.s32.totalorder 1, %s34
      %p600 = scmp.lt.s32.totalorder %s34, 7
      %p601 = pnand %p599, %p600
      %p602 = pneg %p601
      // Predicated region
      $region69: #{tpu_custom_call.1} parent=5 // pred_check
        _
      $region70: #{tpu_custom_call.1} parent=5 // pred_check_branch
        %604 = sbr.rel (%p601) target = $region72
      $region71: #{tpu_custom_call.1} parent=5 // pred_region
        %s605 = ssub.s32 %s34, 1
        %s606 = sand.u32 %s59, 1
        %s607 = scalar_lea.sflag [#allocation4], %s606
        %s608 = sand.u32 %s59, 1
        %s609 = smul.addr %s608, 32
        %s610 = scalar_lea.vmem [#allocation3], %s609
        // Predicated region
        $region73: #{tpu_custom_call.1} parent=71 // pred_check
          %p611 = pneg %p72
        $region74: #{tpu_custom_call.1} parent=71 // pred_check_branch
          %613 = sbr.rel (%p611) target = $region76
        $region75: #{tpu_custom_call.1} parent=71 // pred_region
          %614 = dma.done %s607, 512
        $region76: #{tpu_custom_call.1} parent=71 // pred_fallthru
          _
        %s615 = sand.u32 %s39, 1
        %s616 = scalar_lea.sflag [#allocation7], %s615
        %s617 = sand.u32 %s85, 1
        %s618 = smul.addr %s617, 192
        %s619 = scalar_lea.vmem [#allocation6], %s618
        // Predicated region
        $region77: #{tpu_custom_call.1} parent=71 // pred_check
          %p620 = pneg %p98
        $region78: #{tpu_custom_call.1} parent=71 // pred_check_branch
          %622 = sbr.rel (%p620) target = $region80
        $region79: #{tpu_custom_call.1} parent=71 // pred_region
          %623 = dma.done %s616, 3072
        $region80: #{tpu_custom_call.1} parent=71 // pred_fallthru
          _
        %s624 = sand.u32 %s39, 1
        %s625 = scalar_lea.sflag [#allocation7], %s624
        %s626 = sand.u32 %s111, 1
        %s627 = smul.addr %s626, 3
        %s628 = scalar_lea.vmem [#allocation8], %s627
        // Predicated region
        $region81: #{tpu_custom_call.1} parent=71 // pred_check
          %p629 = pneg %p124
        $region82: #{tpu_custom_call.1} parent=71 // pred_check_branch
          %631 = sbr.rel (%p629) target = $region84
        $region83: #{tpu_custom_call.1} parent=71 // pred_region
          %632 = dma.done %s625, 48
        $region84: #{tpu_custom_call.1} parent=71 // pred_fallthru
          _
        %s633 = sand.u32 %s39, 1
        %s634 = scalar_lea.sflag [#allocation10], %s633
        %s635 = sand.u32 %s137, 1
        %s636 = smul.addr %s635, 64
        %s637 = scalar_lea.vmem [#allocation9], %s636
        // Predicated region
        $region85: #{tpu_custom_call.1} parent=71 // pred_check
          %p638 = pneg %p150
        $region86: #{tpu_custom_call.1} parent=71 // pred_check_branch
          %640 = sbr.rel (%p638) target = $region88
        $region87: #{tpu_custom_call.1} parent=71 // pred_region
          %641 = dma.done %s634, 1024
        $region88: #{tpu_custom_call.1} parent=71 // pred_fallthru
          _
        %s642 = sand.u32 %s39, 1
        %s643 = scalar_lea.sflag [#allocation10], %s642
        %s644 = sand.u32 %s241, 1
        %s645 = smul.addr %s644, 128
        %s646 = scalar_lea.vmem [#allocation11], %s645
        // Predicated region
        $region89: #{tpu_custom_call.1} parent=71 // pred_check
          %p647 = pneg %p254
        $region90: #{tpu_custom_call.1} parent=71 // pred_check_branch
          %649 = sbr.rel (%p647) target = $region92
        $region91: #{tpu_custom_call.1} parent=71 // pred_region
          %650 = dma.done %s643, 2048
        $region92: #{tpu_custom_call.1} parent=71 // pred_fallthru
          _
        %s651 = sand.u32 %s293, 1
        %s652 = scalar_lea.sflag [#allocation13], %s651
        %s653 = sand.u32 %s293, 1
        %s654 = smul.addr %s653, 128
        %s655 = scalar_lea.vmem [#allocation12], %s654
        // Predicated region
        $region93: #{tpu_custom_call.1} parent=71 // pred_check
          %p656 = pneg %p306
        $region94: #{tpu_custom_call.1} parent=71 // pred_check_branch
          %658 = sbr.rel (%p656) target = $region96
        $region95: #{tpu_custom_call.1} parent=71 // pred_region
          %659 = dma.done %s652, 2048
        $region96: #{tpu_custom_call.1} parent=71 // pred_fallthru
          _
        %s660 = sand.u32 %s59, 1
        %s661 = scalar_lea.sflag [#allocation4], %s660
        %s662 = sand.u32 %s59, 1
        %s663 = smul.addr %s662, 32
        %s664 = scalar_lea.vmem [#allocation3], %s663
        %p665 = pneg %p72
        %p666 = pneg %p69
        %s667 = sand.u32 %s39, 1
        %s668 = scalar_lea.sflag [#allocation7], %s667
        %s669 = sand.u32 %s85, 1
        %s670 = smul.addr %s669, 192
        %s671 = scalar_lea.vmem [#allocation6], %s670
        %p672 = pneg %p98
        %p673 = pneg %p95
        %s674 = sand.u32 %s39, 1
        %s675 = scalar_lea.sflag [#allocation7], %s674
        %s676 = sand.u32 %s111, 1
        %s677 = smul.addr %s676, 3
        %s678 = scalar_lea.vmem [#allocation8], %s677
        %p679 = pneg %p124
        %p680 = pneg %p121
        %s681 = sand.u32 %s39, 1
        %s682 = scalar_lea.sflag [#allocation10], %s681
        %s683 = sand.u32 %s137, 1
        %s684 = smul.addr %s683, 64
        %s685 = scalar_lea.vmem [#allocation9], %s684
        %p686 = pneg %p150
        %p687 = pneg %p147
        %p688 = scmp.lt.s32.totalorder %s44, 2
        %s689 = scalar_select %p688, %s44, 2
        %s690 = scalar_lea.vmem %s4, %s689
        %p691 = pneg %p176
        %p692 = pneg %p173
        %p693 = scmp.lt.s32.totalorder %s44, 2
        %s694 = scalar_select %p693, %s44, 2
        %s695 = scalar_lea.vmem %s5, %s694
        %p696 = pneg %p202
        %p697 = pneg %p199
        %p698 = scmp.lt.s32.totalorder %s44, 2
        %s699 = scalar_select %p698, %s44, 2
        %s700 = scalar_lea.vmem %s6, %s699
        %p701 = pneg %p228
        %p702 = pneg %p225
        %s703 = sand.u32 %s39, 1
        %s704 = scalar_lea.sflag [#allocation10], %s703
        %s705 = sand.u32 %s241, 1
        %s706 = smul.addr %s705, 128
        %s707 = scalar_lea.vmem [#allocation11], %s706
        %p708 = pneg %p254
        %p709 = pneg %p251
        %p710 = scmp.lt.s32.totalorder %s44, 2
        %s711 = scalar_select %p710, %s44, 2
        %s712 = smul.addr %s711, 2
        %s713 = scalar_lea.vmem %s8, %s712
        %p714 = pneg %p280
        %p715 = pneg %p277
        %s716 = sand.u32 %s293, 1
        %s717 = scalar_lea.sflag [#allocation13], %s716
        %s718 = sand.u32 %s293, 1
        %s719 = smul.addr %s718, 128
        %s720 = scalar_lea.vmem [#allocation12], %s719
        %p721 = pneg %p306
        %p722 = pneg %p303
        %p723 = scmp.lt.s32.totalorder %s44, 2
        %s724 = scalar_select %p723, %s44, 2
        %s725 = scalar_lea.vmem %s10, %s724
        %p726 = pneg %p332
        %p727 = pneg %p329
        %p728 = scmp.lt.s32.totalorder %s44, 2
        %s729 = scalar_select %p728, %s44, 2
        %s730 = scalar_lea.vmem %s11, %s729
        %p731 = pneg %p358
        %p732 = pneg %p355
        %p733 = scmp.lt.s32.totalorder %s44, 2
        %s734 = scalar_select %p733, %s44, 2
        %s735 = scalar_lea.vmem %s12, %s734
        %p736 = pneg %p384
        %p737 = pneg %p381
        %p738 = pneg %p412
        %p739 = pneg %p409
        %s740 = sand.u32 %s399, 1
        %s741 = scalar_lea.sflag [#allocation5], %s740
        %s742 = sand.u32 %s399, 1
        %s743 = smul.addr %s742, 32
        %s744 = scalar_lea.vmem [#allocation14], %s743
        %s745 = smul.u32 2, %s43
        %p746 = scmp.lt.s32.totalorder %s44, 2
        %s747 = scalar_select %p746, %s44, 2
        %s748 = scalar_lea.vmem %s4, %s747
        %p749 = scmp.lt.s32.totalorder %s44, 2
        %s750 = scalar_select %p749, %s44, 2
        %s751 = scalar_lea.vmem %s5, %s750
        %p752 = scmp.lt.s32.totalorder %s44, 2
        %s753 = scalar_select %p752, %s44, 2
        %s754 = scalar_lea.vmem %s6, %s753
        %p755 = scmp.lt.s32.totalorder %s44, 2
        %s756 = scalar_select %p755, %s44, 2
        %s757 = smul.addr %s756, 2
        %s758 = scalar_lea.vmem %s8, %s757
        %p759 = scmp.lt.s32.totalorder %s44, 2
        %s760 = scalar_select %p759, %s44, 2
        %s761 = scalar_lea.vmem %s10, %s760
        %p762 = scmp.lt.s32.totalorder %s44, 2
        %s763 = scalar_select %p762, %s44, 2
        %s764 = scalar_lea.vmem %s11, %s763
        %p765 = scmp.lt.s32.totalorder %s44, 2
        %s766 = scalar_select %p765, %s44, 2
        %s767 = scalar_lea.vmem %s12, %s766
        %s768 = smul.u32 2, %s43
        %p770 = scmp.eq.s32.totalorder %s44, 0
        // Predicated region
        $region97: #{tpu_custom_call.1} parent=71 // pred_check
          %p771 = pneg %p770
        $region98: #{tpu_custom_call.1} parent=71 // pred_check_branch
          %773 = sbr.rel (%p771) target = $region100
        $region99: #{tpu_custom_call.1} parent=71 // pred_region
          %v774 = vld [vmem:[%s610] sm:$0xff]
          %v775 = vld [vmem:[%s610 + $0x8] sm:$0xff]
          %v776 = vld [vmem:[%s610 + $0x10] sm:$0xff]
          %v777 = vld [vmem:[%s610 + $0x18] sm:$0xff]
          %778 = vst [vmem:[#allocation2] sm:$0xff] %v774
          %779 = vst [vmem:[#allocation2 + $0x8] sm:$0xff] %v775
          %780 = vst [vmem:[#allocation2 + $0x10] sm:$0xff] %v776
          %781 = vst [vmem:[#allocation2 + $0x18] sm:$0xff] %v777
        $region100: #{tpu_custom_call.1} parent=71 // pred_fallthru
          _
        %v782 = vld [vmem:[#allocation2] sm:$0xff]
        %v783 = vld [vmem:[#allocation2 + $0x8] sm:$0xff]
        %v784 = vld [vmem:[#allocation2 + $0x10] sm:$0xff]
        %v785 = vld [vmem:[#allocation2 + $0x18] sm:$0xff]
        %v786 = vpack.c.bf16 %v783, %v782
        %v787 = vpack.c.bf16 %v785, %v784
        %v788 = vld [vmem:[%s619] sm:$0xff]
        %v789 = vld [vmem:[%s619 + $0x8] sm:$0xf]
        %v790 = vld [vmem:[%s619 + $0xc] sm:$0xff]
        %v791 = vld [vmem:[%s619 + $0x14] sm:$0xf]
        %v792 = vld [vmem:[%s619 + $0x18] sm:$0xff]
        %v793 = vld [vmem:[%s619 + $0x20] sm:$0xf]
        %v794 = vld [vmem:[%s619 + $0x24] sm:$0xff]
        %v795 = vld [vmem:[%s619 + $0x2c] sm:$0xf]
        %v796 = vld [vmem:[%s619 + $0x30] sm:$0xff]
        %v797 = vld [vmem:[%s619 + $0x38] sm:$0xf]
        %v798 = vld [vmem:[%s619 + $0x3c] sm:$0xff]
        %v799 = vld [vmem:[%s619 + $0x44] sm:$0xf]
        %v800 = vld [vmem:[%s619 + $0x48] sm:$0xff]
        %v801 = vld [vmem:[%s619 + $0x50] sm:$0xf]
        %v802 = vld [vmem:[%s619 + $0x54] sm:$0xff]
        %v803 = vld [vmem:[%s619 + $0x5c] sm:$0xf]
        %v804 = vld [vmem:[%s619 + $0x60] sm:$0xff]
        %v805 = vld [vmem:[%s619 + $0x68] sm:$0xf]
        %v806 = vld [vmem:[%s619 + $0x6c] sm:$0xff]
        %v807 = vld [vmem:[%s619 + $0x74] sm:$0xf]
        %v808 = vld [vmem:[%s619 + $0x78] sm:$0xff]
        %v809 = vld [vmem:[%s619 + $0x80] sm:$0xf]
        %v810 = vld [vmem:[%s619 + $0x84] sm:$0xff]
        %v811 = vld [vmem:[%s619 + $0x8c] sm:$0xf]
        %v812 = vld [vmem:[%s619 + $0x90] sm:$0xff]
        %v813 = vld [vmem:[%s619 + $0x98] sm:$0xf]
        %v814 = vld [vmem:[%s619 + $0x9c] sm:$0xff]
        %v815 = vld [vmem:[%s619 + $0xa4] sm:$0xf]
        %v816 = vld [vmem:[%s619 + $0xa8] sm:$0xff]
        %v817 = vld [vmem:[%s619 + $0xb0] sm:$0xf]
        %v818 = vld [vmem:[%s619 + $0xb4] sm:$0xff]
        %v819 = vld [vmem:[%s619 + $0xbc] sm:$0xf]
        %v820 = vld [vmem:[%s628] sm:$0x7]
        %v822 = vlaneseq
        %v823 = vshrl.u32 %v822, 7
        %v824 = vsub.s32 0, %v823
        %v825 = vrot.slane %v820, %v824
        %v826 = vlaneseq
        %v827 = vshrl.u32 %v826, 7
        %v828 = vsub.s32 1, %v827
        %v829 = vrot.slane %v820, %v828
        %v830 = vlaneseq
        %v831 = vshrl.u32 %v830, 7
        %v832 = vsub.s32 2, %v831
        %v833 = vrot.slane %v820, %v832
        %v869 = vunpack.c.l.b16 %v788
        %v870 = vunpack.c.h.b16 %v788
        %v871 = vunpack.c.l.b16 %v789
        %v872 = vunpack.c.l.b16 %v790
        %v873 = vunpack.c.h.b16 %v790
        %v874 = vunpack.c.l.b16 %v791
        %v875 = vunpack.c.l.b16 %v792
        %v876 = vunpack.c.h.b16 %v792
        %v877 = vunpack.c.l.b16 %v793
        %v878 = vunpack.c.l.b16 %v794
        %v879 = vunpack.c.h.b16 %v794
        %v880 = vunpack.c.l.b16 %v795
        %v881 = vunpack.c.l.b16 %v796
        %v882 = vunpack.c.h.b16 %v796
        %v883 = vunpack.c.l.b16 %v797
        %v884 = vunpack.c.l.b16 %v798
        %v885 = vunpack.c.h.b16 %v798
        %v886 = vunpack.c.l.b16 %v799
        %v887 = vunpack.c.l.b16 %v800
        %v888 = vunpack.c.h.b16 %v800
        %v889 = vunpack.c.l.b16 %v801
        %v890 = vunpack.c.l.b16 %v802
        %v891 = vunpack.c.h.b16 %v802
        %v892 = vunpack.c.l.b16 %v803
        %v893 = vunpack.c.l.b16 %v804
        %v894 = vunpack.c.h.b16 %v804
        %v895 = vunpack.c.l.b16 %v805
        %v896 = vunpack.c.l.b16 %v806
        %v897 = vunpack.c.h.b16 %v806
        %v898 = vunpack.c.l.b16 %v807
        %v899 = vunpack.c.l.b16 %v808
        %v900 = vunpack.c.h.b16 %v808
        %v901 = vunpack.c.l.b16 %v809
        %v902 = vunpack.c.l.b16 %v810
        %v903 = vunpack.c.h.b16 %v810
        %v904 = vunpack.c.l.b16 %v811
        %v905 = vunpack.c.l.b16 %v812
        %v906 = vunpack.c.h.b16 %v812
        %v907 = vunpack.c.l.b16 %v813
        %v908 = vunpack.c.l.b16 %v814
        %v909 = vunpack.c.h.b16 %v814
        %v910 = vunpack.c.l.b16 %v815
        %v911 = vunpack.c.l.b16 %v816
        %v912 = vunpack.c.h.b16 %v816
        %v913 = vunpack.c.l.b16 %v817
        %v914 = vunpack.c.l.b16 %v818
        %v915 = vunpack.c.h.b16 %v818
        %v916 = vunpack.c.l.b16 %v819
        %v917 = vpack.c.b16 %v872, %v869
        %v918 = vpack.c.b16 %v873, %v870
        %v919 = vpack.c.b16 %v874, %v871
        %v920 = vpack.c.b16 %v878, %v875
        %v921 = vpack.c.b16 %v879, %v876
        %v922 = vpack.c.b16 %v880, %v877
        %v923 = vpack.c.b16 %v884, %v881
        %v924 = vpack.c.b16 %v885, %v882
        %v925 = vpack.c.b16 %v886, %v883
        %v926 = vpack.c.b16 %v890, %v887
        %v927 = vpack.c.b16 %v891, %v888
        %v928 = vpack.c.b16 %v892, %v889
        %v929 = vpack.c.b16 %v896, %v893
        %v930 = vpack.c.b16 %v897, %v894
        %v931 = vpack.c.b16 %v898, %v895
        %v932 = vpack.c.b16 %v902, %v899
        %v933 = vpack.c.b16 %v903, %v900
        %v934 = vpack.c.b16 %v904, %v901
        %v935 = vpack.c.b16 %v908, %v905
        %v936 = vpack.c.b16 %v909, %v906
        %v937 = vpack.c.b16 %v910, %v907
        %v938 = vpack.c.b16 %v914, %v911
        %v939 = vpack.c.b16 %v915, %v912
        %v940 = vpack.c.b16 %v916, %v913
        %965 = vmatprep.subr.bf16.mxu0 %v918
        %966 = vmatpush1.bf16.msra.mxu0 %v917
        %967 = vmatprep.subr.bf16.mxu0 %v921
        %968 = vmatpush1.bf16.msra.mxu0 %v920
        %969 = vmatprep.subr.bf16.mxu0 %v924
        %970 = vmatpush1.bf16.msra.mxu0 %v923
        %971 = vmatprep.subr.bf16.mxu0 %v927
        %972 = vmatpush1.bf16.msra.mxu0 %v926
        %973 = vmatprep.subr.bf16.mxu0 %v930
        %974 = vmatpush1.bf16.msra.mxu0 %v929
        %975 = vmatprep.subr.bf16.mxu0 %v933
        %976 = vmatpush1.bf16.msra.mxu0 %v932
        %977 = vmatprep.subr.bf16.mxu0 %v936
        %978 = vmatpush1.bf16.msra.mxu0 %v935
        %979 = vmatprep.subr.bf16.mxu0 %v939
        %980 = vmatpush1.bf16.msra.mxu0 %v938
        %981 = vmatprep.subr.bf16.mxu0 0
        %982 = vmatpush1.bf16.msra.mxu0 0
        %983 = vmatprep.subr.bf16.mxu0 0
        %984 = vmatpush1.bf16.msra.mxu0 0
        %985 = vmatprep.subr.bf16.mxu0 0
        %986 = vmatpush1.bf16.msra.mxu0 0
        %987 = vmatprep.subr.bf16.mxu0 0
        %988 = vmatpush1.bf16.msra.mxu0 0
        %989 = vmatprep.subr.bf16.mxu0 0
        %990 = vmatpush1.bf16.msra.mxu0 0
        %991 = vmatprep.subr.bf16.mxu0 0
        %992 = vmatpush1.bf16.msra.mxu0 0
        %993 = vmatprep.subr.bf16.mxu0 0
        %994 = vmatpush1.bf16.msra.mxu0 0
        %995 = vmatprep.subr.bf16.mxu0 0
        %996 = vmatpush1.bf16.msra.mxu0 0
        %997 = vmatprep.mubr.bf16.mxu0 0
        %998 = vmatmul.mubr.bf16.gmra.mrb[0].mxu0 %v786
        %v999 = vpop.f32.mrb[0].mxu0
        %v1000 = vadd.f32 %v825, %v999
        %v1001 = vpop.f32.mrb[0].mxu0
        %v1002 = vadd.f32 %v829, %v1001
        %v1003 = vpop.f32.mrb[0].mxu0
        %v1004 = vadd.f32 %v825, %v1003
        %v1005 = vpop.f32.mrb[0].mxu0
        %v1006 = vadd.f32 %v829, %v1005
        %1007 = vmatprep.mubr.bf16.mxu0 0
        %1008 = vmatmul.mubr.bf16.gmra.mrb[0].mxu0 %v787
        %v1009 = vpop.f32.mrb[0].mxu0
        %v1010 = vadd.f32 %v825, %v1009
        %v1011 = vpop.f32.mrb[0].mxu0
        %v1012 = vadd.f32 %v829, %v1011
        %v1013 = vpop.f32.mrb[0].mxu0
        %v1014 = vadd.f32 %v825, %v1013
        %v1015 = vpop.f32.mrb[0].mxu0
        %v1016 = vadd.f32 %v829, %v1015
        %1017 = vdwg.mxu0
        %1018 = vmatprep.subr.bf16.mxu0 0
        %1019 = vmatpush1.bf16.msra.mxu0 %v919
        %1020 = vmatprep.subr.bf16.mxu0 0
        %1021 = vmatpush1.bf16.msra.mxu0 %v922
        %1022 = vmatprep.subr.bf16.mxu0 0
        %1023 = vmatpush1.bf16.msra.mxu0 %v925
        %1024 = vmatprep.subr.bf16.mxu0 0
        %1025 = vmatpush1.bf16.msra.mxu0 %v928
        %1026 = vmatprep.subr.bf16.mxu0 0
        %1027 = vmatpush1.bf16.msra.mxu0 %v931
        %1028 = vmatprep.subr.bf16.mxu0 0
        %1029 = vmatpush1.bf16.msra.mxu0 %v934
        %1030 = vmatprep.subr.bf16.mxu0 0
        %1031 = vmatpush1.bf16.msra.mxu0 %v937
        %1032 = vmatprep.subr.bf16.mxu0 0
        %1033 = vmatpush1.bf16.msra.mxu0 %v940
        %1034 = vmatprep.subr.bf16.mxu0 0
        %1035 = vmatpush1.bf16.msra.mxu0 0
        %1036 = vmatprep.subr.bf16.mxu0 0
        %1037 = vmatpush1.bf16.msra.mxu0 0
        %1038 = vmatprep.subr.bf16.mxu0 0
        %1039 = vmatpush1.bf16.msra.mxu0 0
        %1040 = vmatprep.subr.bf16.mxu0 0
        %1041 = vmatpush1.bf16.msra.mxu0 0
        %1042 = vmatprep.subr.bf16.mxu0 0
        %1043 = vmatpush1.bf16.msra.mxu0 0
        %1044 = vmatprep.subr.bf16.mxu0 0
        %1045 = vmatpush1.bf16.msra.mxu0 0
        %1046 = vmatprep.subr.bf16.mxu0 0
        %1047 = vmatpush1.bf16.msra.mxu0 0
        %1048 = vmatprep.subr.bf16.mxu0 0
        %1049 = vmatpush1.bf16.msra.mxu0 0
        %1050 = vmatprep.mubr.bf16.mxu0 0
        %1051 = vmatmul.mubr.bf16.gmra.mrb[0].mxu0 %v786
        %v1052 = vpop.f32.mrb[0].mxu0
        %v1053 = vadd.f32 %v833, %v1052
        %v1054 = vpop.f32.mrb[0].mxu0
        %v1055 = vpop.f32.mrb[0].mxu0
        %v1056 = vadd.f32 %v833, %v1055
        %v1057 = vpop.f32.mrb[0].mxu0
        %1058 = vmatprep.mubr.bf16.mxu0 0
        %1059 = vmatmul.mubr.bf16.gmra.mrb[0].mxu0 %v787
        %v1060 = vpop.f32.mrb[0].mxu0
        %v1061 = vadd.f32 %v833, %v1060
        %v1062 = vpop.f32.mrb[0].mxu0
        %v1063 = vpop.f32.mrb[0].mxu0
        %v1064 = vadd.f32 %v833, %v1063
        %v1065 = vpop.f32.mrb[0].mxu0
        %1066 = vdwg.mxu0
        %v1067 = vmul.f32 %v1000, 0.17677669
        %v1068 = vmul.f32 %v1004, 0.17677669
        %v1069 = vmul.f32 %v1010, 0.17677669
        %v1070 = vmul.f32 %v1014, 0.17677669
        %1073 = vrot.lane.b32.xlu0 %v1067, 96
        %v1074 = vpop.permute.xlu0 %1073
        %1075 = vrot.lane.b32.xlu0 %v1068, 96
        %v1076 = vpop.permute.xlu0 %1075
        %1079 = vrot.lane.b32.xlu0 %v1067, 64
        %v1080 = vpop.permute.xlu0 %1079
        %1081 = vrot.lane.b32.xlu0 %v1068, 64
        %v1082 = vpop.permute.xlu0 %1081
        %1085 = vrot.lane.b32.xlu0 %v1067, 32
        %v1086 = vpop.permute.xlu0 %1085
        %1087 = vrot.lane.b32.xlu0 %v1068, 32
        %v1088 = vpop.permute.xlu0 %1087
        %1093 = vrot.lane.b32.xlu0 %v1069, 96
        %v1094 = vpop.permute.xlu0 %1093
        %1095 = vrot.lane.b32.xlu0 %v1070, 96
        %v1096 = vpop.permute.xlu0 %1095
        %1099 = vrot.lane.b32.xlu0 %v1069, 64
        %v1100 = vpop.permute.xlu0 %1099
        %1101 = vrot.lane.b32.xlu0 %v1070, 64
        %v1102 = vpop.permute.xlu0 %1101
        %1105 = vrot.lane.b32.xlu0 %v1069, 32
        %v1106 = vpop.permute.xlu0 %1105
        %1107 = vrot.lane.b32.xlu0 %v1070, 32
        %v1108 = vpop.permute.xlu0 %1107
        %v1111 = vpack.c.bf16 %v1068, %v1067
        %v1112 = vpack.c.bf16 %v1076, %v1074
        %v1113 = vpack.c.bf16 %v1082, %v1080
        %v1114 = vpack.c.bf16 %v1088, %v1086
        %v1115 = vpack.c.bf16 %v1070, %v1069
        %v1116 = vpack.c.bf16 %v1096, %v1094
        %v1117 = vpack.c.bf16 %v1102, %v1100
        %v1118 = vpack.c.bf16 %v1108, %v1106
        %1121 = vrot.lane.b32.xlu0 %v1002, 96
        %v1122 = vpop.permute.xlu0 %1121
        %1123 = vrot.lane.b32.xlu0 %v1006, 96
        %v1124 = vpop.permute.xlu0 %1123
        %1127 = vrot.lane.b32.xlu0 %v1002, 64
        %v1128 = vpop.permute.xlu0 %1127
        %1129 = vrot.lane.b32.xlu0 %v1006, 64
        %v1130 = vpop.permute.xlu0 %1129
        %1133 = vrot.lane.b32.xlu0 %v1002, 32
        %v1134 = vpop.permute.xlu0 %1133
        %1135 = vrot.lane.b32.xlu0 %v1006, 32
        %v1136 = vpop.permute.xlu0 %1135
        %1141 = vrot.lane.b32.xlu0 %v1012, 96
        %v1142 = vpop.permute.xlu0 %1141
        %1143 = vrot.lane.b32.xlu0 %v1016, 96
        %v1144 = vpop.permute.xlu0 %1143
        %1147 = vrot.lane.b32.xlu0 %v1012, 64
        %v1148 = vpop.permute.xlu0 %1147
        %1149 = vrot.lane.b32.xlu0 %v1016, 64
        %v1150 = vpop.permute.xlu0 %1149
        %1153 = vrot.lane.b32.xlu0 %v1012, 32
        %v1154 = vpop.permute.xlu0 %1153
        %1155 = vrot.lane.b32.xlu0 %v1016, 32
        %v1156 = vpop.permute.xlu0 %1155
        %v1159 = vpack.c.bf16 %v1006, %v1002
        %v1160 = vpack.c.bf16 %v1124, %v1122
        %v1161 = vpack.c.bf16 %v1130, %v1128
        %v1162 = vpack.c.bf16 %v1136, %v1134
        %v1163 = vpack.c.bf16 %v1016, %v1012
        %v1164 = vpack.c.bf16 %v1144, %v1142
        %v1165 = vpack.c.bf16 %v1150, %v1148
        %v1166 = vpack.c.bf16 %v1156, %v1154
        %1169 = vrot.lane.b32.xlu0 %v1053, 96
        %v1170 = vpop.permute.xlu0 %1169
        %1171 = vrot.lane.b32.xlu0 %v1056, 96
        %v1172 = vpop.permute.xlu0 %1171
        %1175 = vrot.lane.b32.xlu0 %v1053, 64
        %v1176 = vpop.permute.xlu0 %1175
        %1177 = vrot.lane.b32.xlu0 %v1056, 64
        %v1178 = vpop.permute.xlu0 %1177
        %1181 = vrot.lane.b32.xlu0 %v1053, 32
        %v1182 = vpop.permute.xlu0 %1181
        %1183 = vrot.lane.b32.xlu0 %v1056, 32
        %v1184 = vpop.permute.xlu0 %1183
        %1189 = vrot.lane.b32.xlu0 %v1061, 96
        %v1190 = vpop.permute.xlu0 %1189
        %1191 = vrot.lane.b32.xlu0 %v1064, 96
        %v1192 = vpop.permute.xlu0 %1191
        %1195 = vrot.lane.b32.xlu0 %v1061, 64
        %v1196 = vpop.permute.xlu0 %1195
        %1197 = vrot.lane.b32.xlu0 %v1064, 64
        %v1198 = vpop.permute.xlu0 %1197
        %1201 = vrot.lane.b32.xlu0 %v1061, 32
        %v1202 = vpop.permute.xlu0 %1201
        %1203 = vrot.lane.b32.xlu0 %v1064, 32
        %v1204 = vpop.permute.xlu0 %1203
        %v1207 = vpack.c.bf16 %v1056, %v1053
        %v1208 = vpack.c.bf16 %v1172, %v1170
        %v1209 = vpack.c.bf16 %v1178, %v1176
        %v1210 = vpack.c.bf16 %v1184, %v1182
        %v1211 = vpack.c.bf16 %v1064, %v1061
        %v1212 = vpack.c.bf16 %v1192, %v1190
        %v1213 = vpack.c.bf16 %v1198, %v1196
        %v1214 = vpack.c.bf16 %v1204, %v1202
        %vm1215 = vcmask 261120
        %v1217 = vsel %vm1215, %v1111, 0
        %v1220 = vsel %vm1215, %v1159, 0
        %1222 = vmatprep.subr.bf16.mxu0 0
        %1223 = vmatpush1.bf16.xpose.msra.mxu0 %v1220
        %1224 = vmatprep.subr.bf16.mxu0 0
        %1225 = vmatpush1.bf16.xpose.msra.mxu0 0
        %1226 = vmatprep.subr.bf16.mxu0 0
        %1227 = vmatpush1.bf16.xpose.msra.mxu0 0
        %1228 = vmatprep.subr.bf16.mxu0 0
        %1229 = vmatpush1.bf16.xpose.msra.mxu0 0
        %1230 = vmatprep.subr.bf16.mxu0 0
        %1231 = vmatpush1.bf16.xpose.msra.mxu0 0
        %1232 = vmatprep.subr.bf16.mxu0 0
        %1233 = vmatpush1.bf16.xpose.msra.mxu0 0
        %1234 = vmatprep.subr.bf16.mxu0 0
        %1235 = vmatpush1.bf16.xpose.msra.mxu0 0
        %1236 = vmatprep.subr.bf16.mxu0 0
        %1237 = vmatpush1.bf16.xpose.msra.mxu0 0
        %1238 = vmatprep.subr.bf16.mxu0 0
        %1239 = vmatpush1.bf16.xpose.msra.mxu0 0
        %1240 = vmatprep.subr.bf16.mxu0 0
        %1241 = vmatpush1.bf16.xpose.msra.mxu0 0
        %1242 = vmatprep.subr.bf16.mxu0 0
        %1243 = vmatpush1.bf16.xpose.msra.mxu0 0
        %1244 = vmatprep.subr.bf16.mxu0 0
        %1245 = vmatpush1.bf16.xpose.msra.mxu0 0
        %1246 = vmatprep.subr.bf16.mxu0 0
        %1247 = vmatpush1.bf16.xpose.msra.mxu0 0
        %1248 = vmatprep.subr.bf16.mxu0 0
        %1249 = vmatpush1.bf16.xpose.msra.mxu0 0
        %1250 = vmatprep.subr.bf16.mxu0 0
        %1251 = vmatpush1.bf16.xpose.msra.mxu0 0
        %1252 = vmatprep.subr.bf16.mxu0 0
        %1253 = vmatpush1.bf16.xpose.msra.mxu0 0
        %1254 = vmatprep.mubr.bf16.mxu0 0
        %1255 = vmatmul.mubr.bf16.gmra.mrb[0].mxu0 %v1217
        %v1256 = vpop.f32.mrb[0].mxu0
        %v1257 = vadd.f32 0.0, %v1256
        %v1258 = vpop.f32.mrb[0].mxu0
        %v1259 = vpop.f32.mrb[0].mxu0
        %v1260 = vadd.f32 0.0, %v1259
        %v1261 = vpop.f32.mrb[0].mxu0
        %1262 = vdwg.mxu0
        %v1264 = vsel %vm1215, %v1112, 0
        %v1267 = vsel %vm1215, %v1160, 0
        %1269 = vmatprep.subr.bf16.mxu0 0
        %1270 = vmatpush1.bf16.xpose.msra.mxu0 %v1267
        %1271 = vmatprep.subr.bf16.mxu0 0
        %1272 = vmatpush1.bf16.xpose.msra.mxu0 0
        %1273 = vmatprep.subr.bf16.mxu0 0
        %1274 = vmatpush1.bf16.xpose.msra.mxu0 0
        %1275 = vmatprep.subr.bf16.mxu0 0
        %1276 = vmatpush1.bf16.xpose.msra.mxu0 0
        %1277 = vmatprep.subr.bf16.mxu0 0
        %1278 = vmatpush1.bf16.xpose.msra.mxu0 0
        %1279 = vmatprep.subr.bf16.mxu0 0
        %1280 = vmatpush1.bf16.xpose.msra.mxu0 0
        %1281 = vmatprep.subr.bf16.mxu0 0
        %1282 = vmatpush1.bf16.xpose.msra.mxu0 0
        %1283 = vmatprep.subr.bf16.mxu0 0
        %1284 = vmatpush1.bf16.xpose.msra.mxu0 0
        %1285 = vmatprep.subr.bf16.mxu0 0
        %1286 = vmatpush1.bf16.xpose.msra.mxu0 0
        %1287 = vmatprep.subr.bf16.mxu0 0
        %1288 = vmatpush1.bf16.xpose.msra.mxu0 0
        %1289 = vmatprep.subr.bf16.mxu0 0
        %1290 = vmatpush1.bf16.xpose.msra.mxu0 0
        %1291 = vmatprep.subr.bf16.mxu0 0
        %1292 = vmatpush1.bf16.xpose.msra.mxu0 0
        %1293 = vmatprep.subr.bf16.mxu0 0
        %1294 = vmatpush1.bf16.xpose.msra.mxu0 0
        %1295 = vmatprep.subr.bf16.mxu0 0
        %1296 = vmatpush1.bf16.xpose.msra.mxu0 0
        %1297 = vmatprep.subr.bf16.mxu0 0
        %1298 = vmatpush1.bf16.xpose.msra.mxu0 0
        %1299 = vmatprep.subr.bf16.mxu0 0
        %1300 = vmatpush1.bf16.xpose.msra.mxu0 0
        %1301 = vmatprep.mubr.bf16.mxu0 0
        %1302 = vmatmul.mubr.bf16.gmra.mrb[0].mxu0 %v1264
        %v1303 = vpop.f32.mrb[0].mxu0
        %v1304 = vadd.f32 0.0, %v1303
        %v1305 = vpop.f32.mrb[0].mxu0
        %v1306 = vpop.f32.mrb[0].mxu0
        %v1307 = vadd.f32 0.0, %v1306
        %v1308 = vpop.f32.mrb[0].mxu0
        %1309 = vdwg.mxu0
        %v1311 = vsel %vm1215, %v1113, 0
        %v1314 = vsel %vm1215, %v1161, 0
        %1316 = vmatprep.subr.bf16.mxu0 0
        %1317 = vmatpush1.bf16.xpose.msra.mxu0 %v1314
        %1318 = vmatprep.subr.bf16.mxu0 0
        %1319 = vmatpush1.bf16.xpose.msra.mxu0 0
        %1320 = vmatprep.subr.bf16.mxu0 0
        %1321 = vmatpush1.bf16.xpose.msra.mxu0 0
        %1322 = vmatprep.subr.bf16.mxu0 0
        %1323 = vmatpush1.bf16.xpose.msra.mxu0 0
        %1324 = vmatprep.subr.bf16.mxu0 0
        %1325 = vmatpush1.bf16.xpose.msra.mxu0 0
        %1326 = vmatprep.subr.bf16.mxu0 0
        %1327 = vmatpush1.bf16.xpose.msra.mxu0 0
        %1328 = vmatprep.subr.bf16.mxu0 0
        %1329 = vmatpush1.bf16.xpose.msra.mxu0 0
        %1330 = vmatprep.subr.bf16.mxu0 0
        %1331 = vmatpush1.bf16.xpose.msra.mxu0 0
        %1332 = vmatprep.subr.bf16.mxu0 0
        %1333 = vmatpush1.bf16.xpose.msra.mxu0 0
        %1334 = vmatprep.subr.bf16.mxu0 0
        %1335 = vmatpush1.bf16.xpose.msra.mxu0 0
        %1336 = vmatprep.subr.bf16.mxu0 0
        %1337 = vmatpush1.bf16.xpose.msra.mxu0 0
        %1338 = vmatprep.subr.bf16.mxu0 0
        %1339 = vmatpush1.bf16.xpose.msra.mxu0 0
        %1340 = vmatprep.subr.bf16.mxu0 0
        %1341 = vmatpush1.bf16.xpose.msra.mxu0 0
        %1342 = vmatprep.subr.bf16.mxu0 0
        %1343 = vmatpush1.bf16.xpose.msra.mxu0 0
        %1344 = vmatprep.subr.bf16.mxu0 0
        %1345 = vmatpush1.bf16.xpose.msra.mxu0 0
        %1346 = vmatprep.subr.bf16.mxu0 0
        %1347 = vmatpush1.bf16.xpose.msra.mxu0 0
        %1348 = vmatprep.mubr.bf16.mxu0 0
        %1349 = vmatmul.mubr.bf16.gmra.mrb[0].mxu0 %v1311
        %v1350 = vpop.f32.mrb[0].mxu0
        %v1351 = vadd.f32 0.0, %v1350
        %v1352 = vpop.f32.mrb[0].mxu0
        %v1353 = vpop.f32.mrb[0].mxu0
        %v1354 = vadd.f32 0.0, %v1353
        %v1355 = vpop.f32.mrb[0].mxu0
        %1356 = vdwg.mxu0
        %v1358 = vsel %vm1215, %v1114, 0
        %v1361 = vsel %vm1215, %v1162, 0
        %1363 = vmatprep.subr.bf16.mxu0 0
        %1364 = vmatpush1.bf16.xpose.msra.mxu0 %v1361
        %1365 = vmatprep.subr.bf16.mxu0 0
        %1366 = vmatpush1.bf16.xpose.msra.mxu0 0
        %1367 = vmatprep.subr.bf16.mxu0 0
        %1368 = vmatpush1.bf16.xpose.msra.mxu0 0
        %1369 = vmatprep.subr.bf16.mxu0 0
        %1370 = vmatpush1.bf16.xpose.msra.mxu0 0
        %1371 = vmatprep.subr.bf16.mxu0 0
        %1372 = vmatpush1.bf16.xpose.msra.mxu0 0
        %1373 = vmatprep.subr.bf16.mxu0 0
        %1374 = vmatpush1.bf16.xpose.msra.mxu0 0
        %1375 = vmatprep.subr.bf16.mxu0 0
        %1376 = vmatpush1.bf16.xpose.msra.mxu0 0
        %1377 = vmatprep.subr.bf16.mxu0 0
        %1378 = vmatpush1.bf16.xpose.msra.mxu0 0
        %1379 = vmatprep.subr.bf16.mxu0 0
        %1380 = vmatpush1.bf16.xpose.msra.mxu0 0
        %1381 = vmatprep.subr.bf16.mxu0 0
        %1382 = vmatpush1.bf16.xpose.msra.mxu0 0
        %1383 = vmatprep.subr.bf16.mxu0 0
        %1384 = vmatpush1.bf16.xpose.msra.mxu0 0
        %1385 = vmatprep.subr.bf16.mxu0 0
        %1386 = vmatpush1.bf16.xpose.msra.mxu0 0
        %1387 = vmatprep.subr.bf16.mxu0 0
        %1388 = vmatpush1.bf16.xpose.msra.mxu0 0
        %1389 = vmatprep.subr.bf16.mxu0 0
        %1390 = vmatpush1.bf16.xpose.msra.mxu0 0
        %1391 = vmatprep.subr.bf16.mxu0 0
        %1392 = vmatpush1.bf16.xpose.msra.mxu0 0
        %1393 = vmatprep.subr.bf16.mxu0 0
        %1394 = vmatpush1.bf16.xpose.msra.mxu0 0
        %1395 = vmatprep.mubr.bf16.mxu0 0
        %1396 = vmatmul.mubr.bf16.gmra.mrb[0].mxu0 %v1358
        %v1397 = vpop.f32.mrb[0].mxu0
        %v1398 = vadd.f32 0.0, %v1397
        %v1399 = vpop.f32.mrb[0].mxu0
        %v1400 = vpop.f32.mrb[0].mxu0
        %v1401 = vadd.f32 0.0, %v1400
        %v1402 = vpop.f32.mrb[0].mxu0
        %1403 = vdwg.mxu0
        %v1405 = vsel %vm1215, %v1115, 0
        %v1408 = vsel %vm1215, %v1163, 0
        %1410 = vmatprep.subr.bf16.mxu0 0
        %1411 = vmatpush1.bf16.xpose.msra.mxu0 %v1408
        %1412 = vmatprep.subr.bf16.mxu0 0
        %1413 = vmatpush1.bf16.xpose.msra.mxu0 0
        %1414 = vmatprep.subr.bf16.mxu0 0
        %1415 = vmatpush1.bf16.xpose.msra.mxu0 0
        %1416 = vmatprep.subr.bf16.mxu0 0
        %1417 = vmatpush1.bf16.xpose.msra.mxu0 0
        %1418 = vmatprep.subr.bf16.mxu0 0
        %1419 = vmatpush1.bf16.xpose.msra.mxu0 0
        %1420 = vmatprep.subr.bf16.mxu0 0
        %1421 = vmatpush1.bf16.xpose.msra.mxu0 0
        %1422 = vmatprep.subr.bf16.mxu0 0
        %1423 = vmatpush1.bf16.xpose.msra.mxu0 0
        %1424 = vmatprep.subr.bf16.mxu0 0
        %1425 = vmatpush1.bf16.xpose.msra.mxu0 0
        %1426 = vmatprep.subr.bf16.mxu0 0
        %1427 = vmatpush1.bf16.xpose.msra.mxu0 0
        %1428 = vmatprep.subr.bf16.mxu0 0
        %1429 = vmatpush1.bf16.xpose.msra.mxu0 0
        %1430 = vmatprep.subr.bf16.mxu0 0
        %1431 = vmatpush1.bf16.xpose.msra.mxu0 0
        %1432 = vmatprep.subr.bf16.mxu0 0
        %1433 = vmatpush1.bf16.xpose.msra.mxu0 0
        %1434 = vmatprep.subr.bf16.mxu0 0
        %1435 = vmatpush1.bf16.xpose.msra.mxu0 0
        %1436 = vmatprep.subr.bf16.mxu0 0
        %1437 = vmatpush1.bf16.xpose.msra.mxu0 0
        %1438 = vmatprep.subr.bf16.mxu0 0
        %1439 = vmatpush1.bf16.xpose.msra.mxu0 0
        %1440 = vmatprep.subr.bf16.mxu0 0
        %1441 = vmatpush1.bf16.xpose.msra.mxu0 0
        %1442 = vmatprep.mubr.bf16.mxu0 0
        %1443 = vmatmul.mubr.bf16.gmra.mrb[0].mxu0 %v1405
        %v1444 = vpop.f32.mrb[0].mxu0
        %v1445 = vadd.f32 0.0, %v1444
        %v1446 = vpop.f32.mrb[0].mxu0
        %v1447 = vpop.f32.mrb[0].mxu0
        %v1448 = vadd.f32 0.0, %v1447
        %v1449 = vpop.f32.mrb[0].mxu0
        %1450 = vdwg.mxu0
        %v1452 = vsel %vm1215, %v1116, 0
        %v1455 = vsel %vm1215, %v1164, 0
        %1457 = vmatprep.subr.bf16.mxu0 0
        %1458 = vmatpush1.bf16.xpose.msra.mxu0 %v1455
        %1459 = vmatprep.subr.bf16.mxu0 0
        %1460 = vmatpush1.bf16.xpose.msra.mxu0 0
        %1461 = vmatprep.subr.bf16.mxu0 0
        %1462 = vmatpush1.bf16.xpose.msra.mxu0 0
        %1463 = vmatprep.subr.bf16.mxu0 0
        %1464 = vmatpush1.bf16.xpose.msra.mxu0 0
        %1465 = vmatprep.subr.bf16.mxu0 0
        %1466 = vmatpush1.bf16.xpose.msra.mxu0 0
        %1467 = vmatprep.subr.bf16.mxu0 0
        %1468 = vmatpush1.bf16.xpose.msra.mxu0 0
        %1469 = vmatprep.subr.bf16.mxu0 0
        %1470 = vmatpush1.bf16.xpose.msra.mxu0 0
        %1471 = vmatprep.subr.bf16.mxu0 0
        %1472 = vmatpush1.bf16.xpose.msra.mxu0 0
        %1473 = vmatprep.subr.bf16.mxu0 0
        %1474 = vmatpush1.bf16.xpose.msra.mxu0 0
        %1475 = vmatprep.subr.bf16.mxu0 0
        %1476 = vmatpush1.bf16.xpose.msra.mxu0 0
        %1477 = vmatprep.subr.bf16.mxu0 0
        %1478 = vmatpush1.bf16.xpose.msra.mxu0 0
        %1479 = vmatprep.subr.bf16.mxu0 0
        %1480 = vmatpush1.bf16.xpose.msra.mxu0 0
        %1481 = vmatprep.subr.bf16.mxu0 0
        %1482 = vmatpush1.bf16.xpose.msra.mxu0 0
        %1483 = vmatprep.subr.bf16.mxu0 0
        %1484 = vmatpush1.bf16.xpose.msra.mxu0 0
        %1485 = vmatprep.subr.bf16.mxu0 0
        %1486 = vmatpush1.bf16.xpose.msra.mxu0 0
        %1487 = vmatprep.subr.bf16.mxu0 0
        %1488 = vmatpush1.bf16.xpose.msra.mxu0 0
        %1489 = vmatprep.mubr.bf16.mxu0 0
        %1490 = vmatmul.mubr.bf16.gmra.mrb[0].mxu0 %v1452
        %v1491 = vpop.f32.mrb[0].mxu0
        %v1492 = vadd.f32 0.0, %v1491
        %v1493 = vpop.f32.mrb[0].mxu0
        %v1494 = vpop.f32.mrb[0].mxu0
        %v1495 = vadd.f32 0.0, %v1494
        %v1496 = vpop.f32.mrb[0].mxu0
        %1497 = vdwg.mxu0
        %v1499 = vsel %vm1215, %v1117, 0
        %v1502 = vsel %vm1215, %v1165, 0
        %1504 = vmatprep.subr.bf16.mxu0 0
        %1505 = vmatpush1.bf16.xpose.msra.mxu0 %v1502
        %1506 = vmatprep.subr.bf16.mxu0 0
        %1507 = vmatpush1.bf16.xpose.msra.mxu0 0
        %1508 = vmatprep.subr.bf16.mxu0 0
        %1509 = vmatpush1.bf16.xpose.msra.mxu0 0
        %1510 = vmatprep.subr.bf16.mxu0 0
        %1511 = vmatpush1.bf16.xpose.msra.mxu0 0
        %1512 = vmatprep.subr.bf16.mxu0 0
        %1513 = vmatpush1.bf16.xpose.msra.mxu0 0
        %1514 = vmatprep.subr.bf16.mxu0 0
        %1515 = vmatpush1.bf16.xpose.msra.mxu0 0
        %1516 = vmatprep.subr.bf16.mxu0 0
        %1517 = vmatpush1.bf16.xpose.msra.mxu0 0
        %1518 = vmatprep.subr.bf16.mxu0 0
        %1519 = vmatpush1.bf16.xpose.msra.mxu0 0
        %1520 = vmatprep.subr.bf16.mxu0 0
        %1521 = vmatpush1.bf16.xpose.msra.mxu0 0
        %1522 = vmatprep.subr.bf16.mxu0 0
        %1523 = vmatpush1.bf16.xpose.msra.mxu0 0
        %1524 = vmatprep.subr.bf16.mxu0 0
        %1525 = vmatpush1.bf16.xpose.msra.mxu0 0
        %1526 = vmatprep.subr.bf16.mxu0 0
        %1527 = vmatpush1.bf16.xpose.msra.mxu0 0
        %1528 = vmatprep.subr.bf16.mxu0 0
        %1529 = vmatpush1.bf16.xpose.msra.mxu0 0
        %1530 = vmatprep.subr.bf16.mxu0 0
        %1531 = vmatpush1.bf16.xpose.msra.mxu0 0
        %1532 = vmatprep.subr.bf16.mxu0 0
        %1533 = vmatpush1.bf16.xpose.msra.mxu0 0
        %1534 = vmatprep.subr.bf16.mxu0 0
        %1535 = vmatpush1.bf16.xpose.msra.mxu0 0
        %1536 = vmatprep.mubr.bf16.mxu0 0
        %1537 = vmatmul.mubr.bf16.gmra.mrb[0].mxu0 %v1499
        %v1538 = vpop.f32.mrb[0].mxu0
        %v1539 = vadd.f32 0.0, %v1538
        %v1540 = vpop.f32.mrb[0].mxu0
        %v1541 = vpop.f32.mrb[0].mxu0
        %v1542 = vadd.f32 0.0, %v1541
        %v1543 = vpop.f32.mrb[0].mxu0
        %1544 = vdwg.mxu0
        %v1546 = vsel %vm1215, %v1118, 0
        %v1549 = vsel %vm1215, %v1166, 0
        %1551 = vmatprep.subr.bf16.mxu0 0
        %1552 = vmatpush1.bf16.xpose.msra.mxu0 %v1549
        %1553 = vmatprep.subr.bf16.mxu0 0
        %1554 = vmatpush1.bf16.xpose.msra.mxu0 0
        %1555 = vmatprep.subr.bf16.mxu0 0
        %1556 = vmatpush1.bf16.xpose.msra.mxu0 0
        %1557 = vmatprep.subr.bf16.mxu0 0
        %1558 = vmatpush1.bf16.xpose.msra.mxu0 0
        %1559 = vmatprep.subr.bf16.mxu0 0
        %1560 = vmatpush1.bf16.xpose.msra.mxu0 0
        %1561 = vmatprep.subr.bf16.mxu0 0
        %1562 = vmatpush1.bf16.xpose.msra.mxu0 0
        %1563 = vmatprep.subr.bf16.mxu0 0
        %1564 = vmatpush1.bf16.xpose.msra.mxu0 0
        %1565 = vmatprep.subr.bf16.mxu0 0
        %1566 = vmatpush1.bf16.xpose.msra.mxu0 0
        %1567 = vmatprep.subr.bf16.mxu0 0
        %1568 = vmatpush1.bf16.xpose.msra.mxu0 0
        %1569 = vmatprep.subr.bf16.mxu0 0
        %1570 = vmatpush1.bf16.xpose.msra.mxu0 0
        %1571 = vmatprep.subr.bf16.mxu0 0
        %1572 = vmatpush1.bf16.xpose.msra.mxu0 0
        %1573 = vmatprep.subr.bf16.mxu0 0
        %1574 = vmatpush1.bf16.xpose.msra.mxu0 0
        %1575 = vmatprep.subr.bf16.mxu0 0
        %1576 = vmatpush1.bf16.xpose.msra.mxu0 0
        %1577 = vmatprep.subr.bf16.mxu0 0
        %1578 = vmatpush1.bf16.xpose.msra.mxu0 0
        %1579 = vmatprep.subr.bf16.mxu0 0
        %1580 = vmatpush1.bf16.xpose.msra.mxu0 0
        %1581 = vmatprep.subr.bf16.mxu0 0
        %1582 = vmatpush1.bf16.xpose.msra.mxu0 0
        %1583 = vmatprep.mubr.bf16.mxu0 0
        %1584 = vmatmul.mubr.bf16.gmra.mrb[0].mxu0 %v1546
        %v1585 = vpop.f32.mrb[0].mxu0
        %v1586 = vadd.f32 0.0, %v1585
        %v1587 = vpop.f32.mrb[0].mxu0
        %v1588 = vpop.f32.mrb[0].mxu0
        %v1589 = vadd.f32 0.0, %v1588
        %v1590 = vpop.f32.mrb[0].mxu0
        %1591 = vdwg.mxu0
        %vm1592 = vcmask 130048
        %v1593 = vsel %vm1592, %v1257, -inf
        %1594 = vmax.xlane.f32.xlu0 %v1593
        %v1595 = vpop.xlane.xlu0 %1594
        %v1596 = vsel %vm1592, %v1260, -inf
        %1597 = vmax.xlane.f32.xlu0 %v1596
        %v1598 = vpop.xlane.xlu0 %1597
        %v1599 = vsel %vm1592, %v1304, -inf
        %1600 = vmax.xlane.f32.xlu0 %v1599
        %v1601 = vpop.xlane.xlu0 %1600
        %v1602 = vsel %vm1592, %v1307, -inf
        %1603 = vmax.xlane.f32.xlu0 %v1602
        %v1604 = vpop.xlane.xlu0 %1603
        %v1605 = vsel %vm1592, %v1351, -inf
        %1606 = vmax.xlane.f32.xlu0 %v1605
        %v1607 = vpop.xlane.xlu0 %1606
        %v1608 = vsel %vm1592, %v1354, -inf
        %1609 = vmax.xlane.f32.xlu0 %v1608
        %v1610 = vpop.xlane.xlu0 %1609
        %v1611 = vsel %vm1592, %v1398, -inf
        %1612 = vmax.xlane.f32.xlu0 %v1611
        %v1613 = vpop.xlane.xlu0 %1612
        %v1614 = vsel %vm1592, %v1401, -inf
        %1615 = vmax.xlane.f32.xlu0 %v1614
        %v1616 = vpop.xlane.xlu0 %1615
        %v1617 = vsel %vm1592, %v1445, -inf
        %1618 = vmax.xlane.f32.xlu0 %v1617
        %v1619 = vpop.xlane.xlu0 %1618
        %v1620 = vsel %vm1592, %v1448, -inf
        %1621 = vmax.xlane.f32.xlu0 %v1620
        %v1622 = vpop.xlane.xlu0 %1621
        %v1623 = vsel %vm1592, %v1492, -inf
        %1624 = vmax.xlane.f32.xlu0 %v1623
        %v1625 = vpop.xlane.xlu0 %1624
        %v1626 = vsel %vm1592, %v1495, -inf
        %1627 = vmax.xlane.f32.xlu0 %v1626
        %v1628 = vpop.xlane.xlu0 %1627
        %v1629 = vsel %vm1592, %v1539, -inf
        %1630 = vmax.xlane.f32.xlu0 %v1629
        %v1631 = vpop.xlane.xlu0 %1630
        %v1632 = vsel %vm1592, %v1542, -inf
        %1633 = vmax.xlane.f32.xlu0 %v1632
        %v1634 = vpop.xlane.xlu0 %1633
        %v1635 = vsel %vm1592, %v1586, -inf
        %1636 = vmax.xlane.f32.xlu0 %v1635
        %v1637 = vpop.xlane.xlu0 %1636
        %v1638 = vsel %vm1592, %v1589, -inf
        %1639 = vmax.xlane.f32.xlu0 %v1638
        %v1640 = vpop.xlane.xlu0 %1639
        %v1641 = vsub.f32 %v1257, %v1595
        %v1642 = vsub.f32 %v1260, %v1598
        %v1643 = vsub.f32 %v1304, %v1601
        %v1644 = vsub.f32 %v1307, %v1604
        %v1645 = vsub.f32 %v1351, %v1607
        %v1646 = vsub.f32 %v1354, %v1610
        %v1647 = vsub.f32 %v1398, %v1613
        %v1648 = vsub.f32 %v1401, %v1616
        %v1649 = vsub.f32 %v1445, %v1619
        %v1650 = vsub.f32 %v1448, %v1622
        %v1651 = vsub.f32 %v1492, %v1625
        %v1652 = vsub.f32 %v1495, %v1628
        %v1653 = vsub.f32 %v1539, %v1631
        %v1654 = vsub.f32 %v1542, %v1634
        %v1655 = vsub.f32 %v1586, %v1637
        %v1656 = vsub.f32 %v1589, %v1640
        %v1657 = vmul.f32 %v1641, 1.442695
        %v1658 = vpow.pop %v1657
        %v1659 = vmul.f32 %v1642, 1.442695
        %v1660 = vpow.pop %v1659
        %v1661 = vmul.f32 %v1643, 1.442695
        %v1662 = vpow.pop %v1661
        %v1663 = vmul.f32 %v1644, 1.442695
        %v1664 = vpow.pop %v1663
        %v1665 = vmul.f32 %v1645, 1.442695
        %v1666 = vpow.pop %v1665
        %v1667 = vmul.f32 %v1646, 1.442695
        %v1668 = vpow.pop %v1667
        %v1669 = vmul.f32 %v1647, 1.442695
        %v1670 = vpow.pop %v1669
        %v1671 = vmul.f32 %v1648, 1.442695
        %v1672 = vpow.pop %v1671
        %v1673 = vmul.f32 %v1649, 1.442695
        %v1674 = vpow.pop %v1673
        %v1675 = vmul.f32 %v1650, 1.442695
        %v1676 = vpow.pop %v1675
        %v1677 = vmul.f32 %v1651, 1.442695
        %v1678 = vpow.pop %v1677
        %v1679 = vmul.f32 %v1652, 1.442695
        %v1680 = vpow.pop %v1679
        %v1681 = vmul.f32 %v1653, 1.442695
        %v1682 = vpow.pop %v1681
        %v1683 = vmul.f32 %v1654, 1.442695
        %v1684 = vpow.pop %v1683
        %v1685 = vmul.f32 %v1655, 1.442695
        %v1686 = vpow.pop %v1685
        %v1687 = vmul.f32 %v1656, 1.442695
        %v1688 = vpow.pop %v1687
        %v1689 = vsel %vm1592, %v1658, 0.0
        %1690 = vadd.xlane.f32.xlu0 %v1689
        %v1691 = vpop.xlane.xlu0 %1690
        %v1692 = vsel %vm1592, %v1660, 0.0
        %1693 = vadd.xlane.f32.xlu0 %v1692
        %v1694 = vpop.xlane.xlu0 %1693
        %v1695 = vsel %vm1592, %v1662, 0.0
        %1696 = vadd.xlane.f32.xlu0 %v1695
        %v1697 = vpop.xlane.xlu0 %1696
        %v1698 = vsel %vm1592, %v1664, 0.0
        %1699 = vadd.xlane.f32.xlu0 %v1698
        %v1700 = vpop.xlane.xlu0 %1699
        %v1701 = vsel %vm1592, %v1666, 0.0
        %1702 = vadd.xlane.f32.xlu0 %v1701
        %v1703 = vpop.xlane.xlu0 %1702
        %v1704 = vsel %vm1592, %v1668, 0.0
        %1705 = vadd.xlane.f32.xlu0 %v1704
        %v1706 = vpop.xlane.xlu0 %1705
        %v1707 = vsel %vm1592, %v1670, 0.0
        %1708 = vadd.xlane.f32.xlu0 %v1707
        %v1709 = vpop.xlane.xlu0 %1708
        %v1710 = vsel %vm1592, %v1672, 0.0
        %1711 = vadd.xlane.f32.xlu0 %v1710
        %v1712 = vpop.xlane.xlu0 %1711
        %v1713 = vsel %vm1592, %v1674, 0.0
        %1714 = vadd.xlane.f32.xlu0 %v1713
        %v1715 = vpop.xlane.xlu0 %1714
        %v1716 = vsel %vm1592, %v1676, 0.0
        %1717 = vadd.xlane.f32.xlu0 %v1716
        %v1718 = vpop.xlane.xlu0 %1717
        %v1719 = vsel %vm1592, %v1678, 0.0
        %1720 = vadd.xlane.f32.xlu0 %v1719
        %v1721 = vpop.xlane.xlu0 %1720
        %v1722 = vsel %vm1592, %v1680, 0.0
        %1723 = vadd.xlane.f32.xlu0 %v1722
        %v1724 = vpop.xlane.xlu0 %1723
        %v1725 = vsel %vm1592, %v1682, 0.0
        %1726 = vadd.xlane.f32.xlu0 %v1725
        %v1727 = vpop.xlane.xlu0 %1726
        %v1728 = vsel %vm1592, %v1684, 0.0
        %1729 = vadd.xlane.f32.xlu0 %v1728
        %v1730 = vpop.xlane.xlu0 %1729
        %v1731 = vsel %vm1592, %v1686, 0.0
        %1732 = vadd.xlane.f32.xlu0 %v1731
        %v1733 = vpop.xlane.xlu0 %1732
        %v1734 = vsel %vm1592, %v1688, 0.0
        %1735 = vadd.xlane.f32.xlu0 %v1734
        %v1736 = vpop.xlane.xlu0 %1735
        %v1737 = vrcp.pop %v1691
        %v1738 = vmul.f32 %v1658, %v1737
        %v1739 = vrcp.pop %v1694
        %v1740 = vmul.f32 %v1660, %v1739
        %v1741 = vrcp.pop %v1697
        %v1742 = vmul.f32 %v1662, %v1741
        %v1743 = vrcp.pop %v1700
        %v1744 = vmul.f32 %v1664, %v1743
        %v1745 = vrcp.pop %v1703
        %v1746 = vmul.f32 %v1666, %v1745
        %v1747 = vrcp.pop %v1706
        %v1748 = vmul.f32 %v1668, %v1747
        %v1749 = vrcp.pop %v1709
        %v1750 = vmul.f32 %v1670, %v1749
        %v1751 = vrcp.pop %v1712
        %v1752 = vmul.f32 %v1672, %v1751
        %v1753 = vrcp.pop %v1715
        %v1754 = vmul.f32 %v1674, %v1753
        %v1755 = vrcp.pop %v1718
        %v1756 = vmul.f32 %v1676, %v1755
        %v1757 = vrcp.pop %v1721
        %v1758 = vmul.f32 %v1678, %v1757
        %v1759 = vrcp.pop %v1724
        %v1760 = vmul.f32 %v1680, %v1759
        %v1761 = vrcp.pop %v1727
        %v1762 = vmul.f32 %v1682, %v1761
        %v1763 = vrcp.pop %v1730
        %v1764 = vmul.f32 %v1684, %v1763
        %v1765 = vrcp.pop %v1733
        %v1766 = vmul.f32 %v1686, %v1765
        %v1767 = vrcp.pop %v1736
        %v1768 = vmul.f32 %v1688, %v1767
        %v1769 = vpack.c.bf16 %v1740, %v1738
        %v1770 = vpack.c.bf16 %v1744, %v1742
        %v1771 = vpack.c.bf16 %v1748, %v1746
        %v1772 = vpack.c.bf16 %v1752, %v1750
        %v1773 = vpack.c.bf16 %v1756, %v1754
        %v1774 = vpack.c.bf16 %v1760, %v1758
        %v1775 = vpack.c.bf16 %v1764, %v1762
        %v1776 = vpack.c.bf16 %v1768, %v1766
        %v1778 = vsel %vm1592, %v1769, 0
        %1780 = vmatprep.subr.bf16.mxu0 0
        %1781 = vmatpush1.bf16.msra.mxu0 %v1207
        %1782 = vmatprep.subr.bf16.mxu0 0
        %1783 = vmatpush1.bf16.msra.mxu0 0
        %1784 = vmatprep.subr.bf16.mxu0 0
        %1785 = vmatpush1.bf16.msra.mxu0 0
        %1786 = vmatprep.subr.bf16.mxu0 0
        %1787 = vmatpush1.bf16.msra.mxu0 0
        %1788 = vmatprep.subr.bf16.mxu0 0
        %1789 = vmatpush1.bf16.msra.mxu0 0
        %1790 = vmatprep.subr.bf16.mxu0 0
        %1791 = vmatpush1.bf16.msra.mxu0 0
        %1792 = vmatprep.subr.bf16.mxu0 0
        %1793 = vmatpush1.bf16.msra.mxu0 0
        %1794 = vmatprep.subr.bf16.mxu0 0
        %1795 = vmatpush1.bf16.msra.mxu0 0
        %1796 = vmatprep.subr.bf16.mxu0 0
        %1797 = vmatpush1.bf16.msra.mxu0 0
        %1798 = vmatprep.subr.bf16.mxu0 0
        %1799 = vmatpush1.bf16.msra.mxu0 0
        %1800 = vmatprep.subr.bf16.mxu0 0
        %1801 = vmatpush1.bf16.msra.mxu0 0
        %1802 = vmatprep.subr.bf16.mxu0 0
        %1803 = vmatpush1.bf16.msra.mxu0 0
        %1804 = vmatprep.subr.bf16.mxu0 0
        %1805 = vmatpush1.bf16.msra.mxu0 0
        %1806 = vmatprep.subr.bf16.mxu0 0
        %1807 = vmatpush1.bf16.msra.mxu0 0
        %1808 = vmatprep.subr.bf16.mxu0 0
        %1809 = vmatpush1.bf16.msra.mxu0 0
        %1810 = vmatprep.subr.bf16.mxu0 0
        %1811 = vmatpush1.bf16.msra.mxu0 0
        %1812 = vmatprep.mubr.bf16.mxu0 0
        %1813 = vmatmul.mubr.bf16.gmra.mrb[0].mxu0 %v1778
        %v1814 = vpop.f32.mrb[0].mxu0
        %v1815 = vadd.f32 0.0, %v1814
        %v1816 = vpop.f32.mrb[0].mxu0
        %v1817 = vpop.f32.mrb[0].mxu0
        %v1818 = vadd.f32 0.0, %v1817
        %v1819 = vpop.f32.mrb[0].mxu0
        %1820 = vdwg.mxu0
        %v1822 = vsel %vm1592, %v1770, 0
        %1824 = vmatprep.subr.bf16.mxu0 0
        %1825 = vmatpush1.bf16.msra.mxu0 %v1208
        %1826 = vmatprep.subr.bf16.mxu0 0
        %1827 = vmatpush1.bf16.msra.mxu0 0
        %1828 = vmatprep.subr.bf16.mxu0 0
        %1829 = vmatpush1.bf16.msra.mxu0 0
        %1830 = vmatprep.subr.bf16.mxu0 0
        %1831 = vmatpush1.bf16.msra.mxu0 0
        %1832 = vmatprep.subr.bf16.mxu0 0
        %1833 = vmatpush1.bf16.msra.mxu0 0
        %1834 = vmatprep.subr.bf16.mxu0 0
        %1835 = vmatpush1.bf16.msra.mxu0 0
        %1836 = vmatprep.subr.bf16.mxu0 0
        %1837 = vmatpush1.bf16.msra.mxu0 0
        %1838 = vmatprep.subr.bf16.mxu0 0
        %1839 = vmatpush1.bf16.msra.mxu0 0
        %1840 = vmatprep.subr.bf16.mxu0 0
        %1841 = vmatpush1.bf16.msra.mxu0 0
        %1842 = vmatprep.subr.bf16.mxu0 0
        %1843 = vmatpush1.bf16.msra.mxu0 0
        %1844 = vmatprep.subr.bf16.mxu0 0
        %1845 = vmatpush1.bf16.msra.mxu0 0
        %1846 = vmatprep.subr.bf16.mxu0 0
        %1847 = vmatpush1.bf16.msra.mxu0 0
        %1848 = vmatprep.subr.bf16.mxu0 0
        %1849 = vmatpush1.bf16.msra.mxu0 0
        %1850 = vmatprep.subr.bf16.mxu0 0
        %1851 = vmatpush1.bf16.msra.mxu0 0
        %1852 = vmatprep.subr.bf16.mxu0 0
        %1853 = vmatpush1.bf16.msra.mxu0 0
        %1854 = vmatprep.subr.bf16.mxu0 0
        %1855 = vmatpush1.bf16.msra.mxu0 0
        %1856 = vmatprep.mubr.bf16.mxu0 0
        %1857 = vmatmul.mubr.bf16.gmra.mrb[0].mxu0 %v1822
        %v1858 = vpop.f32.mrb[0].mxu0
        %v1859 = vadd.f32 0.0, %v1858
        %v1860 = vpop.f32.mrb[0].mxu0
        %v1861 = vpop.f32.mrb[0].mxu0
        %v1862 = vadd.f32 0.0, %v1861
        %v1863 = vpop.f32.mrb[0].mxu0
        %1864 = vdwg.mxu0
        %v1866 = vsel %vm1592, %v1771, 0
        %1868 = vmatprep.subr.bf16.mxu0 0
        %1869 = vmatpush1.bf16.msra.mxu0 %v1209
        %1870 = vmatprep.subr.bf16.mxu0 0
        %1871 = vmatpush1.bf16.msra.mxu0 0
        %1872 = vmatprep.subr.bf16.mxu0 0
        %1873 = vmatpush1.bf16.msra.mxu0 0
        %1874 = vmatprep.subr.bf16.mxu0 0
        %1875 = vmatpush1.bf16.msra.mxu0 0
        %1876 = vmatprep.subr.bf16.mxu0 0
        %1877 = vmatpush1.bf16.msra.mxu0 0
        %1878 = vmatprep.subr.bf16.mxu0 0
        %1879 = vmatpush1.bf16.msra.mxu0 0
        %1880 = vmatprep.subr.bf16.mxu0 0
        %1881 = vmatpush1.bf16.msra.mxu0 0
        %1882 = vmatprep.subr.bf16.mxu0 0
        %1883 = vmatpush1.bf16.msra.mxu0 0
        %1884 = vmatprep.subr.bf16.mxu0 0
        %1885 = vmatpush1.bf16.msra.mxu0 0
        %1886 = vmatprep.subr.bf16.mxu0 0
        %1887 = vmatpush1.bf16.msra.mxu0 0
        %1888 = vmatprep.subr.bf16.mxu0 0
        %1889 = vmatpush1.bf16.msra.mxu0 0
        %1890 = vmatprep.subr.bf16.mxu0 0
        %1891 = vmatpush1.bf16.msra.mxu0 0
        %1892 = vmatprep.subr.bf16.mxu0 0
        %1893 = vmatpush1.bf16.msra.mxu0 0
        %1894 = vmatprep.subr.bf16.mxu0 0
        %1895 = vmatpush1.bf16.msra.mxu0 0
        %1896 = vmatprep.subr.bf16.mxu0 0
        %1897 = vmatpush1.bf16.msra.mxu0 0
        %1898 = vmatprep.subr.bf16.mxu0 0
        %1899 = vmatpush1.bf16.msra.mxu0 0
        %1900 = vmatprep.mubr.bf16.mxu0 0
        %1901 = vmatmul.mubr.bf16.gmra.mrb[0].mxu0 %v1866
        %v1902 = vpop.f32.mrb[0].mxu0
        %v1903 = vadd.f32 0.0, %v1902
        %v1904 = vpop.f32.mrb[0].mxu0
        %v1905 = vpop.f32.mrb[0].mxu0
        %v1906 = vadd.f32 0.0, %v1905
        %v1907 = vpop.f32.mrb[0].mxu0
        %1908 = vdwg.mxu0
        %v1910 = vsel %vm1592, %v1772, 0
        %1912 = vmatprep.subr.bf16.mxu0 0
        %1913 = vmatpush1.bf16.msra.mxu0 %v1210
        %1914 = vmatprep.subr.bf16.mxu0 0
        %1915 = vmatpush1.bf16.msra.mxu0 0
        %1916 = vmatprep.subr.bf16.mxu0 0
        %1917 = vmatpush1.bf16.msra.mxu0 0
        %1918 = vmatprep.subr.bf16.mxu0 0
        %1919 = vmatpush1.bf16.msra.mxu0 0
        %1920 = vmatprep.subr.bf16.mxu0 0
        %1921 = vmatpush1.bf16.msra.mxu0 0
        %1922 = vmatprep.subr.bf16.mxu0 0
        %1923 = vmatpush1.bf16.msra.mxu0 0
        %1924 = vmatprep.subr.bf16.mxu0 0
        %1925 = vmatpush1.bf16.msra.mxu0 0
        %1926 = vmatprep.subr.bf16.mxu0 0
        %1927 = vmatpush1.bf16.msra.mxu0 0
        %1928 = vmatprep.subr.bf16.mxu0 0
        %1929 = vmatpush1.bf16.msra.mxu0 0
        %1930 = vmatprep.subr.bf16.mxu0 0
        %1931 = vmatpush1.bf16.msra.mxu0 0
        %1932 = vmatprep.subr.bf16.mxu0 0
        %1933 = vmatpush1.bf16.msra.mxu0 0
        %1934 = vmatprep.subr.bf16.mxu0 0
        %1935 = vmatpush1.bf16.msra.mxu0 0
        %1936 = vmatprep.subr.bf16.mxu0 0
        %1937 = vmatpush1.bf16.msra.mxu0 0
        %1938 = vmatprep.subr.bf16.mxu0 0
        %1939 = vmatpush1.bf16.msra.mxu0 0
        %1940 = vmatprep.subr.bf16.mxu0 0
        %1941 = vmatpush1.bf16.msra.mxu0 0
        %1942 = vmatprep.subr.bf16.mxu0 0
        %1943 = vmatpush1.bf16.msra.mxu0 0
        %1944 = vmatprep.mubr.bf16.mxu0 0
        %1945 = vmatmul.mubr.bf16.gmra.mrb[0].mxu0 %v1910
        %v1946 = vpop.f32.mrb[0].mxu0
        %v1947 = vadd.f32 0.0, %v1946
        %v1948 = vpop.f32.mrb[0].mxu0
        %v1949 = vpop.f32.mrb[0].mxu0
        %v1950 = vadd.f32 0.0, %v1949
        %v1951 = vpop.f32.mrb[0].mxu0
        %1952 = vdwg.mxu0
        %v1954 = vsel %vm1592, %v1773, 0
        %1956 = vmatprep.subr.bf16.mxu0 0
        %1957 = vmatpush1.bf16.msra.mxu0 %v1211
        %1958 = vmatprep.subr.bf16.mxu0 0
        %1959 = vmatpush1.bf16.msra.mxu0 0
        %1960 = vmatprep.subr.bf16.mxu0 0
        %1961 = vmatpush1.bf16.msra.mxu0 0
        %1962 = vmatprep.subr.bf16.mxu0 0
        %1963 = vmatpush1.bf16.msra.mxu0 0
        %1964 = vmatprep.subr.bf16.mxu0 0
        %1965 = vmatpush1.bf16.msra.mxu0 0
        %1966 = vmatprep.subr.bf16.mxu0 0
        %1967 = vmatpush1.bf16.msra.mxu0 0
        %1968 = vmatprep.subr.bf16.mxu0 0
        %1969 = vmatpush1.bf16.msra.mxu0 0
        %1970 = vmatprep.subr.bf16.mxu0 0
        %1971 = vmatpush1.bf16.msra.mxu0 0
        %1972 = vmatprep.subr.bf16.mxu0 0
        %1973 = vmatpush1.bf16.msra.mxu0 0
        %1974 = vmatprep.subr.bf16.mxu0 0
        %1975 = vmatpush1.bf16.msra.mxu0 0
        %1976 = vmatprep.subr.bf16.mxu0 0
        %1977 = vmatpush1.bf16.msra.mxu0 0
        %1978 = vmatprep.subr.bf16.mxu0 0
        %1979 = vmatpush1.bf16.msra.mxu0 0
        %1980 = vmatprep.subr.bf16.mxu0 0
        %1981 = vmatpush1.bf16.msra.mxu0 0
        %1982 = vmatprep.subr.bf16.mxu0 0
        %1983 = vmatpush1.bf16.msra.mxu0 0
        %1984 = vmatprep.subr.bf16.mxu0 0
        %1985 = vmatpush1.bf16.msra.mxu0 0
        %1986 = vmatprep.subr.bf16.mxu0 0
        %1987 = vmatpush1.bf16.msra.mxu0 0
        %1988 = vmatprep.mubr.bf16.mxu0 0
        %1989 = vmatmul.mubr.bf16.gmra.mrb[0].mxu0 %v1954
        %v1990 = vpop.f32.mrb[0].mxu0
        %v1991 = vadd.f32 0.0, %v1990
        %v1992 = vpop.f32.mrb[0].mxu0
        %v1993 = vpop.f32.mrb[0].mxu0
        %v1994 = vadd.f32 0.0, %v1993
        %v1995 = vpop.f32.mrb[0].mxu0
        %1996 = vdwg.mxu0
        %v1998 = vsel %vm1592, %v1774, 0
        %2000 = vmatprep.subr.bf16.mxu0 0
        %2001 = vmatpush1.bf16.msra.mxu0 %v1212
        %2002 = vmatprep.subr.bf16.mxu0 0
        %2003 = vmatpush1.bf16.msra.mxu0 0
        %2004 = vmatprep.subr.bf16.mxu0 0
        %2005 = vmatpush1.bf16.msra.mxu0 0
        %2006 = vmatprep.subr.bf16.mxu0 0
        %2007 = vmatpush1.bf16.msra.mxu0 0
        %2008 = vmatprep.subr.bf16.mxu0 0
        %2009 = vmatpush1.bf16.msra.mxu0 0
        %2010 = vmatprep.subr.bf16.mxu0 0
        %2011 = vmatpush1.bf16.msra.mxu0 0
        %2012 = vmatprep.subr.bf16.mxu0 0
        %2013 = vmatpush1.bf16.msra.mxu0 0
        %2014 = vmatprep.subr.bf16.mxu0 0
        %2015 = vmatpush1.bf16.msra.mxu0 0
        %2016 = vmatprep.subr.bf16.mxu0 0
        %2017 = vmatpush1.bf16.msra.mxu0 0
        %2018 = vmatprep.subr.bf16.mxu0 0
        %2019 = vmatpush1.bf16.msra.mxu0 0
        %2020 = vmatprep.subr.bf16.mxu0 0
        %2021 = vmatpush1.bf16.msra.mxu0 0
        %2022 = vmatprep.subr.bf16.mxu0 0
        %2023 = vmatpush1.bf16.msra.mxu0 0
        %2024 = vmatprep.subr.bf16.mxu0 0
        %2025 = vmatpush1.bf16.msra.mxu0 0
        %2026 = vmatprep.subr.bf16.mxu0 0
        %2027 = vmatpush1.bf16.msra.mxu0 0
        %2028 = vmatprep.subr.bf16.mxu0 0
        %2029 = vmatpush1.bf16.msra.mxu0 0
        %2030 = vmatprep.subr.bf16.mxu0 0
        %2031 = vmatpush1.bf16.msra.mxu0 0
        %2032 = vmatprep.mubr.bf16.mxu0 0
        %2033 = vmatmul.mubr.bf16.gmra.mrb[0].mxu0 %v1998
        %v2034 = vpop.f32.mrb[0].mxu0
        %v2035 = vadd.f32 0.0, %v2034
        %v2036 = vpop.f32.mrb[0].mxu0
        %v2037 = vpop.f32.mrb[0].mxu0
        %v2038 = vadd.f32 0.0, %v2037
        %v2039 = vpop.f32.mrb[0].mxu0
        %2040 = vdwg.mxu0
        %v2042 = vsel %vm1592, %v1775, 0
        %2044 = vmatprep.subr.bf16.mxu0 0
        %2045 = vmatpush1.bf16.msra.mxu0 %v1213
        %2046 = vmatprep.subr.bf16.mxu0 0
        %2047 = vmatpush1.bf16.msra.mxu0 0
        %2048 = vmatprep.subr.bf16.mxu0 0
        %2049 = vmatpush1.bf16.msra.mxu0 0
        %2050 = vmatprep.subr.bf16.mxu0 0
        %2051 = vmatpush1.bf16.msra.mxu0 0
        %2052 = vmatprep.subr.bf16.mxu0 0
        %2053 = vmatpush1.bf16.msra.mxu0 0
        %2054 = vmatprep.subr.bf16.mxu0 0
        %2055 = vmatpush1.bf16.msra.mxu0 0
        %2056 = vmatprep.subr.bf16.mxu0 0
        %2057 = vmatpush1.bf16.msra.mxu0 0
        %2058 = vmatprep.subr.bf16.mxu0 0
        %2059 = vmatpush1.bf16.msra.mxu0 0
        %2060 = vmatprep.subr.bf16.mxu0 0
        %2061 = vmatpush1.bf16.msra.mxu0 0
        %2062 = vmatprep.subr.bf16.mxu0 0
        %2063 = vmatpush1.bf16.msra.mxu0 0
        %2064 = vmatprep.subr.bf16.mxu0 0
        %2065 = vmatpush1.bf16.msra.mxu0 0
        %2066 = vmatprep.subr.bf16.mxu0 0
        %2067 = vmatpush1.bf16.msra.mxu0 0
        %2068 = vmatprep.subr.bf16.mxu0 0
        %2069 = vmatpush1.bf16.msra.mxu0 0
        %2070 = vmatprep.subr.bf16.mxu0 0
        %2071 = vmatpush1.bf16.msra.mxu0 0
        %2072 = vmatprep.subr.bf16.mxu0 0
        %2073 = vmatpush1.bf16.msra.mxu0 0
        %2074 = vmatprep.subr.bf16.mxu0 0
        %2075 = vmatpush1.bf16.msra.mxu0 0
        %2076 = vmatprep.mubr.bf16.mxu0 0
        %2077 = vmatmul.mubr.bf16.gmra.mrb[0].mxu0 %v2042
        %v2078 = vpop.f32.mrb[0].mxu0
        %v2079 = vadd.f32 0.0, %v2078
        %v2080 = vpop.f32.mrb[0].mxu0
        %v2081 = vpop.f32.mrb[0].mxu0
        %v2082 = vadd.f32 0.0, %v2081
        %v2083 = vpop.f32.mrb[0].mxu0
        %2084 = vdwg.mxu0
        %v2086 = vsel %vm1592, %v1776, 0
        %2088 = vmatprep.subr.bf16.mxu0 0
        %2089 = vmatpush1.bf16.msra.mxu0 %v1214
        %2090 = vmatprep.subr.bf16.mxu0 0
        %2091 = vmatpush1.bf16.msra.mxu0 0
        %2092 = vmatprep.subr.bf16.mxu0 0
        %2093 = vmatpush1.bf16.msra.mxu0 0
        %2094 = vmatprep.subr.bf16.mxu0 0
        %2095 = vmatpush1.bf16.msra.mxu0 0
        %2096 = vmatprep.subr.bf16.mxu0 0
        %2097 = vmatpush1.bf16.msra.mxu0 0
        %2098 = vmatprep.subr.bf16.mxu0 0
        %2099 = vmatpush1.bf16.msra.mxu0 0
        %2100 = vmatprep.subr.bf16.mxu0 0
        %2101 = vmatpush1.bf16.msra.mxu0 0
        %2102 = vmatprep.subr.bf16.mxu0 0
        %2103 = vmatpush1.bf16.msra.mxu0 0
        %2104 = vmatprep.subr.bf16.mxu0 0
        %2105 = vmatpush1.bf16.msra.mxu0 0
        %2106 = vmatprep.subr.bf16.mxu0 0
        %2107 = vmatpush1.bf16.msra.mxu0 0
        %2108 = vmatprep.subr.bf16.mxu0 0
        %2109 = vmatpush1.bf16.msra.mxu0 0
        %2110 = vmatprep.subr.bf16.mxu0 0
        %2111 = vmatpush1.bf16.msra.mxu0 0
        %2112 = vmatprep.subr.bf16.mxu0 0
        %2113 = vmatpush1.bf16.msra.mxu0 0
        %2114 = vmatprep.subr.bf16.mxu0 0
        %2115 = vmatpush1.bf16.msra.mxu0 0
        %2116 = vmatprep.subr.bf16.mxu0 0
        %2117 = vmatpush1.bf16.msra.mxu0 0
        %2118 = vmatprep.subr.bf16.mxu0 0
        %2119 = vmatpush1.bf16.msra.mxu0 0
        %2120 = vmatprep.mubr.bf16.mxu0 0
        %2121 = vmatmul.mubr.bf16.gmra.mrb[0].mxu0 %v2086
        %v2122 = vpop.f32.mrb[0].mxu0
        %v2123 = vadd.f32 0.0, %v2122
        %v2124 = vpop.f32.mrb[0].mxu0
        %v2125 = vpop.f32.mrb[0].mxu0
        %v2126 = vadd.f32 0.0, %v2125
        %v2127 = vpop.f32.mrb[0].mxu0
        %2128 = vdwg.mxu0
        %2131 = vrot.lane.b32.xlu0 %v1859, 32
        %v2132 = vpop.permute.xlu0 %2131
        %2133 = vrot.lane.b32.xlu0 %v1862, 32
        %v2134 = vpop.permute.xlu0 %2133
        %2139 = vrot.lane.b32.xlu0 %v1903, 64
        %v2140 = vpop.permute.xlu0 %2139
        %2141 = vrot.lane.b32.xlu0 %v1906, 64
        %v2142 = vpop.permute.xlu0 %2141
        %2147 = vrot.lane.b32.xlu0 %v1947, 96
        %v2148 = vpop.permute.xlu0 %2147
        %2149 = vrot.lane.b32.xlu0 %v1950, 96
        %v2150 = vpop.permute.xlu0 %2149
        %v2153 = vsel %vm1215, %v1815, %v2132
        %v2154 = vsel %vm1215, %v1818, %v2134
        %vm2155 = vcmask 523264
        %v2156 = vsel %vm2155, %v2153, %v2140
        %v2157 = vsel %vm2155, %v2154, %v2142
        %vm2158 = vcmask 785408
        %v2159 = vsel %vm2158, %v2156, %v2148
        %v2160 = vsel %vm2158, %v2157, %v2150
        %2163 = vrot.lane.b32.xlu0 %v2035, 32
        %v2164 = vpop.permute.xlu0 %2163
        %2165 = vrot.lane.b32.xlu0 %v2038, 32
        %v2166 = vpop.permute.xlu0 %2165
        %2171 = vrot.lane.b32.xlu0 %v2079, 64
        %v2172 = vpop.permute.xlu0 %2171
        %2173 = vrot.lane.b32.xlu0 %v2082, 64
        %v2174 = vpop.permute.xlu0 %2173
        %2179 = vrot.lane.b32.xlu0 %v2123, 96
        %v2180 = vpop.permute.xlu0 %2179
        %2181 = vrot.lane.b32.xlu0 %v2126, 96
        %v2182 = vpop.permute.xlu0 %2181
        %v2185 = vsel %vm1215, %v1991, %v2164
        %v2186 = vsel %vm1215, %v1994, %v2166
        %v2187 = vsel %vm2155, %v2185, %v2172
        %v2188 = vsel %vm2155, %v2186, %v2174
        %v2189 = vsel %vm2158, %v2187, %v2180
        %v2190 = vsel %vm2158, %v2188, %v2182
        %v2191 = vpack.c.bf16 %v2160, %v2159
        %v2192 = vpack.c.bf16 %v2190, %v2189
        %v2193 = vld [vmem:[%s637] sm:$0xf]
        %v2194 = vld [vmem:[%s637 + $0x4] sm:$0xf]
        %v2195 = vld [vmem:[%s637 + $0x8] sm:$0xf]
        %v2196 = vld [vmem:[%s637 + $0xc] sm:$0xf]
        %v2197 = vld [vmem:[%s637 + $0x10] sm:$0xf]
        %v2198 = vld [vmem:[%s637 + $0x14] sm:$0xf]
        %v2199 = vld [vmem:[%s637 + $0x18] sm:$0xf]
        %v2200 = vld [vmem:[%s637 + $0x1c] sm:$0xf]
        %v2201 = vld [vmem:[%s637 + $0x20] sm:$0xf]
        %v2202 = vld [vmem:[%s637 + $0x24] sm:$0xf]
        %v2203 = vld [vmem:[%s637 + $0x28] sm:$0xf]
        %v2204 = vld [vmem:[%s637 + $0x2c] sm:$0xf]
        %v2205 = vld [vmem:[%s637 + $0x30] sm:$0xf]
        %v2206 = vld [vmem:[%s637 + $0x34] sm:$0xf]
        %v2207 = vld [vmem:[%s637 + $0x38] sm:$0xf]
        %v2208 = vld [vmem:[%s637 + $0x3c] sm:$0xf]
        %v2209 = vld [vmem:[%s748] sm:$0x1]
        %v2211 = vlaneseq
        %v2212 = vshrl.u32 %v2211, 7
        %v2213 = vsub.s32 0, %v2212
        %v2214 = vrot.slane %v2209, %v2213
        %v2232 = vunpack.c.l.b16 %v2193
        %v2233 = vunpack.c.l.b16 %v2194
        %v2234 = vunpack.c.l.b16 %v2195
        %v2235 = vunpack.c.l.b16 %v2196
        %v2236 = vunpack.c.l.b16 %v2197
        %v2237 = vunpack.c.l.b16 %v2198
        %v2238 = vunpack.c.l.b16 %v2199
        %v2239 = vunpack.c.l.b16 %v2200
        %v2240 = vunpack.c.l.b16 %v2201
        %v2241 = vunpack.c.l.b16 %v2202
        %v2242 = vunpack.c.l.b16 %v2203
        %v2243 = vunpack.c.l.b16 %v2204
        %v2244 = vunpack.c.l.b16 %v2205
        %v2245 = vunpack.c.l.b16 %v2206
        %v2246 = vunpack.c.l.b16 %v2207
        %v2247 = vunpack.c.l.b16 %v2208
        %v2248 = vpack.c.b16 %v2233, %v2232
        %v2249 = vpack.c.b16 %v2235, %v2234
        %v2250 = vpack.c.b16 %v2237, %v2236
        %v2251 = vpack.c.b16 %v2239, %v2238
        %v2252 = vpack.c.b16 %v2241, %v2240
        %v2253 = vpack.c.b16 %v2243, %v2242
        %v2254 = vpack.c.b16 %v2245, %v2244
        %v2255 = vpack.c.b16 %v2247, %v2246
        %2264 = vmatprep.subr.bf16.mxu0 0
        %2265 = vmatpush1.bf16.msra.mxu0 %v2248
        %2266 = vmatprep.subr.bf16.mxu0 0
        %2267 = vmatpush1.bf16.msra.mxu0 %v2249
        %2268 = vmatprep.subr.bf16.mxu0 0
        %2269 = vmatpush1.bf16.msra.mxu0 %v2250
        %2270 = vmatprep.subr.bf16.mxu0 0
        %2271 = vmatpush1.bf16.msra.mxu0 %v2251
        %2272 = vmatprep.subr.bf16.mxu0 0
        %2273 = vmatpush1.bf16.msra.mxu0 %v2252
        %2274 = vmatprep.subr.bf16.mxu0 0
        %2275 = vmatpush1.bf16.msra.mxu0 %v2253
        %2276 = vmatprep.subr.bf16.mxu0 0
        %2277 = vmatpush1.bf16.msra.mxu0 %v2254
        %2278 = vmatprep.subr.bf16.mxu0 0
        %2279 = vmatpush1.bf16.msra.mxu0 %v2255
        %2280 = vmatprep.subr.bf16.mxu0 0
        %2281 = vmatpush1.bf16.msra.mxu0 0
        %2282 = vmatprep.subr.bf16.mxu0 0
        %2283 = vmatpush1.bf16.msra.mxu0 0
        %2284 = vmatprep.subr.bf16.mxu0 0
        %2285 = vmatpush1.bf16.msra.mxu0 0
        %2286 = vmatprep.subr.bf16.mxu0 0
        %2287 = vmatpush1.bf16.msra.mxu0 0
        %2288 = vmatprep.subr.bf16.mxu0 0
        %2289 = vmatpush1.bf16.msra.mxu0 0
        %2290 = vmatprep.subr.bf16.mxu0 0
        %2291 = vmatpush1.bf16.msra.mxu0 0
        %2292 = vmatprep.subr.bf16.mxu0 0
        %2293 = vmatpush1.bf16.msra.mxu0 0
        %2294 = vmatprep.subr.bf16.mxu0 0
        %2295 = vmatpush1.bf16.msra.mxu0 0
        %2296 = vmatprep.mubr.bf16.mxu0 0
        %2297 = vmatmul.mubr.bf16.gmra.mrb[0].mxu0 %v2191
        %v2298 = vpop.f32.mrb[0].mxu0
        %v2299 = vadd.f32 %v2214, %v2298
        %v2300 = vpop.f32.mrb[0].mxu0
        %v2301 = vpop.f32.mrb[0].mxu0
        %v2302 = vadd.f32 %v2214, %v2301
        %v2303 = vpop.f32.mrb[0].mxu0
        %2304 = vmatprep.mubr.bf16.mxu0 0
        %2305 = vmatmul.mubr.bf16.gmra.mrb[0].mxu0 %v2192
        %v2306 = vpop.f32.mrb[0].mxu0
        %v2307 = vadd.f32 %v2214, %v2306
        %v2308 = vpop.f32.mrb[0].mxu0
        %v2309 = vpop.f32.mrb[0].mxu0
        %v2310 = vadd.f32 %v2214, %v2309
        %v2311 = vpop.f32.mrb[0].mxu0
        %2312 = vdwg.mxu0
        %v2313 = vadd.f32 %v782, %v2299
        %v2314 = vadd.f32 %v783, %v2302
        %v2315 = vadd.f32 %v784, %v2307
        %v2316 = vadd.f32 %v785, %v2310
        %v2317 = vld [vmem:[%s751] sm:$0x1]
        %v2318 = vld [vmem:[%s754] sm:$0x1]
        %2319 = vadd.xlane.f32.xlu0 %v2313
        %v2320 = vpop.xlane.xlu0 %2319
        %2321 = vadd.xlane.f32.xlu0 %v2314
        %v2322 = vpop.xlane.xlu0 %2321
        %2323 = vadd.xlane.f32.xlu0 %v2315
        %v2324 = vpop.xlane.xlu0 %2323
        %2325 = vadd.xlane.f32.xlu0 %v2316
        %v2326 = vpop.xlane.xlu0 %2325
        %v2327 = vrcp.pop 128.0
        %v2328 = vmul.f32 %v2320, %v2327
        %v2329 = vmul.f32 %v2322, %v2327
        %v2330 = vmul.f32 %v2324, %v2327
        %v2331 = vmul.f32 %v2326, %v2327
        %v2332 = vsub.f32 %v2313, %v2328
        %v2333 = vsub.f32 %v2314, %v2329
        %v2334 = vsub.f32 %v2315, %v2330
        %v2335 = vsub.f32 %v2316, %v2331
        %v2336 = vmul.f32 %v2332, %v2332
        %v2337 = vmul.f32 %v2333, %v2333
        %v2338 = vmul.f32 %v2334, %v2334
        %v2339 = vmul.f32 %v2335, %v2335
        %2340 = vadd.xlane.f32.xlu0 %v2336
        %v2341 = vpop.xlane.xlu0 %2340
        %2342 = vadd.xlane.f32.xlu0 %v2337
        %v2343 = vpop.xlane.xlu0 %2342
        %2344 = vadd.xlane.f32.xlu0 %v2338
        %v2345 = vpop.xlane.xlu0 %2344
        %2346 = vadd.xlane.f32.xlu0 %v2339
        %v2347 = vpop.xlane.xlu0 %2346
        %v2348 = vmul.f32 %v2341, %v2327
        %v2349 = vmul.f32 %v2343, %v2327
        %v2350 = vmul.f32 %v2345, %v2327
        %v2351 = vmul.f32 %v2347, %v2327
        %v2352 = vadd.f32 %v2348, 1e-05
        %v2353 = vadd.f32 %v2349, 1e-05
        %v2354 = vadd.f32 %v2350, 1e-05
        %v2355 = vadd.f32 %v2351, 1e-05
        %v2356 = vrsqrt.pop %v2352
        %v2357 = vrsqrt.pop %v2353
        %v2358 = vrsqrt.pop %v2354
        %v2359 = vrsqrt.pop %v2355
        %v2360 = vmul.f32 %v2332, %v2356
        %v2361 = vmul.f32 %v2333, %v2357
        %v2362 = vmul.f32 %v2334, %v2358
        %v2363 = vmul.f32 %v2335, %v2359
        %v2365 = vlaneseq
        %v2366 = vshrl.u32 %v2365, 7
        %v2367 = vsub.s32 0, %v2366
        %v2368 = vrot.slane %v2317, %v2367
        %v2370 = vmul.f32 %v2360, %v2368
        %v2371 = vmul.f32 %v2361, %v2368
        %v2372 = vmul.f32 %v2362, %v2368
        %v2373 = vmul.f32 %v2363, %v2368
        %v2375 = vlaneseq
        %v2376 = vshrl.u32 %v2375, 7
        %v2377 = vsub.s32 0, %v2376
        %v2378 = vrot.slane %v2318, %v2377
        %v2380 = vadd.f32 %v2370, %v2378
        %v2381 = vadd.f32 %v2371, %v2378
        %v2382 = vadd.f32 %v2372, %v2378
        %v2383 = vadd.f32 %v2373, %v2378
        %v2384 = vpack.c.bf16 %v2381, %v2380
        %v2385 = vpack.c.bf16 %v2383, %v2382
        %v2386 = vld [vmem:[%s646] sm:$0xff]
        %v2387 = vld [vmem:[%s646 + $0x8] sm:$0xff]
        %v2388 = vld [vmem:[%s646 + $0x10] sm:$0xff]
        %v2389 = vld [vmem:[%s646 + $0x18] sm:$0xff]
        %v2390 = vld [vmem:[%s646 + $0x20] sm:$0xff]
        %v2391 = vld [vmem:[%s646 + $0x28] sm:$0xff]
        %v2392 = vld [vmem:[%s646 + $0x30] sm:$0xff]
        %v2393 = vld [vmem:[%s646 + $0x38] sm:$0xff]
        %v2394 = vld [vmem:[%s646 + $0x40] sm:$0xff]
        %v2395 = vld [vmem:[%s646 + $0x48] sm:$0xff]
        %v2396 = vld [vmem:[%s646 + $0x50] sm:$0xff]
        %v2397 = vld [vmem:[%s646 + $0x58] sm:$0xff]
        %v2398 = vld [vmem:[%s646 + $0x60] sm:$0xff]
        %v2399 = vld [vmem:[%s646 + $0x68] sm:$0xff]
        %v2400 = vld [vmem:[%s646 + $0x70] sm:$0xff]
        %v2401 = vld [vmem:[%s646 + $0x78] sm:$0xff]
        %v2402 = vld [vmem:[%s758] sm:$0x3]
        %v2404 = vlaneseq
        %v2405 = vshrl.u32 %v2404, 7
        %v2406 = vsub.s32 0, %v2405
        %v2407 = vrot.slane %v2402, %v2406
        %v2408 = vlaneseq
        %v2409 = vshrl.u32 %v2408, 7
        %v2410 = vsub.s32 1, %v2409
        %v2411 = vrot.slane %v2402, %v2410
        %v2430 = vunpack.c.l.b16 %v2386
        %v2431 = vunpack.c.h.b16 %v2386
        %v2432 = vunpack.c.l.b16 %v2387
        %v2433 = vunpack.c.h.b16 %v2387
        %v2434 = vunpack.c.l.b16 %v2388
        %v2435 = vunpack.c.h.b16 %v2388
        %v2436 = vunpack.c.l.b16 %v2389
        %v2437 = vunpack.c.h.b16 %v2389
        %v2438 = vunpack.c.l.b16 %v2390
        %v2439 = vunpack.c.h.b16 %v2390
        %v2440 = vunpack.c.l.b16 %v2391
        %v2441 = vunpack.c.h.b16 %v2391
        %v2442 = vunpack.c.l.b16 %v2392
        %v2443 = vunpack.c.h.b16 %v2392
        %v2444 = vunpack.c.l.b16 %v2393
        %v2445 = vunpack.c.h.b16 %v2393
        %v2446 = vunpack.c.l.b16 %v2394
        %v2447 = vunpack.c.h.b16 %v2394
        %v2448 = vunpack.c.l.b16 %v2395
        %v2449 = vunpack.c.h.b16 %v2395
        %v2450 = vunpack.c.l.b16 %v2396
        %v2451 = vunpack.c.h.b16 %v2396
        %v2452 = vunpack.c.l.b16 %v2397
        %v2453 = vunpack.c.h.b16 %v2397
        %v2454 = vunpack.c.l.b16 %v2398
        %v2455 = vunpack.c.h.b16 %v2398
        %v2456 = vunpack.c.l.b16 %v2399
        %v2457 = vunpack.c.h.b16 %v2399
        %v2458 = vunpack.c.l.b16 %v2400
        %v2459 = vunpack.c.h.b16 %v2400
        %v2460 = vunpack.c.l.b16 %v2401
        %v2461 = vunpack.c.h.b16 %v2401
        %v2462 = vpack.c.b16 %v2432, %v2430
        %v2463 = vpack.c.b16 %v2433, %v2431
        %v2464 = vpack.c.b16 %v2436, %v2434
        %v2465 = vpack.c.b16 %v2437, %v2435
        %v2466 = vpack.c.b16 %v2440, %v2438
        %v2467 = vpack.c.b16 %v2441, %v2439
        %v2468 = vpack.c.b16 %v2444, %v2442
        %v2469 = vpack.c.b16 %v2445, %v2443
        %v2470 = vpack.c.b16 %v2448, %v2446
        %v2471 = vpack.c.b16 %v2449, %v2447
        %v2472 = vpack.c.b16 %v2452, %v2450
        %v2473 = vpack.c.b16 %v2453, %v2451
        %v2474 = vpack.c.b16 %v2456, %v2454
        %v2475 = vpack.c.b16 %v2457, %v2455
        %v2476 = vpack.c.b16 %v2460, %v2458
        %v2477 = vpack.c.b16 %v2461, %v2459
        %2494 = vmatprep.subr.bf16.mxu0 %v2463
        %2495 = vmatpush1.bf16.msra.mxu0 %v2462
        %2496 = vmatprep.subr.bf16.mxu0 %v2465
        %2497 = vmatpush1.bf16.msra.mxu0 %v2464
        %2498 = vmatprep.subr.bf16.mxu0 %v2467
        %2499 = vmatpush1.bf16.msra.mxu0 %v2466
        %2500 = vmatprep.subr.bf16.mxu0 %v2469
        %2501 = vmatpush1.bf16.msra.mxu0 %v2468
        %2502 = vmatprep.subr.bf16.mxu0 %v2471
        %2503 = vmatpush1.bf16.msra.mxu0 %v2470
        %2504 = vmatprep.subr.bf16.mxu0 %v2473
        %2505 = vmatpush1.bf16.msra.mxu0 %v2472
        %2506 = vmatprep.subr.bf16.mxu0 %v2475
        %2507 = vmatpush1.bf16.msra.mxu0 %v2474
        %2508 = vmatprep.subr.bf16.mxu0 %v2477
        %2509 = vmatpush1.bf16.msra.mxu0 %v2476
        %2510 = vmatprep.subr.bf16.mxu0 0
        %2511 = vmatpush1.bf16.msra.mxu0 0
        %2512 = vmatprep.subr.bf16.mxu0 0
        %2513 = vmatpush1.bf16.msra.mxu0 0
        %2514 = vmatprep.subr.bf16.mxu0 0
        %2515 = vmatpush1.bf16.msra.mxu0 0
        %2516 = vmatprep.subr.bf16.mxu0 0
        %2517 = vmatpush1.bf16.msra.mxu0 0
        %2518 = vmatprep.subr.bf16.mxu0 0
        %2519 = vmatpush1.bf16.msra.mxu0 0
        %2520 = vmatprep.subr.bf16.mxu0 0
        %2521 = vmatpush1.bf16.msra.mxu0 0
        %2522 = vmatprep.subr.bf16.mxu0 0
        %2523 = vmatpush1.bf16.msra.mxu0 0
        %2524 = vmatprep.subr.bf16.mxu0 0
        %2525 = vmatpush1.bf16.msra.mxu0 0
        %2526 = vmatprep.mubr.bf16.mxu0 0
        %2527 = vmatmul.mubr.bf16.gmra.mrb[0].mxu0 %v2384
        %v2528 = vpop.f32.mrb[0].mxu0
        %v2529 = vadd.f32 %v2407, %v2528
        %v2530 = vpop.f32.mrb[0].mxu0
        %v2531 = vadd.f32 %v2411, %v2530
        %v2532 = vpop.f32.mrb[0].mxu0
        %v2533 = vadd.f32 %v2407, %v2532
        %v2534 = vpop.f32.mrb[0].mxu0
        %v2535 = vadd.f32 %v2411, %v2534
        %2536 = vmatprep.mubr.bf16.mxu0 0
        %2537 = vmatmul.mubr.bf16.gmra.mrb[0].mxu0 %v2385
        %v2538 = vpop.f32.mrb[0].mxu0
        %v2539 = vadd.f32 %v2407, %v2538
        %v2540 = vpop.f32.mrb[0].mxu0
        %v2541 = vadd.f32 %v2411, %v2540
        %v2542 = vpop.f32.mrb[0].mxu0
        %v2543 = vadd.f32 %v2407, %v2542
        %v2544 = vpop.f32.mrb[0].mxu0
        %v2545 = vadd.f32 %v2411, %v2544
        %2546 = vdwg.mxu0
        %v2547 = vmax.f32 %v2529, 0.0
        %v2548 = vmax.f32 %v2531, 0.0
        %v2549 = vmax.f32 %v2533, 0.0
        %v2550 = vmax.f32 %v2535, 0.0
        %v2551 = vmax.f32 %v2539, 0.0
        %v2552 = vmax.f32 %v2541, 0.0
        %v2553 = vmax.f32 %v2543, 0.0
        %v2554 = vmax.f32 %v2545, 0.0
        %v2555 = vpack.c.bf16 %v2549, %v2547
        %v2556 = vpack.c.bf16 %v2550, %v2548
        %v2557 = vpack.c.bf16 %v2553, %v2551
        %v2558 = vpack.c.bf16 %v2554, %v2552
        %v2559 = vld [vmem:[%s655] sm:$0xf]
        %v2560 = vld [vmem:[%s655 + $0x4] sm:$0xf]
        %v2561 = vld [vmem:[%s655 + $0x8] sm:$0xf]
        %v2562 = vld [vmem:[%s655 + $0xc] sm:$0xf]
        %v2563 = vld [vmem:[%s655 + $0x10] sm:$0xf]
        %v2564 = vld [vmem:[%s655 + $0x14] sm:$0xf]
        %v2565 = vld [vmem:[%s655 + $0x18] sm:$0xf]
        %v2566 = vld [vmem:[%s655 + $0x1c] sm:$0xf]
        %v2567 = vld [vmem:[%s655 + $0x20] sm:$0xf]
        %v2568 = vld [vmem:[%s655 + $0x24] sm:$0xf]
        %v2569 = vld [vmem:[%s655 + $0x28] sm:$0xf]
        %v2570 = vld [vmem:[%s655 + $0x2c] sm:$0xf]
        %v2571 = vld [vmem:[%s655 + $0x30] sm:$0xf]
        %v2572 = vld [vmem:[%s655 + $0x34] sm:$0xf]
        %v2573 = vld [vmem:[%s655 + $0x38] sm:$0xf]
        %v2574 = vld [vmem:[%s655 + $0x3c] sm:$0xf]
        %v2575 = vld [vmem:[%s655 + $0x40] sm:$0xf]
        %v2576 = vld [vmem:[%s655 + $0x44] sm:$0xf]
        %v2577 = vld [vmem:[%s655 + $0x48] sm:$0xf]
        %v2578 = vld [vmem:[%s655 + $0x4c] sm:$0xf]
        %v2579 = vld [vmem:[%s655 + $0x50] sm:$0xf]
        %v2580 = vld [vmem:[%s655 + $0x54] sm:$0xf]
        %v2581 = vld [vmem:[%s655 + $0x58] sm:$0xf]
        %v2582 = vld [vmem:[%s655 + $0x5c] sm:$0xf]
        %v2583 = vld [vmem:[%s655 + $0x60] sm:$0xf]
        %v2584 = vld [vmem:[%s655 + $0x64] sm:$0xf]
        %v2585 = vld [vmem:[%s655 + $0x68] sm:$0xf]
        %v2586 = vld [vmem:[%s655 + $0x6c] sm:$0xf]
        %v2587 = vld [vmem:[%s655 + $0x70] sm:$0xf]
        %v2588 = vld [vmem:[%s655 + $0x74] sm:$0xf]
        %v2589 = vld [vmem:[%s655 + $0x78] sm:$0xf]
        %v2590 = vld [vmem:[%s655 + $0x7c] sm:$0xf]
        %v2591 = vld [vmem:[%s761] sm:$0x1]
        %v2593 = vlaneseq
        %v2594 = vshrl.u32 %v2593, 7
        %v2595 = vsub.s32 0, %v2594
        %v2596 = vrot.slane %v2591, %v2595
        %v2630 = vunpack.c.l.b16 %v2559
        %v2631 = vunpack.c.l.b16 %v2560
        %v2632 = vunpack.c.l.b16 %v2561
        %v2633 = vunpack.c.l.b16 %v2562
        %v2634 = vunpack.c.l.b16 %v2563
        %v2635 = vunpack.c.l.b16 %v2564
        %v2636 = vunpack.c.l.b16 %v2565
        %v2637 = vunpack.c.l.b16 %v2566
        %v2638 = vunpack.c.l.b16 %v2567
        %v2639 = vunpack.c.l.b16 %v2568
        %v2640 = vunpack.c.l.b16 %v2569
        %v2641 = vunpack.c.l.b16 %v2570
        %v2642 = vunpack.c.l.b16 %v2571
        %v2643 = vunpack.c.l.b16 %v2572
        %v2644 = vunpack.c.l.b16 %v2573
        %v2645 = vunpack.c.l.b16 %v2574
        %v2646 = vunpack.c.l.b16 %v2575
        %v2647 = vunpack.c.l.b16 %v2576
        %v2648 = vunpack.c.l.b16 %v2577
        %v2649 = vunpack.c.l.b16 %v2578
        %v2650 = vunpack.c.l.b16 %v2579
        %v2651 = vunpack.c.l.b16 %v2580
        %v2652 = vunpack.c.l.b16 %v2581
        %v2653 = vunpack.c.l.b16 %v2582
        %v2654 = vunpack.c.l.b16 %v2583
        %v2655 = vunpack.c.l.b16 %v2584
        %v2656 = vunpack.c.l.b16 %v2585
        %v2657 = vunpack.c.l.b16 %v2586
        %v2658 = vunpack.c.l.b16 %v2587
        %v2659 = vunpack.c.l.b16 %v2588
        %v2660 = vunpack.c.l.b16 %v2589
        %v2661 = vunpack.c.l.b16 %v2590
        %v2662 = vpack.c.b16 %v2631, %v2630
        %v2663 = vpack.c.b16 %v2633, %v2632
        %v2664 = vpack.c.b16 %v2635, %v2634
        %v2665 = vpack.c.b16 %v2637, %v2636
        %v2666 = vpack.c.b16 %v2639, %v2638
        %v2667 = vpack.c.b16 %v2641, %v2640
        %v2668 = vpack.c.b16 %v2643, %v2642
        %v2669 = vpack.c.b16 %v2645, %v2644
        %v2670 = vpack.c.b16 %v2647, %v2646
        %v2671 = vpack.c.b16 %v2649, %v2648
        %v2672 = vpack.c.b16 %v2651, %v2650
        %v2673 = vpack.c.b16 %v2653, %v2652
        %v2674 = vpack.c.b16 %v2655, %v2654
        %v2675 = vpack.c.b16 %v2657, %v2656
        %v2676 = vpack.c.b16 %v2659, %v2658
        %v2677 = vpack.c.b16 %v2661, %v2660
        %2694 = vmatprep.subr.bf16.mxu0 0
        %2695 = vmatpush1.bf16.msra.mxu0 %v2662
        %2696 = vmatprep.subr.bf16.mxu0 0
        %2697 = vmatpush1.bf16.msra.mxu0 %v2663
        %2698 = vmatprep.subr.bf16.mxu0 0
        %2699 = vmatpush1.bf16.msra.mxu0 %v2664
        %2700 = vmatprep.subr.bf16.mxu0 0
        %2701 = vmatpush1.bf16.msra.mxu0 %v2665
        %2702 = vmatprep.subr.bf16.mxu0 0
        %2703 = vmatpush1.bf16.msra.mxu0 %v2666
        %2704 = vmatprep.subr.bf16.mxu0 0
        %2705 = vmatpush1.bf16.msra.mxu0 %v2667
        %2706 = vmatprep.subr.bf16.mxu0 0
        %2707 = vmatpush1.bf16.msra.mxu0 %v2668
        %2708 = vmatprep.subr.bf16.mxu0 0
        %2709 = vmatpush1.bf16.msra.mxu0 %v2669
        %2710 = vmatprep.subr.bf16.mxu0 0
        %2711 = vmatpush1.bf16.msra.mxu0 %v2670
        %2712 = vmatprep.subr.bf16.mxu0 0
        %2713 = vmatpush1.bf16.msra.mxu0 %v2671
        %2714 = vmatprep.subr.bf16.mxu0 0
        %2715 = vmatpush1.bf16.msra.mxu0 %v2672
        %2716 = vmatprep.subr.bf16.mxu0 0
        %2717 = vmatpush1.bf16.msra.mxu0 %v2673
        %2718 = vmatprep.subr.bf16.mxu0 0
        %2719 = vmatpush1.bf16.msra.mxu0 %v2674
        %2720 = vmatprep.subr.bf16.mxu0 0
        %2721 = vmatpush1.bf16.msra.mxu0 %v2675
        %2722 = vmatprep.subr.bf16.mxu0 0
        %2723 = vmatpush1.bf16.msra.mxu0 %v2676
        %2724 = vmatprep.subr.bf16.mxu0 0
        %2725 = vmatpush1.bf16.msra.mxu0 %v2677
        %2726 = vmatprep.mubr.bf16.mxu0 %v2556
        %2727 = vmatmul.mubr.bf16.gmra.mrb[0].mxu0 %v2555
        %v2728 = vpop.f32.mrb[0].mxu0
        %v2729 = vadd.f32 %v2596, %v2728
        %v2730 = vpop.f32.mrb[0].mxu0
        %v2731 = vpop.f32.mrb[0].mxu0
        %v2732 = vadd.f32 %v2596, %v2731
        %v2733 = vpop.f32.mrb[0].mxu0
        %2734 = vmatprep.mubr.bf16.mxu0 %v2558
        %2735 = vmatmul.mubr.bf16.gmra.mrb[0].mxu0 %v2557
        %v2736 = vpop.f32.mrb[0].mxu0
        %v2737 = vadd.f32 %v2596, %v2736
        %v2738 = vpop.f32.mrb[0].mxu0
        %v2739 = vpop.f32.mrb[0].mxu0
        %v2740 = vadd.f32 %v2596, %v2739
        %v2741 = vpop.f32.mrb[0].mxu0
        %2742 = vdwg.mxu0
        %v2743 = vadd.f32 %v2380, %v2729
        %v2744 = vadd.f32 %v2381, %v2732
        %v2745 = vadd.f32 %v2382, %v2737
        %v2746 = vadd.f32 %v2383, %v2740
        %v2747 = vld [vmem:[%s764] sm:$0x1]
        %v2748 = vld [vmem:[%s767] sm:$0x1]
        %2749 = vadd.xlane.f32.xlu0 %v2743
        %v2750 = vpop.xlane.xlu0 %2749
        %2751 = vadd.xlane.f32.xlu0 %v2744
        %v2752 = vpop.xlane.xlu0 %2751
        %2753 = vadd.xlane.f32.xlu0 %v2745
        %v2754 = vpop.xlane.xlu0 %2753
        %2755 = vadd.xlane.f32.xlu0 %v2746
        %v2756 = vpop.xlane.xlu0 %2755
        %v2757 = vmul.f32 %v2750, %v2327
        %v2758 = vmul.f32 %v2752, %v2327
        %v2759 = vmul.f32 %v2754, %v2327
        %v2760 = vmul.f32 %v2756, %v2327
        %v2761 = vsub.f32 %v2743, %v2757
        %v2762 = vsub.f32 %v2744, %v2758
        %v2763 = vsub.f32 %v2745, %v2759
        %v2764 = vsub.f32 %v2746, %v2760
        %v2765 = vmul.f32 %v2761, %v2761
        %v2766 = vmul.f32 %v2762, %v2762
        %v2767 = vmul.f32 %v2763, %v2763
        %v2768 = vmul.f32 %v2764, %v2764
        %2769 = vadd.xlane.f32.xlu0 %v2765
        %v2770 = vpop.xlane.xlu0 %2769
        %2771 = vadd.xlane.f32.xlu0 %v2766
        %v2772 = vpop.xlane.xlu0 %2771
        %2773 = vadd.xlane.f32.xlu0 %v2767
        %v2774 = vpop.xlane.xlu0 %2773
        %2775 = vadd.xlane.f32.xlu0 %v2768
        %v2776 = vpop.xlane.xlu0 %2775
        %v2777 = vmul.f32 %v2770, %v2327
        %v2778 = vmul.f32 %v2772, %v2327
        %v2779 = vmul.f32 %v2774, %v2327
        %v2780 = vmul.f32 %v2776, %v2327
        %v2781 = vadd.f32 %v2777, 1e-05
        %v2782 = vadd.f32 %v2778, 1e-05
        %v2783 = vadd.f32 %v2779, 1e-05
        %v2784 = vadd.f32 %v2780, 1e-05
        %v2785 = vrsqrt.pop %v2781
        %v2786 = vrsqrt.pop %v2782
        %v2787 = vrsqrt.pop %v2783
        %v2788 = vrsqrt.pop %v2784
        %v2789 = vmul.f32 %v2761, %v2785
        %v2790 = vmul.f32 %v2762, %v2786
        %v2791 = vmul.f32 %v2763, %v2787
        %v2792 = vmul.f32 %v2764, %v2788
        %v2794 = vlaneseq
        %v2795 = vshrl.u32 %v2794, 7
        %v2796 = vsub.s32 0, %v2795
        %v2797 = vrot.slane %v2747, %v2796
        %v2799 = vmul.f32 %v2789, %v2797
        %v2800 = vmul.f32 %v2790, %v2797
        %v2801 = vmul.f32 %v2791, %v2797
        %v2802 = vmul.f32 %v2792, %v2797
        %v2804 = vlaneseq
        %v2805 = vshrl.u32 %v2804, 7
        %v2806 = vsub.s32 0, %v2805
        %v2807 = vrot.slane %v2748, %v2806
        %v2809 = vadd.f32 %v2799, %v2807
        %v2810 = vadd.f32 %v2800, %v2807
        %v2811 = vadd.f32 %v2801, %v2807
        %v2812 = vadd.f32 %v2802, %v2807
        %2813 = vst [vmem:[#allocation2] sm:$0xff] %v2809
        %2814 = vst [vmem:[#allocation2 + $0x8] sm:$0xff] %v2810
        %2815 = vst [vmem:[#allocation2 + $0x10] sm:$0xff] %v2811
        %2816 = vst [vmem:[#allocation2 + $0x18] sm:$0xff] %v2812
        %2817 = vst [vmem:[%s744] sm:$0xff] %v2809
        %2818 = vst [vmem:[%s744 + $0x8] sm:$0xff] %v2810
        %2819 = vst [vmem:[%s744 + $0x10] sm:$0xff] %v2811
        %2820 = vst [vmem:[%s744 + $0x18] sm:$0xff] %v2812
        %s2821 = sand.u32 %s399, 1
        %s2822 = scalar_lea.sflag [#allocation5], %s2821
        %s2823 = sand.u32 %s399, 1
        %s2824 = smul.addr %s2823, 32
        %s2825 = scalar_lea.vmem [#allocation14], %s2824
        // Predicated region
        $region101: #{tpu_custom_call.1} parent=71 // pred_check
          %p2826 = pneg %p409
        $region102: #{tpu_custom_call.1} parent=71 // pred_check_branch
          %2828 = sbr.rel (%p2826) target = $region104
        $region103: #{tpu_custom_call.1} parent=71 // pred_region
          %s2829 = smul.u32 2, %s43
          %s2831 = ssub.s32 512, 512
          %2832 = vsyncadd %s2822, %s2831
          %s2833 = smul.addr %s2829, 2
          %s2834 = smul.addr %s44, 8
          %s2835 = sadd.s32 %s2833, %s2834
          %s2836 = smul.addr %s2835, 128
          %s2837 = scalar_lea.hbm %s13, %s2836
          %s2838 = sshll.u32 %s2825, 4
          %s2839 = int_to_ptr.vmem [resolvable:$true] %s2838
          %2844 = dma.vmem_to_hbm [thread:$0]  %s2839, 512, %s2837, %s2822, 128, 128, 8
        $region104: #{tpu_custom_call.1} parent=71 // pred_fallthru
          _
      $region72: #{tpu_custom_call.1} parent=5 // pred_fallthru
        _
      %p2845 = scmp.le.s32.totalorder 2, %s34
      // Predicated region
      $region105: #{tpu_custom_call.1} parent=5 // pred_check
        %p2846 = pneg %p2845
      $region106: #{tpu_custom_call.1} parent=5 // pred_check_branch
        %2848 = sbr.rel (%p2846) target = $region108
      $region107: #{tpu_custom_call.1} parent=5 // pred_region
        %s2849 = ssub.s32 %s34, 2
        // Predicated region
        $region109: #{tpu_custom_call.1} parent=107 // pred_check
          %p2850 = pneg %p415
        $region110: #{tpu_custom_call.1} parent=107 // pred_check_branch
          %2852 = sbr.rel (%p2850) target = $region112
        $region111: #{tpu_custom_call.1} parent=107 // pred_region
          %s2853 = sand.u32 %s400, 1
          %s2854 = scalar_lea.sflag [#allocation5], %s2853
          %s2855 = sand.u32 %s400, 1
          %s2856 = smul.addr %s2855, 32
          %s2857 = scalar_lea.vmem [#allocation14], %s2856
          %2858 = dma.done %s2854, 512
        $region112: #{tpu_custom_call.1} parent=107 // pred_fallthru
          _
      $region108: #{tpu_custom_call.1} parent=5 // pred_fallthru
        _
    $region6: #{tpu_custom_call.1} parent=1 // loop_footer
      %s38 = sadd.s32 1, %s34
    $region7: #{tpu_custom_call.1} parent=1 // loop_footer_branch
      %33 = sbr.rel target = $region3
    $region8: #{tpu_custom_call.1} parent=1 // loop_exit
      _
    %2859 = vsyncpa [#allocation4], 1
    %s2860 = scalar_lea.sflag [#allocation4], 1
    %2861 = vsyncpa %s2860, 1
    %2862 = vsyncpa [#allocation7], 1
    %s2863 = scalar_lea.sflag [#allocation7], 1
    %2864 = vsyncpa %s2863, 1
    %2865 = vsyncpa [#allocation10], 1
    %s2866 = scalar_lea.sflag [#allocation10], 1
    %2867 = vsyncpa %s2866, 1
    %2868 = vsyncpa [#allocation13], 1
    %s2869 = scalar_lea.sflag [#allocation13], 1
    %2870 = vsyncpa %s2869, 1
    %2871 = vsyncpa [#allocation5], 1
    %s2872 = scalar_lea.sflag [#allocation5], 1
    %2873 = vsyncpa %s2872, 1

</llo_original>
